<compile_context>
chip_gen: v6e
topology: v6e:2x2x1
jax: 0.10.0
libtpu: 0.0.40
codegen_flags: <defaults>
</compile_context>

<pallas_src>
import jax
import jax.numpy as jnp
from jax import lax
from jax.experimental import pallas as pl
from jax.experimental.pallas import tpu as pltpu

EPS = 1e-5  # PyTorch GroupNorm default eps


# ----------------------------------------------------------------------------- kernel factory

def _make_fused_kernel(H, W, BN, Cin, Cout, G, K, P, is_residual, has_proj):
    BNH = BN * H
    inv1 = 1.0 / float((Cin // G) * H * W)
    inv2 = 1.0 / float((Cout // G) * H * W)

    def kernel(*refs):
        if has_proj:
            (x_ref, emb_ref, s_ref, st_ref, rmod_ref,
             g1_ref, be1_ref, m1_ref, m1t_ref, a1_ref, b1_ref,
             g2_ref, be2_ref, m2_ref, m2t_ref, a2_ref, b2_ref,
             rproj_ref, b3_ref, o_ref) = refs
        else:
            (x_ref, emb_ref, s_ref, st_ref, rmod_ref,
             g1_ref, be1_ref, m1_ref, m1t_ref, a1_ref, b1_ref,
             g2_ref, be2_ref, m2_ref, m2t_ref, a2_ref, b2_ref,
             o_ref) = refs
            rproj_ref = b3_ref = None

        x = x_ref[...]                 # (BNH, W*Cin) f32, lane-dense
        S = s_ref[...]                 # (BN, BNH)   rows-of-one-image selector
        ST = st_ref[...]               # (BNH, BN)   its transpose (row broadcast)
        rmod = rmod_ref[...]           # (BNH, 1)    float(row % H)

        def gn_relu(y, masks_t, masks, gamma, beta, inv_cnt):
            # Per-image GroupNorm + ReLU; all reductions / broadcasts as tiny MXU matmuls.
            r1 = jnp.dot(S, y, preferred_element_type=jnp.float32)        # (BN, WC)
            r2 = jnp.dot(S, y * y, preferred_element_type=jnp.float32)    # (BN, WC)
            mu = jnp.dot(r1, masks_t, preferred_element_type=jnp.float32) * inv_cnt   # (BN, G)
            ex2 = jnp.dot(r2, masks_t, preferred_element_type=jnp.float32) * inv_cnt  # (BN, G)
            var = jnp.maximum(ex2 - mu * mu, 0.0)
            rstd = lax.rsqrt(var + EPS)                                    # (BN, G)
            mean_r = jnp.dot(ST, jnp.dot(mu, masks, preferred_element_type=jnp.float32),
                             preferred_element_type=jnp.float32)           # (BNH, WC)
            rstd_r = jnp.dot(ST, jnp.dot(rstd, masks, preferred_element_type=jnp.float32),
                             preferred_element_type=jnp.float32)           # (BNH, WC)
            out = (y - mean_r) * (rstd_r * gamma) + beta
            return jnp.maximum(out, 0.0)

        def conv_same(y, a_ref, bias):
            # K accumulating matmuls (one per row tap); kw shift + channel mix folded into
            # the banded (W*Ci, W*Co) matrix a_ref[kh]; row shift via roll + boundary mask.
            acc = None
            for kh in range(K):
                off = kh - P                                   # input row = output row + off
                if off == 0:
                    tap = y
                else:
                    tap = pltpu.roll(y, shift=(-off) % BNH, axis=0)
                    if off < 0:                                # zero first |off| rows of each image
                        mask = (rmod >= float(-off)).astype(jnp.float32)
                    else:                                      # zero last off rows of each image
                        mask = (rmod < float(H - off)).astype(jnp.float32)
                    tap = tap * mask
                part = jnp.dot(tap.astype(jnp.bfloat16), a_ref[kh],
                               preferred_element_type=jnp.float32)
                acc = part if acc is None else acc + part
            return acc + bias

        h = gn_relu(x, m1t_ref[...], m1_ref[...], g1_ref[...], be1_ref[...], inv1)
        h = conv_same(h, a1_ref, b1_ref[...])                   # (BNH, W*Cout)
        # per-image (time [+ promote]) embedding bias, broadcast over the H rows of each image
        h = h + jnp.dot(ST, emb_ref[...], preferred_element_type=jnp.float32)
        h = gn_relu(h, m2t_ref[...], m2_ref[...], g2_ref[...], be2_ref[...], inv2)
        out = conv_same(h, a2_ref, b2_ref[...])
        if is_residual:
            if has_proj:                                        # fused 1x1-conv residual (bf16 MXU)
                out = out + jnp.dot(x.astype(jnp.bfloat16), rproj_ref[...],
                                    preferred_element_type=jnp.float32) + b3_ref[...]
            else:                                               # conv_3 == nn.Identity
                out = out + x
        o_ref[...] = out

    return kernel


# ----------------------------------------------------------------------------- wrapper helpers

def _per_row_conv_matrices(w_hwio, width, padding):
    """(Kh,Kw,Ci,Co) 'same' conv weights -> (Kh, W*Ci, W*Co) bf16: the kw shift + channel mix
    of each row tap folded into a banded matrix (column zero-padding is in the band)."""
    kh, kw, ci, co = w_hwio.shape
    wi = jnp.arange(width)[:, None]                         # input col
    wo = jnp.arange(width)[None, :]                         # output col
    k = jnp.arange(kw)[:, None, None]
    sel = ((wi - wo + padding)[None, :, :] == k).astype(jnp.float32)     # (Kw, W, W)
    a = jnp.einsum("kab,hkio->haibo", sel, w_hwio.astype(jnp.float32))   # (Kh, W, Ci, W, Co)
    return a.reshape(kh, width * ci, width * co).astype(jnp.bfloat16)


def _blockdiag_1x1(w_io, width):
    cin, cout = w_io.shape
    a = jnp.einsum("ab,io->aibo", jnp.eye(width, dtype=jnp.float32),
                   w_io.astype(jnp.float32))
    return a.reshape(width * cin, width * cout).astype(jnp.bfloat16)


def _tile_lanes(v, width):
    """(C,) -> (1, W*C) so lane w*C + c holds v[c]."""
    return jnp.tile(v.astype(jnp.float32), (width,)).reshape(1, -1)


def _group_masks(channels, groups, width):
    grp = jnp.arange(channels) // (channels // groups)
    m = (grp[None, :] == jnp.arange(groups)[:, None]).astype(jnp.float32)  # (G, C)
    return jnp.tile(m, (1, width))                                         # (G, W*C)


def _pick_batch_block(n, h, target_rows=256):
    """Largest divisor BN of N with BN*H <= ~256 rows and TPU-tileable block shapes."""
    for cand in range(n, 0, -1):
        if n % cand:
            continue
        if cand * h > max(target_rows, h):
            continue
        ok_rows = (cand * h) % 8 == 0 or cand == n
        ok_batch = cand % 8 == 0 or cand == n
        if ok_rows and ok_batch:
            return cand
    return n                                                   # full batch is always legal


# ----------------------------------------------------------------------------- module forward

def resnet_module_forward(params, x_nhwc, time_embedding, promote_embedding, *,
                          num_groups=8, kernel_size=3, padding=1, is_residual=True):
    """Pallas equivalent of ResnetModule.forward.

    Activations are channels-last (NHWC); numerically identical to the NCHW PyTorch module
    under the layout permutation (keeping NHWC end-to-end avoids transpose HBM round trips).
    """
    N, H, W, Cin = x_nhwc.shape
    Cout = params["w1"].shape[-1]
    G, K, P = num_groups, kernel_size, padding
    assert Cin % G == 0 and Cout % G == 0
    # Only the stride-1 spatially-'same' case is fused here (matches the module defaults).
    assert 2 * P == K - 1, "fused kernel supports 'same'-size stride-1 convs only"

    WCin, WCout = W * Cin, W * Cout
    has_proj = bool(is_residual and Cin != Cout)

    BN = _pick_batch_block(N, H)
    BNH = BN * H
    grid = (N // BN,)

    # NHWC -> lane-dense (N*H, W*Cin); contiguous, so this reshape is free.
    x2 = x_nhwc.astype(jnp.float32).reshape(N * H, WCin)

    # time_fc / promote_fc: microscopic matmuls -> plain JAX, folded into a per-image bias.
    emb = time_embedding.astype(jnp.float32) @ params["wt"] + params["bt"]
    if is_residual:
        emb = emb + promote_embedding.astype(jnp.float32) @ params["wp"] + params["bp"]
    emb_t = jnp.tile(emb, (1, W))                               # (N, W*Cout) lane-tiled

    # Selector matrices for per-image GN stats / row broadcast, and per-image row index.
    S = jnp.repeat(jnp.eye(BN, dtype=jnp.float32), H, axis=1)   # (BN, BNH)
    ST = S.T                                                    # (BNH, BN)
    rmod = (jnp.arange(BNH, dtype=jnp.float32) % H).reshape(BNH, 1)

    masks1 = _group_masks(Cin, G, W)                            # (G, W*Cin)
    masks2 = _group_masks(Cout, G, W)                           # (G, W*Cout)
    a1 = _per_row_conv_matrices(params["w1"], W, P)             # (K, W*Cin,  W*Cout) bf16
    a2 = _per_row_conv_matrices(params["w2"], W, P)             # (K, W*Cout, W*Cout) bf16

    inputs = [
        x2, emb_t, S, ST, rmod,
        _tile_lanes(params["gn1_gamma"], W), _tile_lanes(params["gn1_beta"], W),
        masks1, masks1.T, a1, _tile_lanes(params["b1"], W),
        _tile_lanes(params["gn2_gamma"], W), _tile_lanes(params["gn2_beta"], W),
        masks2, masks2.T, a2, _tile_lanes(params["b2"], W),
    ]
    cst2 = lambda n: (0, 0)
    cst3 = lambda n: (0, 0, 0)
    in_specs = [
        pl.BlockSpec((BNH, WCin), lambda n: (n, 0)),            # x: BN images per step
        pl.BlockSpec((BN, WCout), lambda n: (n, 0)),            # per-image emb bias
        pl.BlockSpec((BN, BNH), cst2),
        pl.BlockSpec((BNH, BN), cst2),
        pl.BlockSpec((BNH, 1), cst2),
        pl.BlockSpec((1, WCin), cst2), pl.BlockSpec((1, WCin), cst2),
        pl.BlockSpec((G, WCin), cst2), pl.BlockSpec((WCin, G), cst2),
        pl.BlockSpec((K, WCin, WCout), cst3), pl.BlockSpec((1, WCout), cst2),
        pl.BlockSpec((1, WCout), cst2), pl.BlockSpec((1, WCout), cst2),
        pl.BlockSpec((G, WCout), cst2), pl.BlockSpec((WCout, G), cst2),
        pl.BlockSpec((K, WCout, WCout), cst3), pl.BlockSpec((1, WCout), cst2),
    ]
    if has_proj:
        inputs += [_blockdiag_1x1(params["w3"], W), _tile_lanes(params["b3"], W)]
        in_specs += [pl.BlockSpec((WCin, WCout), cst2), pl.BlockSpec((1, WCout), cst2)]

    kernel = _make_fused_kernel(H, W, BN, Cin, Cout, G, K, P, is_residual, has_proj)

    flops = 2 * N * H * K * (WCin * WCout + WCout * WCout)      # conv matmuls (banded)
    flops += 2 * N * H * WCin * WCout if has_proj else 0        # 1x1 residual
    flops += 2 * N * H * 2 * (WCin + WCout)                     # GN stat matmuls (approx)
    bytes_accessed = N * H * WCout * 4 + sum(int(a.size) * a.dtype.itemsize for a in inputs)
    cost = pl.CostEstimate(flops=int(flops), transcendentals=int(2 * N * G),
                           bytes_accessed=int(bytes_accessed))

    out = pl.pallas_call(
        kernel,
        out_shape=jax.ShapeDtypeStruct((N * H, WCout), jnp.float32),
        grid_spec=pltpu.PrefetchScalarGridSpec(
            num_scalar_prefetch=0,
            grid=grid,
            in_specs=in_specs,
            out_specs=pl.BlockSpec((BNH, WCout), lambda n: (n, 0)),
        ),
        compiler_params=pltpu.CompilerParams(dimension_semantics=("parallel",)),
        cost_estimate=cost,
    )(*inputs)

    return out.reshape(N, H, W, Cout)                           # NHWC (free reshape)


# ----------------------------------------------------------------------------- params & reference

def init_params(key, in_channels, out_channels, embedding_dim, kernel_size):
    ks = jax.random.split(key, 12)
    nrm = lambda k, shape, s=0.1: (s * jax.random.normal(k, shape)).astype(jnp.float32)
    params = {
        "gn1_gamma": jnp.ones((in_channels,), jnp.float32) + nrm(ks[0], (in_channels,), 0.05),
        "gn1_beta": nrm(ks[1], (in_channels,), 0.05),
        "w1": nrm(ks[2], (kernel_size, kernel_size, in_channels, out_channels)),
        "b1": nrm(ks[3], (out_channels,), 0.05),
        "gn2_gamma": jnp.ones((out_channels,), jnp.float32) + nrm(ks[4], (out_channels,), 0.05),
        "gn2_beta": nrm(ks[5], (out_channels,), 0.05),
        "w2": nrm(ks[6], (kernel_size, kernel_size, out_channels, out_channels)),
        "b2": nrm(ks[7], (out_channels,), 0.05),
        "wt": nrm(ks[8], (embedding_dim, out_channels)),
        "bt": nrm(ks[9], (out_channels,), 0.05),
        "wp": nrm(ks[10], (embedding_dim, out_channels)),
        "bp": nrm(ks[11], (out_channels,), 0.05),
    }
    if in_channels != out_channels:
        k3a, k3b = jax.random.split(ks[11])
        params["w3"] = nrm(k3a, (in_channels, out_channels))
        params["b3"] = nrm(k3b, (out_channels,), 0.05)
    else:  # conv_3 == nn.Identity()
        params["w3"] = jnp.eye(in_channels, dtype=jnp.float32)
        params["b3"] = jnp.zeros((out_channels,), jnp.float32)
    return params


def reference_forward(params, x, t, p, *, num_groups, kernel_size, padding, is_residual):
    """Pure-JAX reference (NHWC), f32 everywhere."""
    x = x.astype(jnp.float32)

    def gn(y, gamma, beta):
        N, H, W, C = y.shape
        cg = C // num_groups
        yr = y.reshape(N, H, W, num_groups, cg)
        m = jnp.mean(yr, axis=(1, 2, 4), keepdims=True)
        v = jnp.mean((yr - m) ** 2, axis=(1, 2, 4), keepdims=True)
        yn = ((yr - m) / jnp.sqrt(v + EPS)).reshape(N, H, W, C)
        return yn * gamma.reshape(1, 1, 1, C) + beta.reshape(1, 1, 1, C)

    def conv(y, w, b):
        out = lax.conv_general_dilated(y, w, (1, 1), [(padding, padding), (padding, padding)],
                                       dimension_numbers=("NHWC", "HWIO", "NHWC"))
        return out + b.reshape(1, 1, 1, -1)

    h = conv(jax.nn.relu(gn(x, params["gn1_gamma"], params["gn1_beta"])), params["w1"], params["b1"])
    te = t @ params["wt"] + params["bt"]
    if is_residual:
        pe = p @ params["wp"] + params["bp"]
        h2 = h + (te + pe)[:, None, None, :]
        cr = conv(jax.nn.relu(gn(h2, params["gn2_gamma"], params["gn2_beta"])), params["w2"], params["b2"])
        x3 = jnp.einsum("nhwc,co->nhwo", x, params["w3"]) + params["b3"].reshape(1, 1, 1, -1)
        return x3 + cr
    h2 = h + te[:, None, None, :]
    return conv(jax.nn.relu(gn(h2, params["gn2_gamma"], params["gn2_beta"])), params["w2"], params["b2"])


# ----------------------------------------------------------------------------- main

if __name__ == "__main__":
    base_key = jax.random.PRNGKey(0)

    def run_case(case_id, n, cin, cout, is_residual):
        H, W, E, G, K, PAD = 16, 16, 32, 8, 3, 1
        kx, kt, kp, kparam = jax.random.split(jax.random.fold_in(base_key, case_id), 4)
        x = jax.random.normal(kx, (n, H, W, cin), jnp.float32)      # NHWC (channels-last)
        t = jax.random.normal(kt, (n, E), jnp.float32)
        p = jax.random.normal(kp, (n, E), jnp.float32)
        params = init_params(kparam, cin, cout, E, K)

        out = resnet_module_forward(params, x, t, p, num_groups=G, kernel_size=K,
                                    padding=PAD, is_residual=is_residual)
        out = jax.block_until_ready(out)
        assert out.shape == (n, H, W, cout), out.shape

        ref = jax.block_until_ready(
            reference_forward(params, x, t, p, num_groups=G, kernel_size=K,
                              padding=PAD, is_residual=is_residual))
        err = float(jnp.max(jnp.abs(out - ref)))
        # bf16 MXU operands vs f32 reference -> looser tolerance than the pure-f32 version.
        assert err < 5e-2, f"case {case_id}: max abs error {err}"

    run_case(0, 2, 8, 16, True)      # 1x1-conv residual path (conv_3 = Conv2d 1x1)
    run_case(1, 2, 16, 16, True)     # identity residual path (conv_3 = nn.Identity)
    run_case(2, 2, 8, 16, False)     # non-residual path
    run_case(3, 32, 16, 16, True)    # batch-blocked: BN=16 -> 256-row MXU blocks, 2 grid steps

    print("KERNEL_OK")
</pallas_src>

<mosaic_0001>
module attributes {stable_mosaic.version = 11 : i64} {
  func.func @kernel(%arg0: i32, %arg1: memref<32x128xf32, #tpu.memory_space<vmem>>, %arg2: memref<2x256xf32, #tpu.memory_space<vmem>>, %arg3: memref<2x32xf32, #tpu.memory_space<vmem>>, %arg4: memref<32x2xf32, #tpu.memory_space<vmem>>, %arg5: memref<32x1xf32, #tpu.memory_space<vmem>>, %arg6: memref<1x128xf32, #tpu.memory_space<vmem>>, %arg7: memref<1x128xf32, #tpu.memory_space<vmem>>, %arg8: memref<8x128xf32, #tpu.memory_space<vmem>>, %arg9: memref<128x8xf32, #tpu.memory_space<vmem>>, %arg10: memref<3x128x256xbf16, #tpu.memory_space<vmem>>, %arg11: memref<1x256xf32, #tpu.memory_space<vmem>>, %arg12: memref<1x256xf32, #tpu.memory_space<vmem>>, %arg13: memref<1x256xf32, #tpu.memory_space<vmem>>, %arg14: memref<8x256xf32, #tpu.memory_space<vmem>>, %arg15: memref<256x8xf32, #tpu.memory_space<vmem>>, %arg16: memref<3x256x256xbf16, #tpu.memory_space<vmem>>, %arg17: memref<1x256xf32, #tpu.memory_space<vmem>>, %arg18: memref<128x256xbf16, #tpu.memory_space<vmem>>, %arg19: memref<1x256xf32, #tpu.memory_space<vmem>>, %arg20: memref<32x256xf32, #tpu.memory_space<vmem>>) attributes {dimension_semantics = [#tpu.dimension_semantics<parallel>], iteration_bounds = array<i64: 1>, scalar_prefetch = 0 : i64, scratch_operands = 0 : i64, tpu.core_type = #tpu.core_type<tc>, window_params = [{transform_indices = @transform_0, window_bounds = array<i64: 32, 128>}, {transform_indices = @transform_1, window_bounds = array<i64: 2, 256>}, {pipeline_mode = #tpu.pipeline_mode<synchronous>, transform_indices = @transform_2, window_bounds = array<i64: 2, 32>}, {pipeline_mode = #tpu.pipeline_mode<synchronous>, transform_indices = @transform_3, window_bounds = array<i64: 32, 2>}, {pipeline_mode = #tpu.pipeline_mode<synchronous>, transform_indices = @transform_4, window_bounds = array<i64: 32, 1>}, {pipeline_mode = #tpu.pipeline_mode<synchronous>, transform_indices = @transform_5, window_bounds = array<i64: 1, 128>}, {pipeline_mode = #tpu.pipeline_mode<synchronous>, transform_indices = @transform_6, window_bounds = array<i64: 1, 128>}, {pipeline_mode = #tpu.pipeline_mode<synchronous>, transform_indices = @transform_7, window_bounds = array<i64: 8, 128>}, {pipeline_mode = #tpu.pipeline_mode<synchronous>, transform_indices = @transform_8, window_bounds = array<i64: 128, 8>}, {pipeline_mode = #tpu.pipeline_mode<synchronous>, transform_indices = @transform_9, window_bounds = array<i64: 3, 128, 256>}, {pipeline_mode = #tpu.pipeline_mode<synchronous>, transform_indices = @transform_10, window_bounds = array<i64: 1, 256>}, {pipeline_mode = #tpu.pipeline_mode<synchronous>, transform_indices = @transform_11, window_bounds = array<i64: 1, 256>}, {pipeline_mode = #tpu.pipeline_mode<synchronous>, transform_indices = @transform_12, window_bounds = array<i64: 1, 256>}, {pipeline_mode = #tpu.pipeline_mode<synchronous>, transform_indices = @transform_13, window_bounds = array<i64: 8, 256>}, {pipeline_mode = #tpu.pipeline_mode<synchronous>, transform_indices = @transform_14, window_bounds = array<i64: 256, 8>}, {pipeline_mode = #tpu.pipeline_mode<synchronous>, transform_indices = @transform_15, window_bounds = array<i64: 3, 256, 256>}, {pipeline_mode = #tpu.pipeline_mode<synchronous>, transform_indices = @transform_16, window_bounds = array<i64: 1, 256>}, {pipeline_mode = #tpu.pipeline_mode<synchronous>, transform_indices = @transform_17, window_bounds = array<i64: 128, 256>}, {pipeline_mode = #tpu.pipeline_mode<synchronous>, transform_indices = @transform_18, window_bounds = array<i64: 1, 256>}, {transform_indices = @transform_19, window_bounds = array<i64: 32, 256>}]} {
    %c0 = arith.constant 0 : index
    %c0_0 = arith.constant 0 : index
    %0 = vector.load %arg1[%c0, %c0_0] : memref<32x128xf32, #tpu.memory_space<vmem>>, vector<32x128xf32>
    %c0_1 = arith.constant 0 : index
    %c0_2 = arith.constant 0 : index
    %1 = vector.load %arg3[%c0_1, %c0_2] : memref<2x32xf32, #tpu.memory_space<vmem>>, vector<2x32xf32>
    %c0_3 = arith.constant 0 : index
    %c0_4 = arith.constant 0 : index
    %2 = vector.load %arg4[%c0_3, %c0_4] : memref<32x2xf32, #tpu.memory_space<vmem>>, vector<32x2xf32>
    %c0_5 = arith.constant 0 : index
    %c0_6 = arith.constant 0 : index
    %3 = vector.load %arg5[%c0_5, %c0_6] : memref<32x1xf32, #tpu.memory_space<vmem>>, vector<32x1xf32>
    %c0_7 = arith.constant 0 : index
    %c0_8 = arith.constant 0 : index
    %4 = vector.load %arg9[%c0_7, %c0_8] : memref<128x8xf32, #tpu.memory_space<vmem>>, vector<128x8xf32>
    %c0_9 = arith.constant 0 : index
    %c0_10 = arith.constant 0 : index
    %5 = vector.load %arg8[%c0_9, %c0_10] : memref<8x128xf32, #tpu.memory_space<vmem>>, vector<8x128xf32>
    %c0_11 = arith.constant 0 : index
    %c0_12 = arith.constant 0 : index
    %6 = vector.load %arg6[%c0_11, %c0_12] : memref<1x128xf32, #tpu.memory_space<vmem>>, vector<1x128xf32>
    %c0_13 = arith.constant 0 : index
    %c0_14 = arith.constant 0 : index
    %7 = vector.load %arg7[%c0_13, %c0_14] : memref<1x128xf32, #tpu.memory_space<vmem>>, vector<1x128xf32>
    %cst = arith.constant dense<0.000000e+00> : vector<2x128xf32>
    %8 = tpu.matmul %1, %0, %cst {dimension_numbers = #tpu.dot_dimension_numbers<[1], [0], [0], [1], [0, 0, 1, 1], [], []>} : vector<2x32xf32>, vector<32x128xf32>, vector<2x128xf32> -> vector<2x128xf32>
    %9 = arith.mulf %0, %0 : vector<32x128xf32>
    %cst_15 = arith.constant dense<0.000000e+00> : vector<2x128xf32>
    %10 = tpu.matmul %1, %9, %cst_15 {dimension_numbers = #tpu.dot_dimension_numbers<[1], [0], [0], [1], [0, 0, 1, 1], [], []>} : vector<2x32xf32>, vector<32x128xf32>, vector<2x128xf32> -> vector<2x128xf32>
    %cst_16 = arith.constant dense<0.000000e+00> : vector<2x8xf32>
    %11 = tpu.matmul %8, %4, %cst_16 {dimension_numbers = #tpu.dot_dimension_numbers<[1], [0], [0], [1], [0, 0, 1, 1], [], []>} : vector<2x128xf32>, vector<128x8xf32>, vector<2x8xf32> -> vector<2x8xf32>
    %cst_17 = arith.constant 3.906250e-03 : f32
    %12 = vector.broadcast %cst_17 : f32 to vector<2x8xf32>
    %13 = arith.mulf %11, %12 : vector<2x8xf32>
    %cst_18 = arith.constant dense<0.000000e+00> : vector<2x8xf32>
    %14 = tpu.matmul %10, %4, %cst_18 {dimension_numbers = #tpu.dot_dimension_numbers<[1], [0], [0], [1], [0, 0, 1, 1], [], []>} : vector<2x128xf32>, vector<128x8xf32>, vector<2x8xf32> -> vector<2x8xf32>
    %cst_19 = arith.constant 3.906250e-03 : f32
    %15 = vector.broadcast %cst_19 : f32 to vector<2x8xf32>
    %16 = arith.mulf %14, %15 : vector<2x8xf32>
    %17 = arith.mulf %13, %13 : vector<2x8xf32>
    %18 = arith.subf %16, %17 : vector<2x8xf32>
    %cst_20 = arith.constant 0.000000e+00 : f32
    %19 = vector.broadcast %cst_20 : f32 to vector<2x8xf32>
    %20 = arith.maximumf %18, %19 : vector<2x8xf32>
    %cst_21 = arith.constant 9.99999974E-6 : f32
    %21 = vector.broadcast %cst_21 : f32 to vector<2x8xf32>
    %22 = arith.addf %20, %21 : vector<2x8xf32>
    %23 = math.rsqrt %22 : vector<2x8xf32>
    %cst_22 = arith.constant dense<0.000000e+00> : vector<2x128xf32>
    %24 = tpu.matmul %13, %5, %cst_22 {dimension_numbers = #tpu.dot_dimension_numbers<[1], [0], [0], [1], [0, 0, 1, 1], [], []>} : vector<2x8xf32>, vector<8x128xf32>, vector<2x128xf32> -> vector<2x128xf32>
    %cst_23 = arith.constant dense<0.000000e+00> : vector<32x128xf32>
    %25 = tpu.matmul %2, %24, %cst_23 {dimension_numbers = #tpu.dot_dimension_numbers<[1], [0], [0], [1], [0, 0, 1, 1], [], []>} : vector<32x2xf32>, vector<2x128xf32>, vector<32x128xf32> -> vector<32x128xf32>
    %cst_24 = arith.constant dense<0.000000e+00> : vector<2x128xf32>
    %26 = tpu.matmul %23, %5, %cst_24 {dimension_numbers = #tpu.dot_dimension_numbers<[1], [0], [0], [1], [0, 0, 1, 1], [], []>} : vector<2x8xf32>, vector<8x128xf32>, vector<2x128xf32> -> vector<2x128xf32>
    %cst_25 = arith.constant dense<0.000000e+00> : vector<32x128xf32>
    %27 = tpu.matmul %2, %26, %cst_25 {dimension_numbers = #tpu.dot_dimension_numbers<[1], [0], [0], [1], [0, 0, 1, 1], [], []>} : vector<32x2xf32>, vector<2x128xf32>, vector<32x128xf32> -> vector<32x128xf32>
    %28 = arith.subf %0, %25 : vector<32x128xf32>
    %29 = vector.broadcast %6 : vector<1x128xf32> to vector<32x128xf32>
    %30 = arith.mulf %27, %29 : vector<32x128xf32>
    %31 = arith.mulf %28, %30 : vector<32x128xf32>
    %32 = vector.broadcast %7 : vector<1x128xf32> to vector<32x128xf32>
    %33 = arith.addf %31, %32 : vector<32x128xf32>
    %cst_26 = arith.constant 0.000000e+00 : f32
    %34 = vector.broadcast %cst_26 : f32 to vector<32x128xf32>
    %35 = arith.maximumf %33, %34 : vector<32x128xf32>
    %c0_27 = arith.constant 0 : index
    %c0_28 = arith.constant 0 : index
    %36 = vector.load %arg11[%c0_27, %c0_28] : memref<1x256xf32, #tpu.memory_space<vmem>>, vector<1x256xf32>
    %c1_i32 = arith.constant 1 : i32
    %37 = tpu.dynamic_rotate %35 by %c1_i32 dim 0 : vector<32x128xf32>, i32 -> vector<32x128xf32>
    %cst_29 = arith.constant 1.000000e+00 : f32
    %38 = vector.broadcast %cst_29 : f32 to vector<32x1xf32>
    %39 = arith.cmpf oge, %3, %38 : vector<32x1xf32>
    %40 = arith.extui %39 : vector<32x1xi1> to vector<32x1xi32>
    %41 = arith.sitofp %40 : vector<32x1xi32> to vector<32x1xf32>
    %42 = vector.broadcast %41 : vector<32x1xf32> to vector<32x128xf32>
    %43 = arith.mulf %37, %42 : vector<32x128xf32>
    %44 = arith.truncf %43 : vector<32x128xf32> to vector<32x128xbf16>
    %c0_30 = arith.constant 0 : index
    %c0_31 = arith.constant 0 : index
    %c0_32 = arith.constant 0 : index
    %45 = vector.load %arg10[%c0_30, %c0_31, %c0_32] : memref<3x128x256xbf16, #tpu.memory_space<vmem>>, vector<1x128x256xbf16>
    %46 = vector.shape_cast %45 : vector<1x128x256xbf16> to vector<128x256xbf16>
    %cst_33 = arith.constant dense<0.000000e+00> : vector<32x256xf32>
    %47 = tpu.matmul %44, %46, %cst_33 {dimension_numbers = #tpu.dot_dimension_numbers<[1], [0], [0], [1], [0, 0, 1, 1], [], []>} : vector<32x128xbf16>, vector<128x256xbf16>, vector<32x256xf32> -> vector<32x256xf32>
    %48 = arith.truncf %35 : vector<32x128xf32> to vector<32x128xbf16>
    %c1 = arith.constant 1 : index
    %c0_34 = arith.constant 0 : index
    %c0_35 = arith.constant 0 : index
    %49 = vector.load %arg10[%c1, %c0_34, %c0_35] : memref<3x128x256xbf16, #tpu.memory_space<vmem>>, vector<1x128x256xbf16>
    %50 = vector.shape_cast %49 : vector<1x128x256xbf16> to vector<128x256xbf16>
    %cst_36 = arith.constant dense<0.000000e+00> : vector<32x256xf32>
    %51 = tpu.matmul %48, %50, %cst_36 {dimension_numbers = #tpu.dot_dimension_numbers<[1], [0], [0], [1], [0, 0, 1, 1], [], []>} : vector<32x128xbf16>, vector<128x256xbf16>, vector<32x256xf32> -> vector<32x256xf32>
    %52 = arith.addf %47, %51 : vector<32x256xf32>
    %c31_i32 = arith.constant 31 : i32
    %53 = tpu.dynamic_rotate %35 by %c31_i32 dim 0 : vector<32x128xf32>, i32 -> vector<32x128xf32>
    %cst_37 = arith.constant 1.500000e+01 : f32
    %54 = vector.broadcast %cst_37 : f32 to vector<32x1xf32>
    %55 = arith.cmpf olt, %3, %54 : vector<32x1xf32>
    %56 = arith.extui %55 : vector<32x1xi1> to vector<32x1xi32>
    %57 = arith.sitofp %56 : vector<32x1xi32> to vector<32x1xf32>
    %58 = vector.broadcast %57 : vector<32x1xf32> to vector<32x128xf32>
    %59 = arith.mulf %53, %58 : vector<32x128xf32>
    %60 = arith.truncf %59 : vector<32x128xf32> to vector<32x128xbf16>
    %c2 = arith.constant 2 : index
    %c0_38 = arith.constant 0 : index
    %c0_39 = arith.constant 0 : index
    %61 = vector.load %arg10[%c2, %c0_38, %c0_39] : memref<3x128x256xbf16, #tpu.memory_space<vmem>>, vector<1x128x256xbf16>
    %62 = vector.shape_cast %61 : vector<1x128x256xbf16> to vector<128x256xbf16>
    %cst_40 = arith.constant dense<0.000000e+00> : vector<32x256xf32>
    %63 = tpu.matmul %60, %62, %cst_40 {dimension_numbers = #tpu.dot_dimension_numbers<[1], [0], [0], [1], [0, 0, 1, 1], [], []>} : vector<32x128xbf16>, vector<128x256xbf16>, vector<32x256xf32> -> vector<32x256xf32>
    %64 = arith.addf %52, %63 : vector<32x256xf32>
    %65 = vector.broadcast %36 : vector<1x256xf32> to vector<32x256xf32>
    %66 = arith.addf %64, %65 : vector<32x256xf32>
    %c0_41 = arith.constant 0 : index
    %c0_42 = arith.constant 0 : index
    %67 = vector.load %arg2[%c0_41, %c0_42] : memref<2x256xf32, #tpu.memory_space<vmem>>, vector<2x256xf32>
    %cst_43 = arith.constant dense<0.000000e+00> : vector<32x256xf32>
    %68 = tpu.matmul %2, %67, %cst_43 {dimension_numbers = #tpu.dot_dimension_numbers<[1], [0], [0], [1], [0, 0, 1, 1], [], []>} : vector<32x2xf32>, vector<2x256xf32>, vector<32x256xf32> -> vector<32x256xf32>
    %69 = arith.addf %66, %68 : vector<32x256xf32>
    %c0_44 = arith.constant 0 : index
    %c0_45 = arith.constant 0 : index
    %70 = vector.load %arg15[%c0_44, %c0_45] : memref<256x8xf32, #tpu.memory_space<vmem>>, vector<256x8xf32>
    %c0_46 = arith.constant 0 : index
    %c0_47 = arith.constant 0 : index
    %71 = vector.load %arg14[%c0_46, %c0_47] : memref<8x256xf32, #tpu.memory_space<vmem>>, vector<8x256xf32>
    %c0_48 = arith.constant 0 : index
    %c0_49 = arith.constant 0 : index
    %72 = vector.load %arg12[%c0_48, %c0_49] : memref<1x256xf32, #tpu.memory_space<vmem>>, vector<1x256xf32>
    %c0_50 = arith.constant 0 : index
    %c0_51 = arith.constant 0 : index
    %73 = vector.load %arg13[%c0_50, %c0_51] : memref<1x256xf32, #tpu.memory_space<vmem>>, vector<1x256xf32>
    %cst_52 = arith.constant dense<0.000000e+00> : vector<2x256xf32>
    %74 = tpu.matmul %1, %69, %cst_52 {dimension_numbers = #tpu.dot_dimension_numbers<[1], [0], [0], [1], [0, 0, 1, 1], [], []>} : vector<2x32xf32>, vector<32x256xf32>, vector<2x256xf32> -> vector<2x256xf32>
    %75 = arith.mulf %69, %69 : vector<32x256xf32>
    %cst_53 = arith.constant dense<0.000000e+00> : vector<2x256xf32>
    %76 = tpu.matmul %1, %75, %cst_53 {dimension_numbers = #tpu.dot_dimension_numbers<[1], [0], [0], [1], [0, 0, 1, 1], [], []>} : vector<2x32xf32>, vector<32x256xf32>, vector<2x256xf32> -> vector<2x256xf32>
    %cst_54 = arith.constant dense<0.000000e+00> : vector<2x8xf32>
    %77 = tpu.matmul %74, %70, %cst_54 {dimension_numbers = #tpu.dot_dimension_numbers<[1], [0], [0], [1], [0, 0, 1, 1], [], []>} : vector<2x256xf32>, vector<256x8xf32>, vector<2x8xf32> -> vector<2x8xf32>
    %cst_55 = arith.constant 0.001953125 : f32
    %78 = vector.broadcast %cst_55 : f32 to vector<2x8xf32>
    %79 = arith.mulf %77, %78 : vector<2x8xf32>
    %cst_56 = arith.constant dense<0.000000e+00> : vector<2x8xf32>
    %80 = tpu.matmul %76, %70, %cst_56 {dimension_numbers = #tpu.dot_dimension_numbers<[1], [0], [0], [1], [0, 0, 1, 1], [], []>} : vector<2x256xf32>, vector<256x8xf32>, vector<2x8xf32> -> vector<2x8xf32>
    %cst_57 = arith.constant 0.001953125 : f32
    %81 = vector.broadcast %cst_57 : f32 to vector<2x8xf32>
    %82 = arith.mulf %80, %81 : vector<2x8xf32>
    %83 = arith.mulf %79, %79 : vector<2x8xf32>
    %84 = arith.subf %82, %83 : vector<2x8xf32>
    %cst_58 = arith.constant 0.000000e+00 : f32
    %85 = vector.broadcast %cst_58 : f32 to vector<2x8xf32>
    %86 = arith.maximumf %84, %85 : vector<2x8xf32>
    %cst_59 = arith.constant 9.99999974E-6 : f32
    %87 = vector.broadcast %cst_59 : f32 to vector<2x8xf32>
    %88 = arith.addf %86, %87 : vector<2x8xf32>
    %89 = math.rsqrt %88 : vector<2x8xf32>
    %cst_60 = arith.constant dense<0.000000e+00> : vector<2x256xf32>
    %90 = tpu.matmul %79, %71, %cst_60 {dimension_numbers = #tpu.dot_dimension_numbers<[1], [0], [0], [1], [0, 0, 1, 1], [], []>} : vector<2x8xf32>, vector<8x256xf32>, vector<2x256xf32> -> vector<2x256xf32>
    %cst_61 = arith.constant dense<0.000000e+00> : vector<32x256xf32>
    %91 = tpu.matmul %2, %90, %cst_61 {dimension_numbers = #tpu.dot_dimension_numbers<[1], [0], [0], [1], [0, 0, 1, 1], [], []>} : vector<32x2xf32>, vector<2x256xf32>, vector<32x256xf32> -> vector<32x256xf32>
    %cst_62 = arith.constant dense<0.000000e+00> : vector<2x256xf32>
    %92 = tpu.matmul %89, %71, %cst_62 {dimension_numbers = #tpu.dot_dimension_numbers<[1], [0], [0], [1], [0, 0, 1, 1], [], []>} : vector<2x8xf32>, vector<8x256xf32>, vector<2x256xf32> -> vector<2x256xf32>
    %cst_63 = arith.constant dense<0.000000e+00> : vector<32x256xf32>
    %93 = tpu.matmul %2, %92, %cst_63 {dimension_numbers = #tpu.dot_dimension_numbers<[1], [0], [0], [1], [0, 0, 1, 1], [], []>} : vector<32x2xf32>, vector<2x256xf32>, vector<32x256xf32> -> vector<32x256xf32>
    %94 = arith.subf %69, %91 : vector<32x256xf32>
    %95 = vector.broadcast %72 : vector<1x256xf32> to vector<32x256xf32>
    %96 = arith.mulf %93, %95 : vector<32x256xf32>
    %97 = arith.mulf %94, %96 : vector<32x256xf32>
    %98 = vector.broadcast %73 : vector<1x256xf32> to vector<32x256xf32>
    %99 = arith.addf %97, %98 : vector<32x256xf32>
    %cst_64 = arith.constant 0.000000e+00 : f32
    %100 = vector.broadcast %cst_64 : f32 to vector<32x256xf32>
    %101 = arith.maximumf %99, %100 : vector<32x256xf32>
    %c0_65 = arith.constant 0 : index
    %c0_66 = arith.constant 0 : index
    %102 = vector.load %arg17[%c0_65, %c0_66] : memref<1x256xf32, #tpu.memory_space<vmem>>, vector<1x256xf32>
    %c1_i32_67 = arith.constant 1 : i32
    %103 = tpu.dynamic_rotate %101 by %c1_i32_67 dim 0 : vector<32x256xf32>, i32 -> vector<32x256xf32>
    %cst_68 = arith.constant 1.000000e+00 : f32
    %104 = vector.broadcast %cst_68 : f32 to vector<32x1xf32>
    %105 = arith.cmpf oge, %3, %104 : vector<32x1xf32>
    %106 = arith.extui %105 : vector<32x1xi1> to vector<32x1xi32>
    %107 = arith.sitofp %106 : vector<32x1xi32> to vector<32x1xf32>
    %108 = vector.broadcast %107 : vector<32x1xf32> to vector<32x256xf32>
    %109 = arith.mulf %103, %108 : vector<32x256xf32>
    %110 = arith.truncf %109 : vector<32x256xf32> to vector<32x256xbf16>
    %c0_69 = arith.constant 0 : index
    %c0_70 = arith.constant 0 : index
    %c0_71 = arith.constant 0 : index
    %111 = vector.load %arg16[%c0_69, %c0_70, %c0_71] : memref<3x256x256xbf16, #tpu.memory_space<vmem>>, vector<1x256x256xbf16>
    %112 = vector.shape_cast %111 : vector<1x256x256xbf16> to vector<256x256xbf16>
    %cst_72 = arith.constant dense<0.000000e+00> : vector<32x256xf32>
    %113 = tpu.matmul %110, %112, %cst_72 {dimension_numbers = #tpu.dot_dimension_numbers<[1], [0], [0], [1], [0, 0, 1, 1], [], []>} : vector<32x256xbf16>, vector<256x256xbf16>, vector<32x256xf32> -> vector<32x256xf32>
    %114 = arith.truncf %101 : vector<32x256xf32> to vector<32x256xbf16>
    %c1_73 = arith.constant 1 : index
    %c0_74 = arith.constant 0 : index
    %c0_75 = arith.constant 0 : index
    %115 = vector.load %arg16[%c1_73, %c0_74, %c0_75] : memref<3x256x256xbf16, #tpu.memory_space<vmem>>, vector<1x256x256xbf16>
    %116 = vector.shape_cast %115 : vector<1x256x256xbf16> to vector<256x256xbf16>
    %cst_76 = arith.constant dense<0.000000e+00> : vector<32x256xf32>
    %117 = tpu.matmul %114, %116, %cst_76 {dimension_numbers = #tpu.dot_dimension_numbers<[1], [0], [0], [1], [0, 0, 1, 1], [], []>} : vector<32x256xbf16>, vector<256x256xbf16>, vector<32x256xf32> -> vector<32x256xf32>
    %118 = arith.addf %113, %117 : vector<32x256xf32>
    %c31_i32_77 = arith.constant 31 : i32
    %119 = tpu.dynamic_rotate %101 by %c31_i32_77 dim 0 : vector<32x256xf32>, i32 -> vector<32x256xf32>
    %cst_78 = arith.constant 1.500000e+01 : f32
    %120 = vector.broadcast %cst_78 : f32 to vector<32x1xf32>
    %121 = arith.cmpf olt, %3, %120 : vector<32x1xf32>
    %122 = arith.extui %121 : vector<32x1xi1> to vector<32x1xi32>
    %123 = arith.sitofp %122 : vector<32x1xi32> to vector<32x1xf32>
    %124 = vector.broadcast %123 : vector<32x1xf32> to vector<32x256xf32>
    %125 = arith.mulf %119, %124 : vector<32x256xf32>
    %126 = arith.truncf %125 : vector<32x256xf32> to vector<32x256xbf16>
    %c2_79 = arith.constant 2 : index
    %c0_80 = arith.constant 0 : index
    %c0_81 = arith.constant 0 : index
    %127 = vector.load %arg16[%c2_79, %c0_80, %c0_81] : memref<3x256x256xbf16, #tpu.memory_space<vmem>>, vector<1x256x256xbf16>
    %128 = vector.shape_cast %127 : vector<1x256x256xbf16> to vector<256x256xbf16>
    %cst_82 = arith.constant dense<0.000000e+00> : vector<32x256xf32>
    %129 = tpu.matmul %126, %128, %cst_82 {dimension_numbers = #tpu.dot_dimension_numbers<[1], [0], [0], [1], [0, 0, 1, 1], [], []>} : vector<32x256xbf16>, vector<256x256xbf16>, vector<32x256xf32> -> vector<32x256xf32>
    %130 = arith.addf %118, %129 : vector<32x256xf32>
    %131 = vector.broadcast %102 : vector<1x256xf32> to vector<32x256xf32>
    %132 = arith.addf %130, %131 : vector<32x256xf32>
    %133 = arith.truncf %0 : vector<32x128xf32> to vector<32x128xbf16>
    %c0_83 = arith.constant 0 : index
    %c0_84 = arith.constant 0 : index
    %134 = vector.load %arg18[%c0_83, %c0_84] : memref<128x256xbf16, #tpu.memory_space<vmem>>, vector<128x256xbf16>
    %cst_85 = arith.constant dense<0.000000e+00> : vector<32x256xf32>
    %135 = tpu.matmul %133, %134, %cst_85 {dimension_numbers = #tpu.dot_dimension_numbers<[1], [0], [0], [1], [0, 0, 1, 1], [], []>} : vector<32x128xbf16>, vector<128x256xbf16>, vector<32x256xf32> -> vector<32x256xf32>
    %136 = arith.addf %132, %135 : vector<32x256xf32>
    %c0_86 = arith.constant 0 : index
    %c0_87 = arith.constant 0 : index
    %137 = vector.load %arg19[%c0_86, %c0_87] : memref<1x256xf32, #tpu.memory_space<vmem>>, vector<1x256xf32>
    %138 = vector.broadcast %137 : vector<1x256xf32> to vector<32x256xf32>
    %139 = arith.addf %136, %138 : vector<32x256xf32>
    %c0_88 = arith.constant 0 : index
    %c0_89 = arith.constant 0 : index
    %140 = vector.load %arg20[%c0_88, %c0_89] : memref<32x256xf32, #tpu.memory_space<vmem>>, vector<32x256xf32>
    tpu.vector_store %arg20[%c0_88, %c0_89], %139 {strides = array<i32>} : memref<32x256xf32, #tpu.memory_space<vmem>>, vector<32x256xf32>,
    return
  }
  func.func @transform_0(%arg0: i32) -> (i32, i32) {
    %c0_i32 = arith.constant 0 : i32
    %c0_i32_0 = arith.constant 0 : i32
    return %arg0, %c0_i32 : i32, i32
  }
  func.func @transform_1(%arg0: i32) -> (i32, i32) {
    %c0_i32 = arith.constant 0 : i32
    %c0_i32_0 = arith.constant 0 : i32
    return %arg0, %c0_i32 : i32, i32
  }
  func.func @transform_2(%arg0: i32) -> (i32, i32) {
    %c0_i32 = arith.constant 0 : i32
    %c0_i32_0 = arith.constant 0 : i32
    %c0_i32_1 = arith.constant 0 : i32
    return %c0_i32, %c0_i32_0 : i32, i32
  }
  func.func @transform_3(%arg0: i32) -> (i32, i32) {
    %c0_i32 = arith.constant 0 : i32
    %c0_i32_0 = arith.constant 0 : i32
    %c0_i32_1 = arith.constant 0 : i32
    return %c0_i32, %c0_i32_0 : i32, i32
  }
  func.func @transform_4(%arg0: i32) -> (i32, i32) {
    %c0_i32 = arith.constant 0 : i32
    %c0_i32_0 = arith.constant 0 : i32
    %c0_i32_1 = arith.constant 0 : i32
    return %c0_i32, %c0_i32_0 : i32, i32
  }
  func.func @transform_5(%arg0: i32) -> (i32, i32) {
    %c0_i32 = arith.constant 0 : i32
    %c0_i32_0 = arith.constant 0 : i32
    %c0_i32_1 = arith.constant 0 : i32
    return %c0_i32, %c0_i32_0 : i32, i32
  }
  func.func @transform_6(%arg0: i32) -> (i32, i32) {
    %c0_i32 = arith.constant 0 : i32
    %c0_i32_0 = arith.constant 0 : i32
    %c0_i32_1 = arith.constant 0 : i32
    return %c0_i32, %c0_i32_0 : i32, i32
  }
  func.func @transform_7(%arg0: i32) -> (i32, i32) {
    %c0_i32 = arith.constant 0 : i32
    %c0_i32_0 = arith.constant 0 : i32
    %c0_i32_1 = arith.constant 0 : i32
    return %c0_i32, %c0_i32_0 : i32, i32
  }
  func.func @transform_8(%arg0: i32) -> (i32, i32) {
    %c0_i32 = arith.constant 0 : i32
    %c0_i32_0 = arith.constant 0 : i32
    %c0_i32_1 = arith.constant 0 : i32
    return %c0_i32, %c0_i32_0 : i32, i32
  }
  func.func @transform_9(%arg0: i32) -> (i32, i32, i32) {
    %c0_i32 = arith.constant 0 : i32
    %c0_i32_0 = arith.constant 0 : i32
    %c0_i32_1 = arith.constant 0 : i32
    %c0_i32_2 = arith.constant 0 : i32
    return %c0_i32, %c0_i32_0, %c0_i32_1 : i32, i32, i32
  }
  func.func @transform_10(%arg0: i32) -> (i32, i32) {
    %c0_i32 = arith.constant 0 : i32
    %c0_i32_0 = arith.constant 0 : i32
    %c0_i32_1 = arith.constant 0 : i32
    return %c0_i32, %c0_i32_0 : i32, i32
  }
  func.func @transform_11(%arg0: i32) -> (i32, i32) {
    %c0_i32 = arith.constant 0 : i32
    %c0_i32_0 = arith.constant 0 : i32
    %c0_i32_1 = arith.constant 0 : i32
    return %c0_i32, %c0_i32_0 : i32, i32
  }
  func.func @transform_12(%arg0: i32) -> (i32, i32) {
    %c0_i32 = arith.constant 0 : i32
    %c0_i32_0 = arith.constant 0 : i32
    %c0_i32_1 = arith.constant 0 : i32
    return %c0_i32, %c0_i32_0 : i32, i32
  }
  func.func @transform_13(%arg0: i32) -> (i32, i32) {
    %c0_i32 = arith.constant 0 : i32
    %c0_i32_0 = arith.constant 0 : i32
    %c0_i32_1 = arith.constant 0 : i32
    return %c0_i32, %c0_i32_0 : i32, i32
  }
  func.func @transform_14(%arg0: i32) -> (i32, i32) {
    %c0_i32 = arith.constant 0 : i32
    %c0_i32_0 = arith.constant 0 : i32
    %c0_i32_1 = arith.constant 0 : i32
    return %c0_i32, %c0_i32_0 : i32, i32
  }
  func.func @transform_15(%arg0: i32) -> (i32, i32, i32) {
    %c0_i32 = arith.constant 0 : i32
    %c0_i32_0 = arith.constant 0 : i32
    %c0_i32_1 = arith.constant 0 : i32
    %c0_i32_2 = arith.constant 0 : i32
    return %c0_i32, %c0_i32_0, %c0_i32_1 : i32, i32, i32
  }
  func.func @transform_16(%arg0: i32) -> (i32, i32) {
    %c0_i32 = arith.constant 0 : i32
    %c0_i32_0 = arith.constant 0 : i32
    %c0_i32_1 = arith.constant 0 : i32
    return %c0_i32, %c0_i32_0 : i32, i32
  }
  func.func @transform_17(%arg0: i32) -> (i32, i32) {
    %c0_i32 = arith.constant 0 : i32
    %c0_i32_0 = arith.constant 0 : i32
    %c0_i32_1 = arith.constant 0 : i32
    return %c0_i32, %c0_i32_0 : i32, i32
  }
  func.func @transform_18(%arg0: i32) -> (i32, i32) {
    %c0_i32 = arith.constant 0 : i32
    %c0_i32_0 = arith.constant 0 : i32
    %c0_i32_1 = arith.constant 0 : i32
    return %c0_i32, %c0_i32_0 : i32, i32
  }
  func.func @transform_19(%arg0: i32) -> (i32, i32) {
    %c0_i32 = arith.constant 0 : i32
    %c0_i32_0 = arith.constant 0 : i32
    return %arg0, %c0_i32 : i32, i32
  }
}

</mosaic_0001>

<llo_original>
// kernel: tpu_custom_call.1
$region0: #{tpu_custom_call.1}
  #allocation0 [shape = 'u32[]', space=smem, size = 0x4, offset = 0x4, fixed_abs, tag = 'smem constant byte address 0x4 - core index']
  #allocation1 [shape = 'u32[144,128]{1,0:T(1,128)}', space=vmem, size = 0x12000, scoped, tag = 'internal scratch']
  %s0 = inlined_call_operand.vmem [shape: f32[32,128], index: 0, kind: input, shape index: {}]
  %s1 = inlined_call_operand.vmem [shape: f32[2,256], index: 1, kind: input, shape index: {}]
  %s2 = inlined_call_operand.vmem [shape: f32[2,32], index: 2, kind: input, shape index: {}]
  %s3 = inlined_call_operand.vmem [shape: f32[32,2], index: 3, kind: input, shape index: {}]
  %s4 = inlined_call_operand.vmem [shape: f32[32,1], index: 4, kind: input, shape index: {}]
  %s5 = inlined_call_operand.vmem [shape: f32[1,128], index: 5, kind: input, shape index: {}]
  %s6 = inlined_call_operand.vmem [shape: f32[1,128], index: 6, kind: input, shape index: {}]
  %s7 = inlined_call_operand.vmem [shape: f32[8,128], index: 7, kind: input, shape index: {}]
  %s8 = inlined_call_operand.vmem [shape: f32[128,8], index: 8, kind: input, shape index: {}]
  %s9 = inlined_call_operand.vmem [shape: bf16[3,128,256], index: 9, kind: input, shape index: {}]
  %s10 = inlined_call_operand.vmem [shape: f32[1,256], index: 10, kind: input, shape index: {}]
  %s11 = inlined_call_operand.vmem [shape: f32[1,256], index: 11, kind: input, shape index: {}]
  %s12 = inlined_call_operand.vmem [shape: f32[1,256], index: 12, kind: input, shape index: {}]
  %s13 = inlined_call_operand.vmem [shape: f32[8,256], index: 13, kind: input, shape index: {}]
  %s14 = inlined_call_operand.vmem [shape: f32[256,8], index: 14, kind: input, shape index: {}]
  %s15 = inlined_call_operand.hbm [shape: bf16[3,256,256], index: 15, kind: input, shape index: {}]
  %s16 = inlined_call_operand.vmem [shape: f32[1,256], index: 16, kind: input, shape index: {}]
  %s17 = inlined_call_operand.hbm [shape: bf16[128,256], index: 17, kind: input, shape index: {}]
  %s18 = inlined_call_operand.vmem [shape: f32[1,256], index: 18, kind: input, shape index: {}]
  %s19 = inlined_call_operand.hbm [shape: f32[32,256], index: 19, kind: output, shape index: {}]
  %s20 = sld [smem:[#allocation0]]
  $region94: #{tpu_custom_call.1} parent=0
    _
  %s22 = ssub.s32 1, %s20
  %s23 = scalar_select 0, %s22, %s20
  $region1: #{tpu_custom_call.1} parent=0
    #allocation2 [shape = 'u8[393216]{0}', space=vmem, size = 0x60000, scoped, tag = 'input window, operand 15, single buffered']
    #allocation3 [shape = 's32[1]{0}', space=sflag, size = 0x4, scoped, tag = 'scoped memory for tpu_custom_call.1']
    #allocation4 [shape = 's32[1]{0}', space=sflag, size = 0x4, scoped, tag = 'scoped memory for tpu_custom_call.1']
    #allocation5 [shape = 'u8[65536]{0}', space=vmem, size = 0x10000, scoped, tag = 'input window, operand 17, single buffered']
    #allocation6 [shape = 's32[1]{0}', space=sflag, size = 0x4, scoped, tag = 'scoped memory for tpu_custom_call.1']
    #allocation7 [shape = 'u8[32768]{0}', space=vmem, size = 0x8000, scoped, tag = 'output window, operand 0, single buffered']
    %24 = vsyncpa [#allocation3], 0
    %25 = vsyncpa [#allocation6], 0
    %26 = vsyncpa [#allocation4], 0
    // Predicated region
    $region2: #{tpu_custom_call.1} parent=1 // pred_check
      _
    $region3: #{tpu_custom_call.1} parent=1 // pred_check_branch
      %28 = sbr.rel (0) target = $region5
    $region4: #{tpu_custom_call.1} parent=1 // pred_region
      _
    $region5: #{tpu_custom_call.1} parent=1 // pred_fallthru
      _
    // Predicated region
    $region6: #{tpu_custom_call.1} parent=1 // pred_check
      _
    $region7: #{tpu_custom_call.1} parent=1 // pred_check_branch
      %30 = sbr.rel (0) target = $region9
    $region8: #{tpu_custom_call.1} parent=1 // pred_region
      _
    $region9: #{tpu_custom_call.1} parent=1 // pred_fallthru
      _
    // Predicated region
    $region10: #{tpu_custom_call.1} parent=1 // pred_check
      _
    $region11: #{tpu_custom_call.1} parent=1 // pred_check_branch
      %32 = sbr.rel (0) target = $region13
    $region12: #{tpu_custom_call.1} parent=1 // pred_region
      _
    $region13: #{tpu_custom_call.1} parent=1 // pred_fallthru
      _
    // Predicated region
    $region14: #{tpu_custom_call.1} parent=1 // pred_check
      _
    $region15: #{tpu_custom_call.1} parent=1 // pred_check_branch
      %34 = sbr.rel (0) target = $region17
    $region16: #{tpu_custom_call.1} parent=1 // pred_region
      _
    $region17: #{tpu_custom_call.1} parent=1 // pred_fallthru
      _
    // Predicated region
    $region18: #{tpu_custom_call.1} parent=1 // pred_check
      _
    $region19: #{tpu_custom_call.1} parent=1 // pred_check_branch
      %36 = sbr.rel (0) target = $region21
    $region20: #{tpu_custom_call.1} parent=1 // pred_region
      _
    $region21: #{tpu_custom_call.1} parent=1 // pred_fallthru
      _
    // Predicated region
    $region22: #{tpu_custom_call.1} parent=1 // pred_check
      _
    $region23: #{tpu_custom_call.1} parent=1 // pred_check_branch
      %38 = sbr.rel (0) target = $region25
    $region24: #{tpu_custom_call.1} parent=1 // pred_region
      _
    $region25: #{tpu_custom_call.1} parent=1 // pred_fallthru
      _
    // Predicated region
    $region26: #{tpu_custom_call.1} parent=1 // pred_check
      _
    $region27: #{tpu_custom_call.1} parent=1 // pred_check_branch
      %40 = sbr.rel (0) target = $region29
    $region28: #{tpu_custom_call.1} parent=1 // pred_region
      _
    $region29: #{tpu_custom_call.1} parent=1 // pred_fallthru
      _
    // Predicated region
    $region30: #{tpu_custom_call.1} parent=1 // pred_check
      _
    $region31: #{tpu_custom_call.1} parent=1 // pred_check_branch
      %42 = sbr.rel (0) target = $region33
    $region32: #{tpu_custom_call.1} parent=1 // pred_region
      _
    $region33: #{tpu_custom_call.1} parent=1 // pred_fallthru
      _
    // Predicated region
    $region34: #{tpu_custom_call.1} parent=1 // pred_check
      _
    $region35: #{tpu_custom_call.1} parent=1 // pred_check_branch
      %44 = sbr.rel (0) target = $region37
    $region36: #{tpu_custom_call.1} parent=1 // pred_region
      _
    $region37: #{tpu_custom_call.1} parent=1 // pred_fallthru
      _
    // Predicated region
    $region38: #{tpu_custom_call.1} parent=1 // pred_check
      _
    $region39: #{tpu_custom_call.1} parent=1 // pred_check_branch
      %46 = sbr.rel (0) target = $region41
    $region40: #{tpu_custom_call.1} parent=1 // pred_region
      _
    $region41: #{tpu_custom_call.1} parent=1 // pred_fallthru
      _
    // Predicated region
    $region42: #{tpu_custom_call.1} parent=1 // pred_check
      _
    $region43: #{tpu_custom_call.1} parent=1 // pred_check_branch
      %48 = sbr.rel (0) target = $region45
    $region44: #{tpu_custom_call.1} parent=1 // pred_region
      _
    $region45: #{tpu_custom_call.1} parent=1 // pred_fallthru
      _
    // Predicated region
    $region46: #{tpu_custom_call.1} parent=1 // pred_check
      _
    $region47: #{tpu_custom_call.1} parent=1 // pred_check_branch
      %50 = sbr.rel (0) target = $region49
    $region48: #{tpu_custom_call.1} parent=1 // pred_region
      _
    $region49: #{tpu_custom_call.1} parent=1 // pred_fallthru
      _
    // Predicated region
    $region50: #{tpu_custom_call.1} parent=1 // pred_check
      _
    $region51: #{tpu_custom_call.1} parent=1 // pred_check_branch
      %52 = sbr.rel (0) target = $region53
    $region52: #{tpu_custom_call.1} parent=1 // pred_region
      _
    $region53: #{tpu_custom_call.1} parent=1 // pred_fallthru
      _
    // Predicated region
    $region54: #{tpu_custom_call.1} parent=1 // pred_check
      _
    $region55: #{tpu_custom_call.1} parent=1 // pred_check_branch
      %54 = sbr.rel (0) target = $region57
    $region56: #{tpu_custom_call.1} parent=1 // pred_region
      _
    $region57: #{tpu_custom_call.1} parent=1 // pred_fallthru
      _
    // Predicated region
    $region58: #{tpu_custom_call.1} parent=1 // pred_check
      _
    $region59: #{tpu_custom_call.1} parent=1 // pred_check_branch
      %56 = sbr.rel (0) target = $region61
    $region60: #{tpu_custom_call.1} parent=1 // pred_region
      _
    $region61: #{tpu_custom_call.1} parent=1 // pred_fallthru
      _
    // Predicated region
    $region62: #{tpu_custom_call.1} parent=1 // pred_check
      _
    $region63: #{tpu_custom_call.1} parent=1 // pred_check_branch
      %58 = sbr.rel (0) target = $region65
    $region64: #{tpu_custom_call.1} parent=1 // pred_region
      %s60 = ssub.s32 12288, 12288
      %61 = vsyncadd [#allocation3], %s60
      %s62 = sshll.u32 [#allocation2], 4
      %s63 = int_to_ptr.vmem [resolvable:$true] %s62
      %68 = dma.hbm_to_vmem [thread:$0]  %s15, 12288, %s63, [#allocation3], 128, 128, 8
    $region65: #{tpu_custom_call.1} parent=1 // pred_fallthru
      _
    // Predicated region
    $region66: #{tpu_custom_call.1} parent=1 // pred_check
      _
    $region67: #{tpu_custom_call.1} parent=1 // pred_check_branch
      %70 = sbr.rel (0) target = $region69
    $region68: #{tpu_custom_call.1} parent=1 // pred_region
      _
    $region69: #{tpu_custom_call.1} parent=1 // pred_fallthru
      _
    // Predicated region
    $region70: #{tpu_custom_call.1} parent=1 // pred_check
      _
    $region71: #{tpu_custom_call.1} parent=1 // pred_check_branch
      %72 = sbr.rel (0) target = $region73
    $region72: #{tpu_custom_call.1} parent=1 // pred_region
      %s74 = ssub.s32 2048, 2048
      %75 = vsyncadd [#allocation6], %s74
      %s76 = sshll.u32 [#allocation5], 4
      %s77 = int_to_ptr.vmem [resolvable:$true] %s76
      %82 = dma.hbm_to_vmem [thread:$0]  %s17, 2048, %s77, [#allocation6], 128, 128, 8
    $region73: #{tpu_custom_call.1} parent=1 // pred_fallthru
      _
    // Predicated region
    $region74: #{tpu_custom_call.1} parent=1 // pred_check
      _
    $region75: #{tpu_custom_call.1} parent=1 // pred_check_branch
      %84 = sbr.rel (0) target = $region77
    $region76: #{tpu_custom_call.1} parent=1 // pred_region
      _
    $region77: #{tpu_custom_call.1} parent=1 // pred_fallthru
      _
    // Predicated region
    $region78: #{tpu_custom_call.1} parent=1 // pred_check
      _
    $region79: #{tpu_custom_call.1} parent=1 // pred_check_branch
      %86 = sbr.rel (0) target = $region81
    $region80: #{tpu_custom_call.1} parent=1 // pred_region
      %87 = dma.done [#allocation3], 12288
    $region81: #{tpu_custom_call.1} parent=1 // pred_fallthru
      _
    // Predicated region
    $region82: #{tpu_custom_call.1} parent=1 // pred_check
      _
    $region83: #{tpu_custom_call.1} parent=1 // pred_check_branch
      %89 = sbr.rel (0) target = $region85
    $region84: #{tpu_custom_call.1} parent=1 // pred_region
      %90 = dma.done [#allocation6], 2048
    $region85: #{tpu_custom_call.1} parent=1 // pred_fallthru
      _
    %v92 = vld [vmem:[%s0] sm:$0xff]
    %v93 = vld [vmem:[%s0 + $0x8] sm:$0xff]
    %v94 = vld [vmem:[%s0 + $0x10] sm:$0xff]
    %v95 = vld [vmem:[%s0 + $0x18] sm:$0xff]
    %v96 = vld [vmem:[%s2] sm:$0x3]
    %v97 = vld [vmem:[%s3] sm:$0xff]
    %v98 = vld [vmem:[%s3 + $0x8] sm:$0xff]
    %v99 = vld [vmem:[%s3 + $0x10] sm:$0xff]
    %v100 = vld [vmem:[%s3 + $0x18] sm:$0xff]
    %v101 = vld [vmem:[%s4] sm:$0xff]
    %v102 = vld [vmem:[%s4 + $0x8] sm:$0xff]
    %v103 = vld [vmem:[%s4 + $0x10] sm:$0xff]
    %v104 = vld [vmem:[%s4 + $0x18] sm:$0xff]
    %v105 = vld [vmem:[%s8] sm:$0xff]
    %v106 = vld [vmem:[%s8 + $0x8] sm:$0xff]
    %v107 = vld [vmem:[%s8 + $0x10] sm:$0xff]
    %v108 = vld [vmem:[%s8 + $0x18] sm:$0xff]
    %v109 = vld [vmem:[%s8 + $0x20] sm:$0xff]
    %v110 = vld [vmem:[%s8 + $0x28] sm:$0xff]
    %v111 = vld [vmem:[%s8 + $0x30] sm:$0xff]
    %v112 = vld [vmem:[%s8 + $0x38] sm:$0xff]
    %v113 = vld [vmem:[%s8 + $0x40] sm:$0xff]
    %v114 = vld [vmem:[%s8 + $0x48] sm:$0xff]
    %v115 = vld [vmem:[%s8 + $0x50] sm:$0xff]
    %v116 = vld [vmem:[%s8 + $0x58] sm:$0xff]
    %v117 = vld [vmem:[%s8 + $0x60] sm:$0xff]
    %v118 = vld [vmem:[%s8 + $0x68] sm:$0xff]
    %v119 = vld [vmem:[%s8 + $0x70] sm:$0xff]
    %v120 = vld [vmem:[%s8 + $0x78] sm:$0xff]
    %v121 = vld [vmem:[%s7] sm:$0xff]
    %v122 = vld [vmem:[%s5] sm:$0x1]
    %v123 = vld [vmem:[%s6] sm:$0x1]
    %vm124 = vcmask 261120
    %v126 = vsel %vm124, %v96, 0
    %128 = vmatprep.subr.mxu0 0.0
    %129 = vmatpush1.msra.mxu0 0.0
    %130 = vmatprep.subr.mxu0 0.0
    %131 = vmatpush1.msra.mxu0 0.0
    %132 = vmatprep.subr.mxu0 0.0
    %133 = vmatpush1.msra.mxu0 0.0
    %134 = vmatprep.subr.mxu0 0.0
    %135 = vmatpush1.msra.mxu0 0.0
    %136 = vmatprep.subr.mxu0 0.0
    %137 = vmatpush1.msra.mxu0 0.0
    %138 = vmatprep.subr.mxu0 0.0
    %139 = vmatpush1.msra.mxu0 0.0
    %140 = vmatprep.subr.mxu0 0.0
    %141 = vmatpush1.msra.mxu0 0.0
    %142 = vmatprep.subr.mxu0 0.0
    %143 = vmatpush1.msra.mxu0 0.0
    %144 = vmatprep.subr.mxu0 0.0
    %145 = vmatpush1.msra.mxu0 0.0
    %146 = vmatprep.subr.mxu0 0.0
    %147 = vmatpush1.msra.mxu0 0.0
    %148 = vmatprep.subr.mxu0 0.0
    %149 = vmatpush1.msra.mxu0 0.0
    %150 = vmatprep.subr.mxu0 0.0
    %151 = vmatpush1.msra.mxu0 0.0
    %152 = vmatprep.subr.mxu0 0.0
    %153 = vmatpush1.msra.mxu0 %v95
    %154 = vmatprep.subr.mxu0 0.0
    %155 = vmatpush1.msra.mxu0 %v94
    %156 = vmatprep.subr.mxu0 0.0
    %157 = vmatpush1.msra.mxu0 %v93
    %158 = vmatprep.subr.mxu0 0.0
    %159 = vmatpush1.msra.mxu0 %v92
    %160 = vmatprep.subr.mxu0 0.0
    %161 = vmatpush2.msra.mxu0 0.0
    %162 = vmatprep.subr.mxu0 0.0
    %163 = vmatpush2.msra.mxu0 0.0
    %164 = vmatprep.subr.mxu0 0.0
    %165 = vmatpush2.msra.mxu0 0.0
    %166 = vmatprep.subr.mxu0 0.0
    %167 = vmatpush2.msra.mxu0 0.0
    %168 = vmatprep.subr.mxu0 0.0
    %169 = vmatpush2.msra.mxu0 0.0
    %170 = vmatprep.subr.mxu0 0.0
    %171 = vmatpush2.msra.mxu0 0.0
    %172 = vmatprep.subr.mxu0 0.0
    %173 = vmatpush2.msra.mxu0 0.0
    %174 = vmatprep.subr.mxu0 0.0
    %175 = vmatpush2.msra.mxu0 0.0
    %176 = vmatprep.subr.mxu0 0.0
    %177 = vmatpush2.msra.mxu0 0.0
    %178 = vmatprep.subr.mxu0 0.0
    %179 = vmatpush2.msra.mxu0 0.0
    %180 = vmatprep.subr.mxu0 0.0
    %181 = vmatpush2.msra.mxu0 0.0
    %182 = vmatprep.subr.mxu0 0.0
    %183 = vmatpush2.msra.mxu0 0.0
    %184 = vmatprep.subr.mxu0 0.0
    %185 = vmatpush2.msra.mxu0 0.0
    %186 = vmatprep.subr.mxu0 0.0
    %187 = vmatpush2.msra.mxu0 0.0
    %188 = vmatprep.subr.mxu0 0.0
    %189 = vmatpush2.msra.mxu0 0.0
    %190 = vmatprep.subr.mxu0 0.0
    %191 = vmatpush2.msra.mxu0 0.0
    %192 = vmatprep.mubr.f32.mxu0 0.0
    %193 = vmatmul.mubr.f32.gmra.mxu0 %v126
    %v194 = vpop.f32.mrf.mxu0
    %v195 = vadd.f32 0.0, %v194
    %v196 = vpop.f32.mrf.mxu0
    %197 = vdwg.mxu0
    %v198 = vmul.f32 %v92, %v92
    %v199 = vmul.f32 %v93, %v93
    %v200 = vmul.f32 %v94, %v94
    %v201 = vmul.f32 %v95, %v95
    %202 = vmatprep.subr.mxu0 0.0
    %203 = vmatpush1.msra.mxu0 0.0
    %204 = vmatprep.subr.mxu0 0.0
    %205 = vmatpush1.msra.mxu0 0.0
    %206 = vmatprep.subr.mxu0 0.0
    %207 = vmatpush1.msra.mxu0 0.0
    %208 = vmatprep.subr.mxu0 0.0
    %209 = vmatpush1.msra.mxu0 0.0
    %210 = vmatprep.subr.mxu0 0.0
    %211 = vmatpush1.msra.mxu0 0.0
    %212 = vmatprep.subr.mxu0 0.0
    %213 = vmatpush1.msra.mxu0 0.0
    %214 = vmatprep.subr.mxu0 0.0
    %215 = vmatpush1.msra.mxu0 0.0
    %216 = vmatprep.subr.mxu0 0.0
    %217 = vmatpush1.msra.mxu0 0.0
    %218 = vmatprep.subr.mxu0 0.0
    %219 = vmatpush1.msra.mxu0 0.0
    %220 = vmatprep.subr.mxu0 0.0
    %221 = vmatpush1.msra.mxu0 0.0
    %222 = vmatprep.subr.mxu0 0.0
    %223 = vmatpush1.msra.mxu0 0.0
    %224 = vmatprep.subr.mxu0 0.0
    %225 = vmatpush1.msra.mxu0 0.0
    %226 = vmatprep.subr.mxu0 0.0
    %227 = vmatpush1.msra.mxu0 %v201
    %228 = vmatprep.subr.mxu0 0.0
    %229 = vmatpush1.msra.mxu0 %v200
    %230 = vmatprep.subr.mxu0 0.0
    %231 = vmatpush1.msra.mxu0 %v199
    %232 = vmatprep.subr.mxu0 0.0
    %233 = vmatpush1.msra.mxu0 %v198
    %234 = vmatprep.subr.mxu0 0.0
    %235 = vmatpush2.msra.mxu0 0.0
    %236 = vmatprep.subr.mxu0 0.0
    %237 = vmatpush2.msra.mxu0 0.0
    %238 = vmatprep.subr.mxu0 0.0
    %239 = vmatpush2.msra.mxu0 0.0
    %240 = vmatprep.subr.mxu0 0.0
    %241 = vmatpush2.msra.mxu0 0.0
    %242 = vmatprep.subr.mxu0 0.0
    %243 = vmatpush2.msra.mxu0 0.0
    %244 = vmatprep.subr.mxu0 0.0
    %245 = vmatpush2.msra.mxu0 0.0
    %246 = vmatprep.subr.mxu0 0.0
    %247 = vmatpush2.msra.mxu0 0.0
    %248 = vmatprep.subr.mxu0 0.0
    %249 = vmatpush2.msra.mxu0 0.0
    %250 = vmatprep.subr.mxu0 0.0
    %251 = vmatpush2.msra.mxu0 0.0
    %252 = vmatprep.subr.mxu0 0.0
    %253 = vmatpush2.msra.mxu0 0.0
    %254 = vmatprep.subr.mxu0 0.0
    %255 = vmatpush2.msra.mxu0 0.0
    %256 = vmatprep.subr.mxu0 0.0
    %257 = vmatpush2.msra.mxu0 0.0
    %258 = vmatprep.subr.mxu0 0.0
    %259 = vmatpush2.msra.mxu0 0.0
    %260 = vmatprep.subr.mxu0 0.0
    %261 = vmatpush2.msra.mxu0 0.0
    %262 = vmatprep.subr.mxu0 0.0
    %263 = vmatpush2.msra.mxu0 0.0
    %264 = vmatprep.subr.mxu0 0.0
    %265 = vmatpush2.msra.mxu0 0.0
    %266 = vmatprep.mubr.f32.mxu0 0.0
    %267 = vmatmul.mubr.f32.gmra.mxu0 %v126
    %v268 = vpop.f32.mrf.mxu0
    %v269 = vadd.f32 0.0, %v268
    %v270 = vpop.f32.mrf.mxu0
    %271 = vdwg.mxu0
    %272 = vmatprep.subr.mxu0 0.0
    %273 = vmatpush1.msra.mxu0 %v120
    %274 = vmatprep.subr.mxu0 0.0
    %275 = vmatpush1.msra.mxu0 %v119
    %276 = vmatprep.subr.mxu0 0.0
    %277 = vmatpush1.msra.mxu0 %v118
    %278 = vmatprep.subr.mxu0 0.0
    %279 = vmatpush1.msra.mxu0 %v117
    %280 = vmatprep.subr.mxu0 0.0
    %281 = vmatpush1.msra.mxu0 %v116
    %282 = vmatprep.subr.mxu0 0.0
    %283 = vmatpush1.msra.mxu0 %v115
    %284 = vmatprep.subr.mxu0 0.0
    %285 = vmatpush1.msra.mxu0 %v114
    %286 = vmatprep.subr.mxu0 0.0
    %287 = vmatpush1.msra.mxu0 %v113
    %288 = vmatprep.subr.mxu0 0.0
    %289 = vmatpush1.msra.mxu0 %v112
    %290 = vmatprep.subr.mxu0 0.0
    %291 = vmatpush1.msra.mxu0 %v111
    %292 = vmatprep.subr.mxu0 0.0
    %293 = vmatpush1.msra.mxu0 %v110
    %294 = vmatprep.subr.mxu0 0.0
    %295 = vmatpush1.msra.mxu0 %v109
    %296 = vmatprep.subr.mxu0 0.0
    %297 = vmatpush1.msra.mxu0 %v108
    %298 = vmatprep.subr.mxu0 0.0
    %299 = vmatpush1.msra.mxu0 %v107
    %300 = vmatprep.subr.mxu0 0.0
    %301 = vmatpush1.msra.mxu0 %v106
    %302 = vmatprep.subr.mxu0 0.0
    %303 = vmatpush1.msra.mxu0 %v105
    %304 = vmatprep.subr.mxu0 0.0
    %305 = vmatpush2.msra.mxu0 0.0
    %306 = vmatprep.subr.mxu0 0.0
    %307 = vmatpush2.msra.mxu0 0.0
    %308 = vmatprep.subr.mxu0 0.0
    %309 = vmatpush2.msra.mxu0 0.0
    %310 = vmatprep.subr.mxu0 0.0
    %311 = vmatpush2.msra.mxu0 0.0
    %312 = vmatprep.subr.mxu0 0.0
    %313 = vmatpush2.msra.mxu0 0.0
    %314 = vmatprep.subr.mxu0 0.0
    %315 = vmatpush2.msra.mxu0 0.0
    %316 = vmatprep.subr.mxu0 0.0
    %317 = vmatpush2.msra.mxu0 0.0
    %318 = vmatprep.subr.mxu0 0.0
    %319 = vmatpush2.msra.mxu0 0.0
    %320 = vmatprep.subr.mxu0 0.0
    %321 = vmatpush2.msra.mxu0 0.0
    %322 = vmatprep.subr.mxu0 0.0
    %323 = vmatpush2.msra.mxu0 0.0
    %324 = vmatprep.subr.mxu0 0.0
    %325 = vmatpush2.msra.mxu0 0.0
    %326 = vmatprep.subr.mxu0 0.0
    %327 = vmatpush2.msra.mxu0 0.0
    %328 = vmatprep.subr.mxu0 0.0
    %329 = vmatpush2.msra.mxu0 0.0
    %330 = vmatprep.subr.mxu0 0.0
    %331 = vmatpush2.msra.mxu0 0.0
    %332 = vmatprep.subr.mxu0 0.0
    %333 = vmatpush2.msra.mxu0 0.0
    %334 = vmatprep.subr.mxu0 0.0
    %335 = vmatpush2.msra.mxu0 0.0
    %336 = vmatprep.mubr.f32.mxu0 0.0
    %337 = vmatmul.mubr.f32.gmra.mxu0 %v195
    %v338 = vpop.f32.mrf.mxu0
    %v339 = vadd.f32 0.0, %v338
    %v340 = vpop.f32.mrf.mxu0
    %341 = vdwg.mxu0
    %v342 = vmul.f32 %v339, 0.00390625
    %343 = vmatprep.subr.mxu0 0.0
    %344 = vmatpush1.msra.mxu0 %v120
    %345 = vmatprep.subr.mxu0 0.0
    %346 = vmatpush1.msra.mxu0 %v119
    %347 = vmatprep.subr.mxu0 0.0
    %348 = vmatpush1.msra.mxu0 %v118
    %349 = vmatprep.subr.mxu0 0.0
    %350 = vmatpush1.msra.mxu0 %v117
    %351 = vmatprep.subr.mxu0 0.0
    %352 = vmatpush1.msra.mxu0 %v116
    %353 = vmatprep.subr.mxu0 0.0
    %354 = vmatpush1.msra.mxu0 %v115
    %355 = vmatprep.subr.mxu0 0.0
    %356 = vmatpush1.msra.mxu0 %v114
    %357 = vmatprep.subr.mxu0 0.0
    %358 = vmatpush1.msra.mxu0 %v113
    %359 = vmatprep.subr.mxu0 0.0
    %360 = vmatpush1.msra.mxu0 %v112
    %361 = vmatprep.subr.mxu0 0.0
    %362 = vmatpush1.msra.mxu0 %v111
    %363 = vmatprep.subr.mxu0 0.0
    %364 = vmatpush1.msra.mxu0 %v110
    %365 = vmatprep.subr.mxu0 0.0
    %366 = vmatpush1.msra.mxu0 %v109
    %367 = vmatprep.subr.mxu0 0.0
    %368 = vmatpush1.msra.mxu0 %v108
    %369 = vmatprep.subr.mxu0 0.0
    %370 = vmatpush1.msra.mxu0 %v107
    %371 = vmatprep.subr.mxu0 0.0
    %372 = vmatpush1.msra.mxu0 %v106
    %373 = vmatprep.subr.mxu0 0.0
    %374 = vmatpush1.msra.mxu0 %v105
    %375 = vmatprep.subr.mxu0 0.0
    %376 = vmatpush2.msra.mxu0 0.0
    %377 = vmatprep.subr.mxu0 0.0
    %378 = vmatpush2.msra.mxu0 0.0
    %379 = vmatprep.subr.mxu0 0.0
    %380 = vmatpush2.msra.mxu0 0.0
    %381 = vmatprep.subr.mxu0 0.0
    %382 = vmatpush2.msra.mxu0 0.0
    %383 = vmatprep.subr.mxu0 0.0
    %384 = vmatpush2.msra.mxu0 0.0
    %385 = vmatprep.subr.mxu0 0.0
    %386 = vmatpush2.msra.mxu0 0.0
    %387 = vmatprep.subr.mxu0 0.0
    %388 = vmatpush2.msra.mxu0 0.0
    %389 = vmatprep.subr.mxu0 0.0
    %390 = vmatpush2.msra.mxu0 0.0
    %391 = vmatprep.subr.mxu0 0.0
    %392 = vmatpush2.msra.mxu0 0.0
    %393 = vmatprep.subr.mxu0 0.0
    %394 = vmatpush2.msra.mxu0 0.0
    %395 = vmatprep.subr.mxu0 0.0
    %396 = vmatpush2.msra.mxu0 0.0
    %397 = vmatprep.subr.mxu0 0.0
    %398 = vmatpush2.msra.mxu0 0.0
    %399 = vmatprep.subr.mxu0 0.0
    %400 = vmatpush2.msra.mxu0 0.0
    %401 = vmatprep.subr.mxu0 0.0
    %402 = vmatpush2.msra.mxu0 0.0
    %403 = vmatprep.subr.mxu0 0.0
    %404 = vmatpush2.msra.mxu0 0.0
    %405 = vmatprep.subr.mxu0 0.0
    %406 = vmatpush2.msra.mxu0 0.0
    %407 = vmatprep.mubr.f32.mxu0 0.0
    %408 = vmatmul.mubr.f32.gmra.mxu0 %v269
    %v409 = vpop.f32.mrf.mxu0
    %v410 = vadd.f32 0.0, %v409
    %v411 = vpop.f32.mrf.mxu0
    %412 = vdwg.mxu0
    %v413 = vmul.f32 %v410, 0.00390625
    %v414 = vmul.f32 %v342, %v342
    %v415 = vsub.f32 %v413, %v414
    %v416 = vmax.f32 %v415, 0.0
    %v417 = vadd.f32 %v416, 1e-05
    %v418 = vrsqrt.pop %v417
    %vm419 = vcmask 64512
    %v421 = vsel %vm419, %v342, 0
    %423 = vmatprep.subr.mxu0 0.0
    %424 = vmatpush1.msra.mxu0 0.0
    %425 = vmatprep.subr.mxu0 0.0
    %426 = vmatpush1.msra.mxu0 0.0
    %427 = vmatprep.subr.mxu0 0.0
    %428 = vmatpush1.msra.mxu0 0.0
    %429 = vmatprep.subr.mxu0 0.0
    %430 = vmatpush1.msra.mxu0 0.0
    %431 = vmatprep.subr.mxu0 0.0
    %432 = vmatpush1.msra.mxu0 0.0
    %433 = vmatprep.subr.mxu0 0.0
    %434 = vmatpush1.msra.mxu0 0.0
    %435 = vmatprep.subr.mxu0 0.0
    %436 = vmatpush1.msra.mxu0 0.0
    %437 = vmatprep.subr.mxu0 0.0
    %438 = vmatpush1.msra.mxu0 0.0
    %439 = vmatprep.subr.mxu0 0.0
    %440 = vmatpush1.msra.mxu0 0.0
    %441 = vmatprep.subr.mxu0 0.0
    %442 = vmatpush1.msra.mxu0 0.0
    %443 = vmatprep.subr.mxu0 0.0
    %444 = vmatpush1.msra.mxu0 0.0
    %445 = vmatprep.subr.mxu0 0.0
    %446 = vmatpush1.msra.mxu0 0.0
    %447 = vmatprep.subr.mxu0 0.0
    %448 = vmatpush1.msra.mxu0 0.0
    %449 = vmatprep.subr.mxu0 0.0
    %450 = vmatpush1.msra.mxu0 0.0
    %451 = vmatprep.subr.mxu0 0.0
    %452 = vmatpush1.msra.mxu0 0.0
    %453 = vmatprep.subr.mxu0 0.0
    %454 = vmatpush1.msra.mxu0 %v121
    %455 = vmatprep.subr.mxu0 0.0
    %456 = vmatpush2.msra.mxu0 0.0
    %457 = vmatprep.subr.mxu0 0.0
    %458 = vmatpush2.msra.mxu0 0.0
    %459 = vmatprep.subr.mxu0 0.0
    %460 = vmatpush2.msra.mxu0 0.0
    %461 = vmatprep.subr.mxu0 0.0
    %462 = vmatpush2.msra.mxu0 0.0
    %463 = vmatprep.subr.mxu0 0.0
    %464 = vmatpush2.msra.mxu0 0.0
    %465 = vmatprep.subr.mxu0 0.0
    %466 = vmatpush2.msra.mxu0 0.0
    %467 = vmatprep.subr.mxu0 0.0
    %468 = vmatpush2.msra.mxu0 0.0
    %469 = vmatprep.subr.mxu0 0.0
    %470 = vmatpush2.msra.mxu0 0.0
    %471 = vmatprep.subr.mxu0 0.0
    %472 = vmatpush2.msra.mxu0 0.0
    %473 = vmatprep.subr.mxu0 0.0
    %474 = vmatpush2.msra.mxu0 0.0
    %475 = vmatprep.subr.mxu0 0.0
    %476 = vmatpush2.msra.mxu0 0.0
    %477 = vmatprep.subr.mxu0 0.0
    %478 = vmatpush2.msra.mxu0 0.0
    %479 = vmatprep.subr.mxu0 0.0
    %480 = vmatpush2.msra.mxu0 0.0
    %481 = vmatprep.subr.mxu0 0.0
    %482 = vmatpush2.msra.mxu0 0.0
    %483 = vmatprep.subr.mxu0 0.0
    %484 = vmatpush2.msra.mxu0 0.0
    %485 = vmatprep.subr.mxu0 0.0
    %486 = vmatpush2.msra.mxu0 0.0
    %487 = vmatprep.mubr.f32.mxu0 0.0
    %488 = vmatmul.mubr.f32.gmra.mxu0 %v421
    %v489 = vpop.f32.mrf.mxu0
    %v490 = vadd.f32 0.0, %v489
    %v491 = vpop.f32.mrf.mxu0
    %492 = vdwg.mxu0
    %vm493 = vcmask 15360
    %v495 = vsel %vm493, %v97, 0
    %v498 = vsel %vm493, %v98, 0
    %v501 = vsel %vm493, %v99, 0
    %v504 = vsel %vm493, %v100, 0
    %vm506 = vcmask 1041408
    %v508 = vsel %vm506, %v490, 0
    %510 = vmatprep.subr.mxu0 0.0
    %511 = vmatpush1.msra.mxu0 0.0
    %512 = vmatprep.subr.mxu0 0.0
    %513 = vmatpush1.msra.mxu0 0.0
    %514 = vmatprep.subr.mxu0 0.0
    %515 = vmatpush1.msra.mxu0 0.0
    %516 = vmatprep.subr.mxu0 0.0
    %517 = vmatpush1.msra.mxu0 0.0
    %518 = vmatprep.subr.mxu0 0.0
    %519 = vmatpush1.msra.mxu0 0.0
    %520 = vmatprep.subr.mxu0 0.0
    %521 = vmatpush1.msra.mxu0 0.0
    %522 = vmatprep.subr.mxu0 0.0
    %523 = vmatpush1.msra.mxu0 0.0
    %524 = vmatprep.subr.mxu0 0.0
    %525 = vmatpush1.msra.mxu0 0.0
    %526 = vmatprep.subr.mxu0 0.0
    %527 = vmatpush1.msra.mxu0 0.0
    %528 = vmatprep.subr.mxu0 0.0
    %529 = vmatpush1.msra.mxu0 0.0
    %530 = vmatprep.subr.mxu0 0.0
    %531 = vmatpush1.msra.mxu0 0.0
    %532 = vmatprep.subr.mxu0 0.0
    %533 = vmatpush1.msra.mxu0 0.0
    %534 = vmatprep.subr.mxu0 0.0
    %535 = vmatpush1.msra.mxu0 0.0
    %536 = vmatprep.subr.mxu0 0.0
    %537 = vmatpush1.msra.mxu0 0.0
    %538 = vmatprep.subr.mxu0 0.0
    %539 = vmatpush1.msra.mxu0 0.0
    %540 = vmatprep.subr.mxu0 0.0
    %541 = vmatpush1.msra.mxu0 %v508
    %542 = vmatprep.subr.mxu0 0.0
    %543 = vmatpush2.msra.mxu0 0.0
    %544 = vmatprep.subr.mxu0 0.0
    %545 = vmatpush2.msra.mxu0 0.0
    %546 = vmatprep.subr.mxu0 0.0
    %547 = vmatpush2.msra.mxu0 0.0
    %548 = vmatprep.subr.mxu0 0.0
    %549 = vmatpush2.msra.mxu0 0.0
    %550 = vmatprep.subr.mxu0 0.0
    %551 = vmatpush2.msra.mxu0 0.0
    %552 = vmatprep.subr.mxu0 0.0
    %553 = vmatpush2.msra.mxu0 0.0
    %554 = vmatprep.subr.mxu0 0.0
    %555 = vmatpush2.msra.mxu0 0.0
    %556 = vmatprep.subr.mxu0 0.0
    %557 = vmatpush2.msra.mxu0 0.0
    %558 = vmatprep.subr.mxu0 0.0
    %559 = vmatpush2.msra.mxu0 0.0
    %560 = vmatprep.subr.mxu0 0.0
    %561 = vmatpush2.msra.mxu0 0.0
    %562 = vmatprep.subr.mxu0 0.0
    %563 = vmatpush2.msra.mxu0 0.0
    %564 = vmatprep.subr.mxu0 0.0
    %565 = vmatpush2.msra.mxu0 0.0
    %566 = vmatprep.subr.mxu0 0.0
    %567 = vmatpush2.msra.mxu0 0.0
    %568 = vmatprep.subr.mxu0 0.0
    %569 = vmatpush2.msra.mxu0 0.0
    %570 = vmatprep.subr.mxu0 0.0
    %571 = vmatpush2.msra.mxu0 0.0
    %572 = vmatprep.subr.mxu0 0.0
    %573 = vmatpush2.msra.mxu0 0.0
    %574 = vmatprep.mubr.f32.mxu0 0.0
    %575 = vmatmul.mubr.f32.gmra.mxu0 %v495
    %v576 = vpop.f32.mrf.mxu0
    %v577 = vadd.f32 0.0, %v576
    %v578 = vpop.f32.mrf.mxu0
    %579 = vmatprep.mubr.f32.mxu0 0.0
    %580 = vmatmul.mubr.f32.gmra.mxu0 %v498
    %v581 = vpop.f32.mrf.mxu0
    %v582 = vadd.f32 0.0, %v581
    %v583 = vpop.f32.mrf.mxu0
    %584 = vmatprep.mubr.f32.mxu0 0.0
    %585 = vmatmul.mubr.f32.gmra.mxu0 %v501
    %v586 = vpop.f32.mrf.mxu0
    %v587 = vadd.f32 0.0, %v586
    %v588 = vpop.f32.mrf.mxu0
    %589 = vmatprep.mubr.f32.mxu0 0.0
    %590 = vmatmul.mubr.f32.gmra.mxu0 %v504
    %v591 = vpop.f32.mrf.mxu0
    %v592 = vadd.f32 0.0, %v591
    %v593 = vpop.f32.mrf.mxu0
    %594 = vdwg.mxu0
    %v596 = vsel %vm419, %v418, 0
    %598 = vmatprep.subr.mxu0 0.0
    %599 = vmatpush1.msra.mxu0 0.0
    %600 = vmatprep.subr.mxu0 0.0
    %601 = vmatpush1.msra.mxu0 0.0
    %602 = vmatprep.subr.mxu0 0.0
    %603 = vmatpush1.msra.mxu0 0.0
    %604 = vmatprep.subr.mxu0 0.0
    %605 = vmatpush1.msra.mxu0 0.0
    %606 = vmatprep.subr.mxu0 0.0
    %607 = vmatpush1.msra.mxu0 0.0
    %608 = vmatprep.subr.mxu0 0.0
    %609 = vmatpush1.msra.mxu0 0.0
    %610 = vmatprep.subr.mxu0 0.0
    %611 = vmatpush1.msra.mxu0 0.0
    %612 = vmatprep.subr.mxu0 0.0
    %613 = vmatpush1.msra.mxu0 0.0
    %614 = vmatprep.subr.mxu0 0.0
    %615 = vmatpush1.msra.mxu0 0.0
    %616 = vmatprep.subr.mxu0 0.0
    %617 = vmatpush1.msra.mxu0 0.0
    %618 = vmatprep.subr.mxu0 0.0
    %619 = vmatpush1.msra.mxu0 0.0
    %620 = vmatprep.subr.mxu0 0.0
    %621 = vmatpush1.msra.mxu0 0.0
    %622 = vmatprep.subr.mxu0 0.0
    %623 = vmatpush1.msra.mxu0 0.0
    %624 = vmatprep.subr.mxu0 0.0
    %625 = vmatpush1.msra.mxu0 0.0
    %626 = vmatprep.subr.mxu0 0.0
    %627 = vmatpush1.msra.mxu0 0.0
    %628 = vmatprep.subr.mxu0 0.0
    %629 = vmatpush1.msra.mxu0 %v121
    %630 = vmatprep.subr.mxu0 0.0
    %631 = vmatpush2.msra.mxu0 0.0
    %632 = vmatprep.subr.mxu0 0.0
    %633 = vmatpush2.msra.mxu0 0.0
    %634 = vmatprep.subr.mxu0 0.0
    %635 = vmatpush2.msra.mxu0 0.0
    %636 = vmatprep.subr.mxu0 0.0
    %637 = vmatpush2.msra.mxu0 0.0
    %638 = vmatprep.subr.mxu0 0.0
    %639 = vmatpush2.msra.mxu0 0.0
    %640 = vmatprep.subr.mxu0 0.0
    %641 = vmatpush2.msra.mxu0 0.0
    %642 = vmatprep.subr.mxu0 0.0
    %643 = vmatpush2.msra.mxu0 0.0
    %644 = vmatprep.subr.mxu0 0.0
    %645 = vmatpush2.msra.mxu0 0.0
    %646 = vmatprep.subr.mxu0 0.0
    %647 = vmatpush2.msra.mxu0 0.0
    %648 = vmatprep.subr.mxu0 0.0
    %649 = vmatpush2.msra.mxu0 0.0
    %650 = vmatprep.subr.mxu0 0.0
    %651 = vmatpush2.msra.mxu0 0.0
    %652 = vmatprep.subr.mxu0 0.0
    %653 = vmatpush2.msra.mxu0 0.0
    %654 = vmatprep.subr.mxu0 0.0
    %655 = vmatpush2.msra.mxu0 0.0
    %656 = vmatprep.subr.mxu0 0.0
    %657 = vmatpush2.msra.mxu0 0.0
    %658 = vmatprep.subr.mxu0 0.0
    %659 = vmatpush2.msra.mxu0 0.0
    %660 = vmatprep.subr.mxu0 0.0
    %661 = vmatpush2.msra.mxu0 0.0
    %662 = vmatprep.mubr.f32.mxu0 0.0
    %663 = vmatmul.mubr.f32.gmra.mxu0 %v596
    %v664 = vpop.f32.mrf.mxu0
    %v665 = vadd.f32 0.0, %v664
    %v666 = vpop.f32.mrf.mxu0
    %667 = vdwg.mxu0
    %v669 = vsel %vm506, %v665, 0
    %671 = vmatprep.subr.mxu0 0.0
    %672 = vmatpush1.msra.mxu0 0.0
    %673 = vmatprep.subr.mxu0 0.0
    %674 = vmatpush1.msra.mxu0 0.0
    %675 = vmatprep.subr.mxu0 0.0
    %676 = vmatpush1.msra.mxu0 0.0
    %677 = vmatprep.subr.mxu0 0.0
    %678 = vmatpush1.msra.mxu0 0.0
    %679 = vmatprep.subr.mxu0 0.0
    %680 = vmatpush1.msra.mxu0 0.0
    %681 = vmatprep.subr.mxu0 0.0
    %682 = vmatpush1.msra.mxu0 0.0
    %683 = vmatprep.subr.mxu0 0.0
    %684 = vmatpush1.msra.mxu0 0.0
    %685 = vmatprep.subr.mxu0 0.0
    %686 = vmatpush1.msra.mxu0 0.0
    %687 = vmatprep.subr.mxu0 0.0
    %688 = vmatpush1.msra.mxu0 0.0
    %689 = vmatprep.subr.mxu0 0.0
    %690 = vmatpush1.msra.mxu0 0.0
    %691 = vmatprep.subr.mxu0 0.0
    %692 = vmatpush1.msra.mxu0 0.0
    %693 = vmatprep.subr.mxu0 0.0
    %694 = vmatpush1.msra.mxu0 0.0
    %695 = vmatprep.subr.mxu0 0.0
    %696 = vmatpush1.msra.mxu0 0.0
    %697 = vmatprep.subr.mxu0 0.0
    %698 = vmatpush1.msra.mxu0 0.0
    %699 = vmatprep.subr.mxu0 0.0
    %700 = vmatpush1.msra.mxu0 0.0
    %701 = vmatprep.subr.mxu0 0.0
    %702 = vmatpush1.msra.mxu0 %v669
    %703 = vmatprep.subr.mxu0 0.0
    %704 = vmatpush2.msra.mxu0 0.0
    %705 = vmatprep.subr.mxu0 0.0
    %706 = vmatpush2.msra.mxu0 0.0
    %707 = vmatprep.subr.mxu0 0.0
    %708 = vmatpush2.msra.mxu0 0.0
    %709 = vmatprep.subr.mxu0 0.0
    %710 = vmatpush2.msra.mxu0 0.0
    %711 = vmatprep.subr.mxu0 0.0
    %712 = vmatpush2.msra.mxu0 0.0
    %713 = vmatprep.subr.mxu0 0.0
    %714 = vmatpush2.msra.mxu0 0.0
    %715 = vmatprep.subr.mxu0 0.0
    %716 = vmatpush2.msra.mxu0 0.0
    %717 = vmatprep.subr.mxu0 0.0
    %718 = vmatpush2.msra.mxu0 0.0
    %719 = vmatprep.subr.mxu0 0.0
    %720 = vmatpush2.msra.mxu0 0.0
    %721 = vmatprep.subr.mxu0 0.0
    %722 = vmatpush2.msra.mxu0 0.0
    %723 = vmatprep.subr.mxu0 0.0
    %724 = vmatpush2.msra.mxu0 0.0
    %725 = vmatprep.subr.mxu0 0.0
    %726 = vmatpush2.msra.mxu0 0.0
    %727 = vmatprep.subr.mxu0 0.0
    %728 = vmatpush2.msra.mxu0 0.0
    %729 = vmatprep.subr.mxu0 0.0
    %730 = vmatpush2.msra.mxu0 0.0
    %731 = vmatprep.subr.mxu0 0.0
    %732 = vmatpush2.msra.mxu0 0.0
    %733 = vmatprep.subr.mxu0 0.0
    %734 = vmatpush2.msra.mxu0 0.0
    %735 = vmatprep.mubr.f32.mxu0 0.0
    %736 = vmatmul.mubr.f32.gmra.mxu0 %v495
    %v737 = vpop.f32.mrf.mxu0
    %v738 = vadd.f32 0.0, %v737
    %v739 = vpop.f32.mrf.mxu0
    %740 = vmatprep.mubr.f32.mxu0 0.0
    %741 = vmatmul.mubr.f32.gmra.mxu0 %v498
    %v742 = vpop.f32.mrf.mxu0
    %v743 = vadd.f32 0.0, %v742
    %v744 = vpop.f32.mrf.mxu0
    %745 = vmatprep.mubr.f32.mxu0 0.0
    %746 = vmatmul.mubr.f32.gmra.mxu0 %v501
    %v747 = vpop.f32.mrf.mxu0
    %v748 = vadd.f32 0.0, %v747
    %v749 = vpop.f32.mrf.mxu0
    %750 = vmatprep.mubr.f32.mxu0 0.0
    %751 = vmatmul.mubr.f32.gmra.mxu0 %v504
    %v752 = vpop.f32.mrf.mxu0
    %v753 = vadd.f32 0.0, %v752
    %v754 = vpop.f32.mrf.mxu0
    %755 = vdwg.mxu0
    %v756 = vsub.f32 %v92, %v577
    %v757 = vsub.f32 %v93, %v582
    %v758 = vsub.f32 %v94, %v587
    %v759 = vsub.f32 %v95, %v592
    %v761 = vlaneseq
    %v762 = vshrl.u32 %v761, 7
    %v763 = vsub.s32 0, %v762
    %v764 = vrot.slane %v122, %v763
    %v766 = vmul.f32 %v738, %v764
    %v767 = vmul.f32 %v743, %v764
    %v768 = vmul.f32 %v748, %v764
    %v769 = vmul.f32 %v753, %v764
    %v770 = vmul.f32 %v756, %v766
    %v771 = vmul.f32 %v757, %v767
    %v772 = vmul.f32 %v758, %v768
    %v773 = vmul.f32 %v759, %v769
    %v775 = vlaneseq
    %v776 = vshrl.u32 %v775, 7
    %v777 = vsub.s32 0, %v776
    %v778 = vrot.slane %v123, %v777
    %v780 = vadd.f32 %v770, %v778
    %v781 = vadd.f32 %v771, %v778
    %v782 = vadd.f32 %v772, %v778
    %v783 = vadd.f32 %v773, %v778
    %v784 = vmax.f32 %v780, 0.0
    %v785 = vmax.f32 %v781, 0.0
    %v786 = vmax.f32 %v782, 0.0
    %v787 = vmax.f32 %v783, 0.0
    %v788 = vld [vmem:[%s10] sm:$0x3]
    %v789 = vrot.slane %v784, 7
    %v790 = vrot.slane %v785, 7
    %v791 = vrot.slane %v786, 7
    %v792 = vrot.slane %v787, 7
    %v793 = vlaneseq
    %v794 = vshrl.u32 %v793, 7
    %vm795 = vcmp.lt.s32.totalorder %v794, 1
    %v796 = vsel %vm795, %v791, %v792
    %v797 = vsel %vm795, %v790, %v791
    %v798 = vsel %vm795, %v789, %v790
    %v799 = vsel %vm795, %v792, %v789
    %vm800 = vcmp.ge.f32.partialorder %v101, 1.0
    %vm801 = vcmp.ge.f32.partialorder %v102, 1.0
    %vm802 = vcmp.ge.f32.partialorder %v103, 1.0
    %vm803 = vcmp.ge.f32.partialorder %v104, 1.0
    %v804 = vsel %vm800, 1, 0
    %v805 = vsel %vm801, 1, 0
    %v806 = vsel %vm802, 1, 0
    %v807 = vsel %vm803, 1, 0
    %v808 = vcvt.s32.f32 %v804
    %v809 = vcvt.s32.f32 %v805
    %v810 = vcvt.s32.f32 %v806
    %v811 = vcvt.s32.f32 %v807
    %813 = vset.pattern.permute.xlu0 0
    %814 = vperm.xlu0 %813, %v808
    %v815 = vpop.permute.xlu0 %814
    %818 = vset.pattern.permute.xlu0 0
    %819 = vperm.xlu0 %818, %v809
    %v820 = vpop.permute.xlu0 %819
    %823 = vset.pattern.permute.xlu0 0
    %824 = vperm.xlu0 %823, %v810
    %v825 = vpop.permute.xlu0 %824
    %828 = vset.pattern.permute.xlu0 0
    %829 = vperm.xlu0 %828, %v811
    %v830 = vpop.permute.xlu0 %829
    %v832 = vmul.f32 %v799, %v815
    %v833 = vmul.f32 %v798, %v820
    %v834 = vmul.f32 %v797, %v825
    %v835 = vmul.f32 %v796, %v830
    %v836 = vpack.c.bf16 %v833, %v832
    %v837 = vpack.c.bf16 %v835, %v834
    %v838 = vld [vmem:[%s9] sm:$0xff]
    %v839 = vld [vmem:[%s9 + $0x8] sm:$0xff]
    %v840 = vld [vmem:[%s9 + $0x10] sm:$0xff]
    %v841 = vld [vmem:[%s9 + $0x18] sm:$0xff]
    %v842 = vld [vmem:[%s9 + $0x20] sm:$0xff]
    %v843 = vld [vmem:[%s9 + $0x28] sm:$0xff]
    %v844 = vld [vmem:[%s9 + $0x30] sm:$0xff]
    %v845 = vld [vmem:[%s9 + $0x38] sm:$0xff]
    %v846 = vld [vmem:[%s9 + $0x40] sm:$0xff]
    %v847 = vld [vmem:[%s9 + $0x48] sm:$0xff]
    %v848 = vld [vmem:[%s9 + $0x50] sm:$0xff]
    %v849 = vld [vmem:[%s9 + $0x58] sm:$0xff]
    %v850 = vld [vmem:[%s9 + $0x60] sm:$0xff]
    %v851 = vld [vmem:[%s9 + $0x68] sm:$0xff]
    %v852 = vld [vmem:[%s9 + $0x70] sm:$0xff]
    %v853 = vld [vmem:[%s9 + $0x78] sm:$0xff]
    %v854 = vpack.c.bf16 %v785, %v784
    %v855 = vpack.c.bf16 %v787, %v786
    %s856 = scalar_lea.vmem %s9, 128
    %v857 = vld [vmem:[%s856] sm:$0xff]
    %v858 = vld [vmem:[%s856 + $0x8] sm:$0xff]
    %v859 = vld [vmem:[%s856 + $0x10] sm:$0xff]
    %v860 = vld [vmem:[%s856 + $0x18] sm:$0xff]
    %v861 = vld [vmem:[%s856 + $0x20] sm:$0xff]
    %v862 = vld [vmem:[%s856 + $0x28] sm:$0xff]
    %v863 = vld [vmem:[%s856 + $0x30] sm:$0xff]
    %v864 = vld [vmem:[%s856 + $0x38] sm:$0xff]
    %v865 = vld [vmem:[%s856 + $0x40] sm:$0xff]
    %v866 = vld [vmem:[%s856 + $0x48] sm:$0xff]
    %v867 = vld [vmem:[%s856 + $0x50] sm:$0xff]
    %v868 = vld [vmem:[%s856 + $0x58] sm:$0xff]
    %v869 = vld [vmem:[%s856 + $0x60] sm:$0xff]
    %v870 = vld [vmem:[%s856 + $0x68] sm:$0xff]
    %v871 = vld [vmem:[%s856 + $0x70] sm:$0xff]
    %v872 = vld [vmem:[%s856 + $0x78] sm:$0xff]
    %v889 = vunpack.c.l.b16 %v857
    %v890 = vunpack.c.h.b16 %v857
    %v891 = vunpack.c.l.b16 %v858
    %v892 = vunpack.c.h.b16 %v858
    %v893 = vunpack.c.l.b16 %v859
    %v894 = vunpack.c.h.b16 %v859
    %v895 = vunpack.c.l.b16 %v860
    %v896 = vunpack.c.h.b16 %v860
    %v897 = vunpack.c.l.b16 %v861
    %v898 = vunpack.c.h.b16 %v861
    %v899 = vunpack.c.l.b16 %v862
    %v900 = vunpack.c.h.b16 %v862
    %v901 = vunpack.c.l.b16 %v863
    %v902 = vunpack.c.h.b16 %v863
    %v903 = vunpack.c.l.b16 %v864
    %v904 = vunpack.c.h.b16 %v864
    %v905 = vunpack.c.l.b16 %v865
    %v906 = vunpack.c.h.b16 %v865
    %v907 = vunpack.c.l.b16 %v866
    %v908 = vunpack.c.h.b16 %v866
    %v909 = vunpack.c.l.b16 %v867
    %v910 = vunpack.c.h.b16 %v867
    %v911 = vunpack.c.l.b16 %v868
    %v912 = vunpack.c.h.b16 %v868
    %v913 = vunpack.c.l.b16 %v869
    %v914 = vunpack.c.h.b16 %v869
    %v915 = vunpack.c.l.b16 %v870
    %v916 = vunpack.c.h.b16 %v870
    %v917 = vunpack.c.l.b16 %v871
    %v918 = vunpack.c.h.b16 %v871
    %v919 = vunpack.c.l.b16 %v872
    %v920 = vunpack.c.h.b16 %v872
    %v921 = vpack.c.b16 %v891, %v889
    %v922 = vpack.c.b16 %v892, %v890
    %v923 = vpack.c.b16 %v895, %v893
    %v924 = vpack.c.b16 %v896, %v894
    %v925 = vpack.c.b16 %v899, %v897
    %v926 = vpack.c.b16 %v900, %v898
    %v927 = vpack.c.b16 %v903, %v901
    %v928 = vpack.c.b16 %v904, %v902
    %v929 = vpack.c.b16 %v907, %v905
    %v930 = vpack.c.b16 %v908, %v906
    %v931 = vpack.c.b16 %v911, %v909
    %v932 = vpack.c.b16 %v912, %v910
    %v933 = vpack.c.b16 %v915, %v913
    %v934 = vpack.c.b16 %v916, %v914
    %v935 = vpack.c.b16 %v919, %v917
    %v936 = vpack.c.b16 %v920, %v918
    %953 = vmatprep.subr.bf16.mxu0 %v936
    %954 = vmatpush1.bf16.msra.mxu0 %v935
    %955 = vmatprep.subr.bf16.mxu0 %v934
    %956 = vmatpush1.bf16.msra.mxu0 %v933
    %957 = vmatprep.subr.bf16.mxu0 %v932
    %958 = vmatpush1.bf16.msra.mxu0 %v931
    %959 = vmatprep.subr.bf16.mxu0 %v930
    %960 = vmatpush1.bf16.msra.mxu0 %v929
    %961 = vmatprep.subr.bf16.mxu0 %v928
    %962 = vmatpush1.bf16.msra.mxu0 %v927
    %963 = vmatprep.subr.bf16.mxu0 %v926
    %964 = vmatpush1.bf16.msra.mxu0 %v925
    %965 = vmatprep.subr.bf16.mxu0 %v924
    %966 = vmatpush1.bf16.msra.mxu0 %v923
    %967 = vmatprep.subr.bf16.mxu0 %v922
    %968 = vmatpush1.bf16.msra.mxu0 %v921
    %969 = vmatprep.subr.bf16.mxu0 0
    %970 = vmatpush2.bf16.msra.mxu0 0
    %971 = vmatprep.subr.bf16.mxu0 0
    %972 = vmatpush2.bf16.msra.mxu0 0
    %973 = vmatprep.subr.bf16.mxu0 0
    %974 = vmatpush2.bf16.msra.mxu0 0
    %975 = vmatprep.subr.bf16.mxu0 0
    %976 = vmatpush2.bf16.msra.mxu0 0
    %977 = vmatprep.subr.bf16.mxu0 0
    %978 = vmatpush2.bf16.msra.mxu0 0
    %979 = vmatprep.subr.bf16.mxu0 0
    %980 = vmatpush2.bf16.msra.mxu0 0
    %981 = vmatprep.subr.bf16.mxu0 0
    %982 = vmatpush2.bf16.msra.mxu0 0
    %983 = vmatprep.subr.bf16.mxu0 0
    %984 = vmatpush2.bf16.msra.mxu0 0
    %985 = vmatprep.mubr.bf16.mxu0 0
    %986 = vmatmul.mubr.bf16.gmra.mxu0 %v854
    %v987 = vpop.f32.mrf.mxu0
    %v988 = vadd.f32 0.0, %v987
    %v989 = vpop.f32.mrf.mxu0
    %v990 = vadd.f32 0.0, %v989
    %v991 = vpop.f32.mrf.mxu0
    %v992 = vadd.f32 0.0, %v991
    %v993 = vpop.f32.mrf.mxu0
    %v994 = vadd.f32 0.0, %v993
    %995 = vmatprep.mubr.bf16.mxu0 0
    %996 = vmatmul.mubr.bf16.gmra.mxu0 %v855
    %v997 = vpop.f32.mrf.mxu0
    %v998 = vadd.f32 0.0, %v997
    %v999 = vpop.f32.mrf.mxu0
    %v1000 = vadd.f32 0.0, %v999
    %v1001 = vpop.f32.mrf.mxu0
    %v1002 = vadd.f32 0.0, %v1001
    %v1003 = vpop.f32.mrf.mxu0
    %v1004 = vadd.f32 0.0, %v1003
    %1005 = vdwg.mxu0
    %v1022 = vunpack.c.l.b16 %v838
    %v1023 = vunpack.c.h.b16 %v838
    %v1024 = vunpack.c.l.b16 %v839
    %v1025 = vunpack.c.h.b16 %v839
    %v1026 = vunpack.c.l.b16 %v840
    %v1027 = vunpack.c.h.b16 %v840
    %v1028 = vunpack.c.l.b16 %v841
    %v1029 = vunpack.c.h.b16 %v841
    %v1030 = vunpack.c.l.b16 %v842
    %v1031 = vunpack.c.h.b16 %v842
    %v1032 = vunpack.c.l.b16 %v843
    %v1033 = vunpack.c.h.b16 %v843
    %v1034 = vunpack.c.l.b16 %v844
    %v1035 = vunpack.c.h.b16 %v844
    %v1036 = vunpack.c.l.b16 %v845
    %v1037 = vunpack.c.h.b16 %v845
    %v1038 = vunpack.c.l.b16 %v846
    %v1039 = vunpack.c.h.b16 %v846
    %v1040 = vunpack.c.l.b16 %v847
    %v1041 = vunpack.c.h.b16 %v847
    %v1042 = vunpack.c.l.b16 %v848
    %v1043 = vunpack.c.h.b16 %v848
    %v1044 = vunpack.c.l.b16 %v849
    %v1045 = vunpack.c.h.b16 %v849
    %v1046 = vunpack.c.l.b16 %v850
    %v1047 = vunpack.c.h.b16 %v850
    %v1048 = vunpack.c.l.b16 %v851
    %v1049 = vunpack.c.h.b16 %v851
    %v1050 = vunpack.c.l.b16 %v852
    %v1051 = vunpack.c.h.b16 %v852
    %v1052 = vunpack.c.l.b16 %v853
    %v1053 = vunpack.c.h.b16 %v853
    %v1054 = vpack.c.b16 %v1024, %v1022
    %v1055 = vpack.c.b16 %v1025, %v1023
    %v1056 = vpack.c.b16 %v1028, %v1026
    %v1057 = vpack.c.b16 %v1029, %v1027
    %v1058 = vpack.c.b16 %v1032, %v1030
    %v1059 = vpack.c.b16 %v1033, %v1031
    %v1060 = vpack.c.b16 %v1036, %v1034
    %v1061 = vpack.c.b16 %v1037, %v1035
    %v1062 = vpack.c.b16 %v1040, %v1038
    %v1063 = vpack.c.b16 %v1041, %v1039
    %v1064 = vpack.c.b16 %v1044, %v1042
    %v1065 = vpack.c.b16 %v1045, %v1043
    %v1066 = vpack.c.b16 %v1048, %v1046
    %v1067 = vpack.c.b16 %v1049, %v1047
    %v1068 = vpack.c.b16 %v1052, %v1050
    %v1069 = vpack.c.b16 %v1053, %v1051
    %1086 = vmatprep.subr.bf16.mxu0 %v1069
    %1087 = vmatpush1.bf16.msra.mxu0 %v1068
    %1088 = vmatprep.subr.bf16.mxu0 %v1067
    %1089 = vmatpush1.bf16.msra.mxu0 %v1066
    %1090 = vmatprep.subr.bf16.mxu0 %v1065
    %1091 = vmatpush1.bf16.msra.mxu0 %v1064
    %1092 = vmatprep.subr.bf16.mxu0 %v1063
    %1093 = vmatpush1.bf16.msra.mxu0 %v1062
    %1094 = vmatprep.subr.bf16.mxu0 %v1061
    %1095 = vmatpush1.bf16.msra.mxu0 %v1060
    %1096 = vmatprep.subr.bf16.mxu0 %v1059
    %1097 = vmatpush1.bf16.msra.mxu0 %v1058
    %1098 = vmatprep.subr.bf16.mxu0 %v1057
    %1099 = vmatpush1.bf16.msra.mxu0 %v1056
    %1100 = vmatprep.subr.bf16.mxu0 %v1055
    %1101 = vmatpush1.bf16.msra.mxu0 %v1054
    %1102 = vmatprep.subr.bf16.mxu0 0
    %1103 = vmatpush2.bf16.msra.mxu0 0
    %1104 = vmatprep.subr.bf16.mxu0 0
    %1105 = vmatpush2.bf16.msra.mxu0 0
    %1106 = vmatprep.subr.bf16.mxu0 0
    %1107 = vmatpush2.bf16.msra.mxu0 0
    %1108 = vmatprep.subr.bf16.mxu0 0
    %1109 = vmatpush2.bf16.msra.mxu0 0
    %1110 = vmatprep.subr.bf16.mxu0 0
    %1111 = vmatpush2.bf16.msra.mxu0 0
    %1112 = vmatprep.subr.bf16.mxu0 0
    %1113 = vmatpush2.bf16.msra.mxu0 0
    %1114 = vmatprep.subr.bf16.mxu0 0
    %1115 = vmatpush2.bf16.msra.mxu0 0
    %1116 = vmatprep.subr.bf16.mxu0 0
    %1117 = vmatpush2.bf16.msra.mxu0 0
    %1118 = vmatprep.mubr.bf16.mxu0 0
    %1119 = vmatmul.mubr.bf16.gmra.mxu0 %v836
    %v1120 = vpop.f32.mrf.mxu0
    %v1121 = vadd.f32 %v988, %v1120
    %v1122 = vpop.f32.mrf.mxu0
    %v1123 = vadd.f32 %v990, %v1122
    %v1124 = vpop.f32.mrf.mxu0
    %v1125 = vadd.f32 %v992, %v1124
    %v1126 = vpop.f32.mrf.mxu0
    %v1127 = vadd.f32 %v994, %v1126
    %1128 = vmatprep.mubr.bf16.mxu0 0
    %1129 = vmatmul.mubr.bf16.gmra.mxu0 %v837
    %v1130 = vpop.f32.mrf.mxu0
    %v1131 = vadd.f32 %v998, %v1130
    %v1132 = vpop.f32.mrf.mxu0
    %v1133 = vadd.f32 %v1000, %v1132
    %v1134 = vpop.f32.mrf.mxu0
    %v1135 = vadd.f32 %v1002, %v1134
    %v1136 = vpop.f32.mrf.mxu0
    %v1137 = vadd.f32 %v1004, %v1136
    %1138 = vdwg.mxu0
    %v1139 = vrot.slane %v784, 1
    %v1140 = vrot.slane %v785, 1
    %v1141 = vrot.slane %v786, 1
    %v1142 = vrot.slane %v787, 1
    %vm1143 = vcmp.lt.s32.totalorder %v794, 7
    %v1144 = vsel %vm1143, %v1141, %v1142
    %v1145 = vsel %vm1143, %v1140, %v1141
    %v1146 = vsel %vm1143, %v1139, %v1140
    %v1147 = vsel %vm1143, %v1142, %v1139
    %vm1148 = vcmp.lt.f32.partialorder %v101, 15.0
    %vm1149 = vcmp.lt.f32.partialorder %v102, 15.0
    %vm1150 = vcmp.lt.f32.partialorder %v103, 15.0
    %vm1151 = vcmp.lt.f32.partialorder %v104, 15.0
    %v1152 = vsel %vm1148, 1, 0
    %v1153 = vsel %vm1149, 1, 0
    %v1154 = vsel %vm1150, 1, 0
    %v1155 = vsel %vm1151, 1, 0
    %v1156 = vcvt.s32.f32 %v1152
    %v1157 = vcvt.s32.f32 %v1153
    %v1158 = vcvt.s32.f32 %v1154
    %v1159 = vcvt.s32.f32 %v1155
    %1161 = vset.pattern.permute.xlu0 0
    %1162 = vperm.xlu0 %1161, %v1156
    %v1163 = vpop.permute.xlu0 %1162
    %1166 = vset.pattern.permute.xlu0 0
    %1167 = vperm.xlu0 %1166, %v1157
    %v1168 = vpop.permute.xlu0 %1167
    %1171 = vset.pattern.permute.xlu0 0
    %1172 = vperm.xlu0 %1171, %v1158
    %v1173 = vpop.permute.xlu0 %1172
    %1176 = vset.pattern.permute.xlu0 0
    %1177 = vperm.xlu0 %1176, %v1159
    %v1178 = vpop.permute.xlu0 %1177
    %v1180 = vmul.f32 %v1146, %v1163
    %v1181 = vmul.f32 %v1145, %v1168
    %v1182 = vmul.f32 %v1144, %v1173
    %v1183 = vmul.f32 %v1147, %v1178
    %v1184 = vpack.c.bf16 %v1181, %v1180
    %v1185 = vpack.c.bf16 %v1183, %v1182
    %s1186 = scalar_lea.vmem %s9, 256
    %v1187 = vld [vmem:[%s1186] sm:$0xff]
    %v1188 = vld [vmem:[%s1186 + $0x8] sm:$0xff]
    %v1189 = vld [vmem:[%s1186 + $0x10] sm:$0xff]
    %v1190 = vld [vmem:[%s1186 + $0x18] sm:$0xff]
    %v1191 = vld [vmem:[%s1186 + $0x20] sm:$0xff]
    %v1192 = vld [vmem:[%s1186 + $0x28] sm:$0xff]
    %v1193 = vld [vmem:[%s1186 + $0x30] sm:$0xff]
    %v1194 = vld [vmem:[%s1186 + $0x38] sm:$0xff]
    %v1195 = vld [vmem:[%s1186 + $0x40] sm:$0xff]
    %v1196 = vld [vmem:[%s1186 + $0x48] sm:$0xff]
    %v1197 = vld [vmem:[%s1186 + $0x50] sm:$0xff]
    %v1198 = vld [vmem:[%s1186 + $0x58] sm:$0xff]
    %v1199 = vld [vmem:[%s1186 + $0x60] sm:$0xff]
    %v1200 = vld [vmem:[%s1186 + $0x68] sm:$0xff]
    %v1201 = vld [vmem:[%s1186 + $0x70] sm:$0xff]
    %v1202 = vld [vmem:[%s1186 + $0x78] sm:$0xff]
    %v1219 = vunpack.c.l.b16 %v1187
    %v1220 = vunpack.c.h.b16 %v1187
    %v1221 = vunpack.c.l.b16 %v1188
    %v1222 = vunpack.c.h.b16 %v1188
    %v1223 = vunpack.c.l.b16 %v1189
    %v1224 = vunpack.c.h.b16 %v1189
    %v1225 = vunpack.c.l.b16 %v1190
    %v1226 = vunpack.c.h.b16 %v1190
    %v1227 = vunpack.c.l.b16 %v1191
    %v1228 = vunpack.c.h.b16 %v1191
    %v1229 = vunpack.c.l.b16 %v1192
    %v1230 = vunpack.c.h.b16 %v1192
    %v1231 = vunpack.c.l.b16 %v1193
    %v1232 = vunpack.c.h.b16 %v1193
    %v1233 = vunpack.c.l.b16 %v1194
    %v1234 = vunpack.c.h.b16 %v1194
    %v1235 = vunpack.c.l.b16 %v1195
    %v1236 = vunpack.c.h.b16 %v1195
    %v1237 = vunpack.c.l.b16 %v1196
    %v1238 = vunpack.c.h.b16 %v1196
    %v1239 = vunpack.c.l.b16 %v1197
    %v1240 = vunpack.c.h.b16 %v1197
    %v1241 = vunpack.c.l.b16 %v1198
    %v1242 = vunpack.c.h.b16 %v1198
    %v1243 = vunpack.c.l.b16 %v1199
    %v1244 = vunpack.c.h.b16 %v1199
    %v1245 = vunpack.c.l.b16 %v1200
    %v1246 = vunpack.c.h.b16 %v1200
    %v1247 = vunpack.c.l.b16 %v1201
    %v1248 = vunpack.c.h.b16 %v1201
    %v1249 = vunpack.c.l.b16 %v1202
    %v1250 = vunpack.c.h.b16 %v1202
    %v1251 = vpack.c.b16 %v1221, %v1219
    %v1252 = vpack.c.b16 %v1222, %v1220
    %v1253 = vpack.c.b16 %v1225, %v1223
    %v1254 = vpack.c.b16 %v1226, %v1224
    %v1255 = vpack.c.b16 %v1229, %v1227
    %v1256 = vpack.c.b16 %v1230, %v1228
    %v1257 = vpack.c.b16 %v1233, %v1231
    %v1258 = vpack.c.b16 %v1234, %v1232
    %v1259 = vpack.c.b16 %v1237, %v1235
    %v1260 = vpack.c.b16 %v1238, %v1236
    %v1261 = vpack.c.b16 %v1241, %v1239
    %v1262 = vpack.c.b16 %v1242, %v1240
    %v1263 = vpack.c.b16 %v1245, %v1243
    %v1264 = vpack.c.b16 %v1246, %v1244
    %v1265 = vpack.c.b16 %v1249, %v1247
    %v1266 = vpack.c.b16 %v1250, %v1248
    %1283 = vmatprep.subr.bf16.mxu0 %v1266
    %1284 = vmatpush1.bf16.msra.mxu0 %v1265
    %1285 = vmatprep.subr.bf16.mxu0 %v1264
    %1286 = vmatpush1.bf16.msra.mxu0 %v1263
    %1287 = vmatprep.subr.bf16.mxu0 %v1262
    %1288 = vmatpush1.bf16.msra.mxu0 %v1261
    %1289 = vmatprep.subr.bf16.mxu0 %v1260
    %1290 = vmatpush1.bf16.msra.mxu0 %v1259
    %1291 = vmatprep.subr.bf16.mxu0 %v1258
    %1292 = vmatpush1.bf16.msra.mxu0 %v1257
    %1293 = vmatprep.subr.bf16.mxu0 %v1256
    %1294 = vmatpush1.bf16.msra.mxu0 %v1255
    %1295 = vmatprep.subr.bf16.mxu0 %v1254
    %1296 = vmatpush1.bf16.msra.mxu0 %v1253
    %1297 = vmatprep.subr.bf16.mxu0 %v1252
    %1298 = vmatpush1.bf16.msra.mxu0 %v1251
    %1299 = vmatprep.subr.bf16.mxu0 0
    %1300 = vmatpush2.bf16.msra.mxu0 0
    %1301 = vmatprep.subr.bf16.mxu0 0
    %1302 = vmatpush2.bf16.msra.mxu0 0
    %1303 = vmatprep.subr.bf16.mxu0 0
    %1304 = vmatpush2.bf16.msra.mxu0 0
    %1305 = vmatprep.subr.bf16.mxu0 0
    %1306 = vmatpush2.bf16.msra.mxu0 0
    %1307 = vmatprep.subr.bf16.mxu0 0
    %1308 = vmatpush2.bf16.msra.mxu0 0
    %1309 = vmatprep.subr.bf16.mxu0 0
    %1310 = vmatpush2.bf16.msra.mxu0 0
    %1311 = vmatprep.subr.bf16.mxu0 0
    %1312 = vmatpush2.bf16.msra.mxu0 0
    %1313 = vmatprep.subr.bf16.mxu0 0
    %1314 = vmatpush2.bf16.msra.mxu0 0
    %1315 = vmatprep.mubr.bf16.mxu0 0
    %1316 = vmatmul.mubr.bf16.gmra.mxu0 %v1184
    %v1317 = vpop.f32.mrf.mxu0
    %v1318 = vadd.f32 0.0, %v1317
    %v1319 = vpop.f32.mrf.mxu0
    %v1320 = vadd.f32 0.0, %v1319
    %v1321 = vpop.f32.mrf.mxu0
    %v1322 = vadd.f32 0.0, %v1321
    %v1323 = vpop.f32.mrf.mxu0
    %v1324 = vadd.f32 0.0, %v1323
    %1325 = vmatprep.mubr.bf16.mxu0 0
    %1326 = vmatmul.mubr.bf16.gmra.mxu0 %v1185
    %v1327 = vpop.f32.mrf.mxu0
    %v1328 = vadd.f32 0.0, %v1327
    %v1329 = vpop.f32.mrf.mxu0
    %v1330 = vadd.f32 0.0, %v1329
    %v1331 = vpop.f32.mrf.mxu0
    %v1332 = vadd.f32 0.0, %v1331
    %v1333 = vpop.f32.mrf.mxu0
    %v1334 = vadd.f32 0.0, %v1333
    %1335 = vdwg.mxu0
    %v1336 = vadd.f32 %v1121, %v1318
    %v1337 = vadd.f32 %v1123, %v1320
    %v1338 = vadd.f32 %v1125, %v1322
    %v1339 = vadd.f32 %v1127, %v1324
    %v1340 = vadd.f32 %v1131, %v1328
    %v1341 = vadd.f32 %v1133, %v1330
    %v1342 = vadd.f32 %v1135, %v1332
    %v1343 = vadd.f32 %v1137, %v1334
    %v1345 = vlaneseq
    %v1346 = vshrl.u32 %v1345, 7
    %v1347 = vsub.s32 0, %v1346
    %v1348 = vrot.slane %v788, %v1347
    %v1349 = vlaneseq
    %v1350 = vshrl.u32 %v1349, 7
    %v1351 = vsub.s32 1, %v1350
    %v1352 = vrot.slane %v788, %v1351
    %v1355 = vadd.f32 %v1336, %v1348
    %v1356 = vadd.f32 %v1337, %v1352
    %v1357 = vadd.f32 %v1338, %v1348
    %v1358 = vadd.f32 %v1339, %v1352
    %v1359 = vadd.f32 %v1340, %v1348
    %v1360 = vadd.f32 %v1341, %v1352
    %v1361 = vadd.f32 %v1342, %v1348
    %v1362 = vadd.f32 %v1343, %v1352
    %v1363 = vld [vmem:[%s1] sm:$0xf]
    %v1366 = vunpack.c.l.s4 1983009808
    %v1367 = vunpack.c.0.s8 %v1366
    %v1368 = vlaneseq
    %v1369 = vshrl.u32 %v1368, 7
    %v1370 = vsub.s32 %v1367, %v1369
    %v1371 = vrot.slane %v1363, %v1370
    %v1372 = vcombine.high %v1371, %v1371
    %v1373 = vsel %vm506, %v1371, 0
    %v1375 = vsel %vm506, %v1372, 0
    %1377 = vmatprep.subr.mxu0 0.0
    %1378 = vmatpush1.msra.mxu0 0.0
    %1379 = vmatprep.subr.mxu0 0.0
    %1380 = vmatpush1.msra.mxu0 0.0
    %1381 = vmatprep.subr.mxu0 0.0
    %1382 = vmatpush1.msra.mxu0 0.0
    %1383 = vmatprep.subr.mxu0 0.0
    %1384 = vmatpush1.msra.mxu0 0.0
    %1385 = vmatprep.subr.mxu0 0.0
    %1386 = vmatpush1.msra.mxu0 0.0
    %1387 = vmatprep.subr.mxu0 0.0
    %1388 = vmatpush1.msra.mxu0 0.0
    %1389 = vmatprep.subr.mxu0 0.0
    %1390 = vmatpush1.msra.mxu0 0.0
    %1391 = vmatprep.subr.mxu0 0.0
    %1392 = vmatpush1.msra.mxu0 0.0
    %1393 = vmatprep.subr.mxu0 0.0
    %1394 = vmatpush1.msra.mxu0 0.0
    %1395 = vmatprep.subr.mxu0 0.0
    %1396 = vmatpush1.msra.mxu0 0.0
    %1397 = vmatprep.subr.mxu0 0.0
    %1398 = vmatpush1.msra.mxu0 0.0
    %1399 = vmatprep.subr.mxu0 0.0
    %1400 = vmatpush1.msra.mxu0 0.0
    %1401 = vmatprep.subr.mxu0 0.0
    %1402 = vmatpush1.msra.mxu0 0.0
    %1403 = vmatprep.subr.mxu0 0.0
    %1404 = vmatpush1.msra.mxu0 0.0
    %1405 = vmatprep.subr.mxu0 0.0
    %1406 = vmatpush1.msra.mxu0 0.0
    %1407 = vmatprep.subr.mxu0 %v1375
    %1408 = vmatpush1.msra.mxu0 %v1373
    %1409 = vmatprep.subr.mxu0 0.0
    %1410 = vmatpush2.msra.mxu0 0.0
    %1411 = vmatprep.subr.mxu0 0.0
    %1412 = vmatpush2.msra.mxu0 0.0
    %1413 = vmatprep.subr.mxu0 0.0
    %1414 = vmatpush2.msra.mxu0 0.0
    %1415 = vmatprep.subr.mxu0 0.0
    %1416 = vmatpush2.msra.mxu0 0.0
    %1417 = vmatprep.subr.mxu0 0.0
    %1418 = vmatpush2.msra.mxu0 0.0
    %1419 = vmatprep.subr.mxu0 0.0
    %1420 = vmatpush2.msra.mxu0 0.0
    %1421 = vmatprep.subr.mxu0 0.0
    %1422 = vmatpush2.msra.mxu0 0.0
    %1423 = vmatprep.subr.mxu0 0.0
    %1424 = vmatpush2.msra.mxu0 0.0
    %1425 = vmatprep.subr.mxu0 0.0
    %1426 = vmatpush2.msra.mxu0 0.0
    %1427 = vmatprep.subr.mxu0 0.0
    %1428 = vmatpush2.msra.mxu0 0.0
    %1429 = vmatprep.subr.mxu0 0.0
    %1430 = vmatpush2.msra.mxu0 0.0
    %1431 = vmatprep.subr.mxu0 0.0
    %1432 = vmatpush2.msra.mxu0 0.0
    %1433 = vmatprep.subr.mxu0 0.0
    %1434 = vmatpush2.msra.mxu0 0.0
    %1435 = vmatprep.subr.mxu0 0.0
    %1436 = vmatpush2.msra.mxu0 0.0
    %1437 = vmatprep.subr.mxu0 0.0
    %1438 = vmatpush2.msra.mxu0 0.0
    %1439 = vmatprep.subr.mxu0 0.0
    %1440 = vmatpush2.msra.mxu0 0.0
    %1441 = vmatprep.mubr.f32.mxu0 0.0
    %1442 = vmatmul.mubr.f32.gmra.mxu0 %v495
    %v1443 = vpop.f32.mrf.mxu0
    %v1444 = vadd.f32 0.0, %v1443
    %v1445 = vpop.f32.mrf.mxu0
    %v1446 = vadd.f32 0.0, %v1445
    %1447 = vmatprep.mubr.f32.mxu0 0.0
    %1448 = vmatmul.mubr.f32.gmra.mxu0 %v498
    %v1449 = vpop.f32.mrf.mxu0
    %v1450 = vadd.f32 0.0, %v1449
    %v1451 = vpop.f32.mrf.mxu0
    %v1452 = vadd.f32 0.0, %v1451
    %1453 = vmatprep.mubr.f32.mxu0 0.0
    %1454 = vmatmul.mubr.f32.gmra.mxu0 %v501
    %v1455 = vpop.f32.mrf.mxu0
    %v1456 = vadd.f32 0.0, %v1455
    %v1457 = vpop.f32.mrf.mxu0
    %v1458 = vadd.f32 0.0, %v1457
    %1459 = vmatprep.mubr.f32.mxu0 0.0
    %1460 = vmatmul.mubr.f32.gmra.mxu0 %v504
    %v1461 = vpop.f32.mrf.mxu0
    %v1462 = vadd.f32 0.0, %v1461
    %v1463 = vpop.f32.mrf.mxu0
    %v1464 = vadd.f32 0.0, %v1463
    %1465 = vdwg.mxu0
    %v1466 = vadd.f32 %v1355, %v1444
    %v1467 = vadd.f32 %v1356, %v1446
    %v1468 = vadd.f32 %v1357, %v1450
    %v1469 = vadd.f32 %v1358, %v1452
    %v1470 = vadd.f32 %v1359, %v1456
    %v1471 = vadd.f32 %v1360, %v1458
    %v1472 = vadd.f32 %v1361, %v1462
    %v1473 = vadd.f32 %v1362, %v1464
    %v1474 = vld [vmem:[%s14] sm:$0xff]
    %v1475 = vld [vmem:[%s14 + $0x8] sm:$0xff]
    %v1476 = vld [vmem:[%s14 + $0x10] sm:$0xff]
    %v1477 = vld [vmem:[%s14 + $0x18] sm:$0xff]
    %v1478 = vld [vmem:[%s14 + $0x20] sm:$0xff]
    %v1479 = vld [vmem:[%s14 + $0x28] sm:$0xff]
    %v1480 = vld [vmem:[%s14 + $0x30] sm:$0xff]
    %v1481 = vld [vmem:[%s14 + $0x38] sm:$0xff]
    %v1482 = vld [vmem:[%s14 + $0x40] sm:$0xff]
    %v1483 = vld [vmem:[%s14 + $0x48] sm:$0xff]
    %v1484 = vld [vmem:[%s14 + $0x50] sm:$0xff]
    %v1485 = vld [vmem:[%s14 + $0x58] sm:$0xff]
    %v1486 = vld [vmem:[%s14 + $0x60] sm:$0xff]
    %v1487 = vld [vmem:[%s14 + $0x68] sm:$0xff]
    %v1488 = vld [vmem:[%s14 + $0x70] sm:$0xff]
    %v1489 = vld [vmem:[%s14 + $0x78] sm:$0xff]
    %v1490 = vld [vmem:[%s14 + $0x80] sm:$0xff]
    %v1491 = vld [vmem:[%s14 + $0x88] sm:$0xff]
    %v1492 = vld [vmem:[%s14 + $0x90] sm:$0xff]
    %v1493 = vld [vmem:[%s14 + $0x98] sm:$0xff]
    %v1494 = vld [vmem:[%s14 + $0xa0] sm:$0xff]
    %v1495 = vld [vmem:[%s14 + $0xa8] sm:$0xff]
    %v1496 = vld [vmem:[%s14 + $0xb0] sm:$0xff]
    %v1497 = vld [vmem:[%s14 + $0xb8] sm:$0xff]
    %v1498 = vld [vmem:[%s14 + $0xc0] sm:$0xff]
    %v1499 = vld [vmem:[%s14 + $0xc8] sm:$0xff]
    %v1500 = vld [vmem:[%s14 + $0xd0] sm:$0xff]
    %v1501 = vld [vmem:[%s14 + $0xd8] sm:$0xff]
    %v1502 = vld [vmem:[%s14 + $0xe0] sm:$0xff]
    %v1503 = vld [vmem:[%s14 + $0xe8] sm:$0xff]
    %v1504 = vld [vmem:[%s14 + $0xf0] sm:$0xff]
    %v1505 = vld [vmem:[%s14 + $0xf8] sm:$0xff]
    %v1506 = vld [vmem:[%s13] sm:$0xff]
    %v1507 = vld [vmem:[%s13 + $0x8] sm:$0xff]
    %v1508 = vld [vmem:[%s11] sm:$0x3]
    %v1509 = vld [vmem:[%s12] sm:$0x3]
    %1510 = vmatprep.subr.mxu0 0.0
    %1511 = vmatpush1.msra.mxu0 0.0
    %1512 = vmatprep.subr.mxu0 0.0
    %1513 = vmatpush1.msra.mxu0 0.0
    %1514 = vmatprep.subr.mxu0 0.0
    %1515 = vmatpush1.msra.mxu0 0.0
    %1516 = vmatprep.subr.mxu0 0.0
    %1517 = vmatpush1.msra.mxu0 0.0
    %1518 = vmatprep.subr.mxu0 0.0
    %1519 = vmatpush1.msra.mxu0 0.0
    %1520 = vmatprep.subr.mxu0 0.0
    %1521 = vmatpush1.msra.mxu0 0.0
    %1522 = vmatprep.subr.mxu0 0.0
    %1523 = vmatpush1.msra.mxu0 0.0
    %1524 = vmatprep.subr.mxu0 0.0
    %1525 = vmatpush1.msra.mxu0 0.0
    %1526 = vmatprep.subr.mxu0 0.0
    %1527 = vmatpush1.msra.mxu0 0.0
    %1528 = vmatprep.subr.mxu0 0.0
    %1529 = vmatpush1.msra.mxu0 0.0
    %1530 = vmatprep.subr.mxu0 0.0
    %1531 = vmatpush1.msra.mxu0 0.0
    %1532 = vmatprep.subr.mxu0 0.0
    %1533 = vmatpush1.msra.mxu0 0.0
    %1534 = vmatprep.subr.mxu0 %v1473
    %1535 = vmatpush1.msra.mxu0 %v1472
    %1536 = vmatprep.subr.mxu0 %v1471
    %1537 = vmatpush1.msra.mxu0 %v1470
    %1538 = vmatprep.subr.mxu0 %v1469
    %1539 = vmatpush1.msra.mxu0 %v1468
    %1540 = vmatprep.subr.mxu0 %v1467
    %1541 = vmatpush1.msra.mxu0 %v1466
    %1542 = vmatprep.subr.mxu0 0.0
    %1543 = vmatpush2.msra.mxu0 0.0
    %1544 = vmatprep.subr.mxu0 0.0
    %1545 = vmatpush2.msra.mxu0 0.0
    %1546 = vmatprep.subr.mxu0 0.0
    %1547 = vmatpush2.msra.mxu0 0.0
    %1548 = vmatprep.subr.mxu0 0.0
    %1549 = vmatpush2.msra.mxu0 0.0
    %1550 = vmatprep.subr.mxu0 0.0
    %1551 = vmatpush2.msra.mxu0 0.0
    %1552 = vmatprep.subr.mxu0 0.0
    %1553 = vmatpush2.msra.mxu0 0.0
    %1554 = vmatprep.subr.mxu0 0.0
    %1555 = vmatpush2.msra.mxu0 0.0
    %1556 = vmatprep.subr.mxu0 0.0
    %1557 = vmatpush2.msra.mxu0 0.0
    %1558 = vmatprep.subr.mxu0 0.0
    %1559 = vmatpush2.msra.mxu0 0.0
    %1560 = vmatprep.subr.mxu0 0.0
    %1561 = vmatpush2.msra.mxu0 0.0
    %1562 = vmatprep.subr.mxu0 0.0
    %1563 = vmatpush2.msra.mxu0 0.0
    %1564 = vmatprep.subr.mxu0 0.0
    %1565 = vmatpush2.msra.mxu0 0.0
    %1566 = vmatprep.subr.mxu0 0.0
    %1567 = vmatpush2.msra.mxu0 0.0
    %1568 = vmatprep.subr.mxu0 0.0
    %1569 = vmatpush2.msra.mxu0 0.0
    %1570 = vmatprep.subr.mxu0 0.0
    %1571 = vmatpush2.msra.mxu0 0.0
    %1572 = vmatprep.subr.mxu0 0.0
    %1573 = vmatpush2.msra.mxu0 0.0
    %1574 = vmatprep.mubr.f32.mxu0 0.0
    %1575 = vmatmul.mubr.f32.gmra.mxu0 %v126
    %v1576 = vpop.f32.mrf.mxu0
    %v1577 = vadd.f32 0.0, %v1576
    %v1578 = vpop.f32.mrf.mxu0
    %v1579 = vadd.f32 0.0, %v1578
    %1580 = vdwg.mxu0
    %v1581 = vmul.f32 %v1466, %v1466
    %v1582 = vmul.f32 %v1467, %v1467
    %v1583 = vmul.f32 %v1468, %v1468
    %v1584 = vmul.f32 %v1469, %v1469
    %v1585 = vmul.f32 %v1470, %v1470
    %v1586 = vmul.f32 %v1471, %v1471
    %v1587 = vmul.f32 %v1472, %v1472
    %v1588 = vmul.f32 %v1473, %v1473
    %1589 = vmatprep.subr.mxu0 0.0
    %1590 = vmatpush1.msra.mxu0 0.0
    %1591 = vmatprep.subr.mxu0 0.0
    %1592 = vmatpush1.msra.mxu0 0.0
    %1593 = vmatprep.subr.mxu0 0.0
    %1594 = vmatpush1.msra.mxu0 0.0
    %1595 = vmatprep.subr.mxu0 0.0
    %1596 = vmatpush1.msra.mxu0 0.0
    %1597 = vmatprep.subr.mxu0 0.0
    %1598 = vmatpush1.msra.mxu0 0.0
    %1599 = vmatprep.subr.mxu0 0.0
    %1600 = vmatpush1.msra.mxu0 0.0
    %1601 = vmatprep.subr.mxu0 0.0
    %1602 = vmatpush1.msra.mxu0 0.0
    %1603 = vmatprep.subr.mxu0 0.0
    %1604 = vmatpush1.msra.mxu0 0.0
    %1605 = vmatprep.subr.mxu0 0.0
    %1606 = vmatpush1.msra.mxu0 0.0
    %1607 = vmatprep.subr.mxu0 0.0
    %1608 = vmatpush1.msra.mxu0 0.0
    %1609 = vmatprep.subr.mxu0 0.0
    %1610 = vmatpush1.msra.mxu0 0.0
    %1611 = vmatprep.subr.mxu0 0.0
    %1612 = vmatpush1.msra.mxu0 0.0
    %1613 = vmatprep.subr.mxu0 %v1588
    %1614 = vmatpush1.msra.mxu0 %v1587
    %1615 = vmatprep.subr.mxu0 %v1586
    %1616 = vmatpush1.msra.mxu0 %v1585
    %1617 = vmatprep.subr.mxu0 %v1584
    %1618 = vmatpush1.msra.mxu0 %v1583
    %1619 = vmatprep.subr.mxu0 %v1582
    %1620 = vmatpush1.msra.mxu0 %v1581
    %1621 = vmatprep.subr.mxu0 0.0
    %1622 = vmatpush2.msra.mxu0 0.0
    %1623 = vmatprep.subr.mxu0 0.0
    %1624 = vmatpush2.msra.mxu0 0.0
    %1625 = vmatprep.subr.mxu0 0.0
    %1626 = vmatpush2.msra.mxu0 0.0
    %1627 = vmatprep.subr.mxu0 0.0
    %1628 = vmatpush2.msra.mxu0 0.0
    %1629 = vmatprep.subr.mxu0 0.0
    %1630 = vmatpush2.msra.mxu0 0.0
    %1631 = vmatprep.subr.mxu0 0.0
    %1632 = vmatpush2.msra.mxu0 0.0
    %1633 = vmatprep.subr.mxu0 0.0
    %1634 = vmatpush2.msra.mxu0 0.0
    %1635 = vmatprep.subr.mxu0 0.0
    %1636 = vmatpush2.msra.mxu0 0.0
    %1637 = vmatprep.subr.mxu0 0.0
    %1638 = vmatpush2.msra.mxu0 0.0
    %1639 = vmatprep.subr.mxu0 0.0
    %1640 = vmatpush2.msra.mxu0 0.0
    %1641 = vmatprep.subr.mxu0 0.0
    %1642 = vmatpush2.msra.mxu0 0.0
    %1643 = vmatprep.subr.mxu0 0.0
    %1644 = vmatpush2.msra.mxu0 0.0
    %1645 = vmatprep.subr.mxu0 0.0
    %1646 = vmatpush2.msra.mxu0 0.0
    %1647 = vmatprep.subr.mxu0 0.0
    %1648 = vmatpush2.msra.mxu0 0.0
    %1649 = vmatprep.subr.mxu0 0.0
    %1650 = vmatpush2.msra.mxu0 0.0
    %1651 = vmatprep.subr.mxu0 0.0
    %1652 = vmatpush2.msra.mxu0 0.0
    %1653 = vmatprep.mubr.f32.mxu0 0.0
    %1654 = vmatmul.mubr.f32.gmra.mxu0 %v126
    %v1655 = vpop.f32.mrf.mxu0
    %v1656 = vadd.f32 0.0, %v1655
    %v1657 = vpop.f32.mrf.mxu0
    %v1658 = vadd.f32 0.0, %v1657
    %1659 = vdwg.mxu0
    %1660 = vmatprep.subr.mxu0 0.0
    %1661 = vmatpush1.msra.mxu0 %v1489
    %1662 = vmatprep.subr.mxu0 0.0
    %1663 = vmatpush1.msra.mxu0 %v1488
    %1664 = vmatprep.subr.mxu0 0.0
    %1665 = vmatpush1.msra.mxu0 %v1487
    %1666 = vmatprep.subr.mxu0 0.0
    %1667 = vmatpush1.msra.mxu0 %v1486
    %1668 = vmatprep.subr.mxu0 0.0
    %1669 = vmatpush1.msra.mxu0 %v1485
    %1670 = vmatprep.subr.mxu0 0.0
    %1671 = vmatpush1.msra.mxu0 %v1484
    %1672 = vmatprep.subr.mxu0 0.0
    %1673 = vmatpush1.msra.mxu0 %v1483
    %1674 = vmatprep.subr.mxu0 0.0
    %1675 = vmatpush1.msra.mxu0 %v1482
    %1676 = vmatprep.subr.mxu0 0.0
    %1677 = vmatpush1.msra.mxu0 %v1481
    %1678 = vmatprep.subr.mxu0 0.0
    %1679 = vmatpush1.msra.mxu0 %v1480
    %1680 = vmatprep.subr.mxu0 0.0
    %1681 = vmatpush1.msra.mxu0 %v1479
    %1682 = vmatprep.subr.mxu0 0.0
    %1683 = vmatpush1.msra.mxu0 %v1478
    %1684 = vmatprep.subr.mxu0 0.0
    %1685 = vmatpush1.msra.mxu0 %v1477
    %1686 = vmatprep.subr.mxu0 0.0
    %1687 = vmatpush1.msra.mxu0 %v1476
    %1688 = vmatprep.subr.mxu0 0.0
    %1689 = vmatpush1.msra.mxu0 %v1475
    %1690 = vmatprep.subr.mxu0 0.0
    %1691 = vmatpush1.msra.mxu0 %v1474
    %1692 = vmatprep.subr.mxu0 0.0
    %1693 = vmatpush2.msra.mxu0 %v1505
    %1694 = vmatprep.subr.mxu0 0.0
    %1695 = vmatpush2.msra.mxu0 %v1504
    %1696 = vmatprep.subr.mxu0 0.0
    %1697 = vmatpush2.msra.mxu0 %v1503
    %1698 = vmatprep.subr.mxu0 0.0
    %1699 = vmatpush2.msra.mxu0 %v1502
    %1700 = vmatprep.subr.mxu0 0.0
    %1701 = vmatpush2.msra.mxu0 %v1501
    %1702 = vmatprep.subr.mxu0 0.0
    %1703 = vmatpush2.msra.mxu0 %v1500
    %1704 = vmatprep.subr.mxu0 0.0
    %1705 = vmatpush2.msra.mxu0 %v1499
    %1706 = vmatprep.subr.mxu0 0.0
    %1707 = vmatpush2.msra.mxu0 %v1498
    %1708 = vmatprep.subr.mxu0 0.0
    %1709 = vmatpush2.msra.mxu0 %v1497
    %1710 = vmatprep.subr.mxu0 0.0
    %1711 = vmatpush2.msra.mxu0 %v1496
    %1712 = vmatprep.subr.mxu0 0.0
    %1713 = vmatpush2.msra.mxu0 %v1495
    %1714 = vmatprep.subr.mxu0 0.0
    %1715 = vmatpush2.msra.mxu0 %v1494
    %1716 = vmatprep.subr.mxu0 0.0
    %1717 = vmatpush2.msra.mxu0 %v1493
    %1718 = vmatprep.subr.mxu0 0.0
    %1719 = vmatpush2.msra.mxu0 %v1492
    %1720 = vmatprep.subr.mxu0 0.0
    %1721 = vmatpush2.msra.mxu0 %v1491
    %1722 = vmatprep.subr.mxu0 0.0
    %1723 = vmatpush2.msra.mxu0 %v1490
    %1724 = vmatprep.mubr.f32.mxu0 %v1579
    %1725 = vmatmul.mubr.f32.gmra.mxu0 %v1577
    %v1726 = vpop.f32.mrf.mxu0
    %v1727 = vadd.f32 0.0, %v1726
    %v1728 = vpop.f32.mrf.mxu0
    %1729 = vdwg.mxu0
    %v1730 = vmul.f32 %v1727, 0.001953125
    %1731 = vmatprep.subr.mxu0 0.0
    %1732 = vmatpush1.msra.mxu0 %v1489
    %1733 = vmatprep.subr.mxu0 0.0
    %1734 = vmatpush1.msra.mxu0 %v1488
    %1735 = vmatprep.subr.mxu0 0.0
    %1736 = vmatpush1.msra.mxu0 %v1487
    %1737 = vmatprep.subr.mxu0 0.0
    %1738 = vmatpush1.msra.mxu0 %v1486
    %1739 = vmatprep.subr.mxu0 0.0
    %1740 = vmatpush1.msra.mxu0 %v1485
    %1741 = vmatprep.subr.mxu0 0.0
    %1742 = vmatpush1.msra.mxu0 %v1484
    %1743 = vmatprep.subr.mxu0 0.0
    %1744 = vmatpush1.msra.mxu0 %v1483
    %1745 = vmatprep.subr.mxu0 0.0
    %1746 = vmatpush1.msra.mxu0 %v1482
    %1747 = vmatprep.subr.mxu0 0.0
    %1748 = vmatpush1.msra.mxu0 %v1481
    %1749 = vmatprep.subr.mxu0 0.0
    %1750 = vmatpush1.msra.mxu0 %v1480
    %1751 = vmatprep.subr.mxu0 0.0
    %1752 = vmatpush1.msra.mxu0 %v1479
    %1753 = vmatprep.subr.mxu0 0.0
    %1754 = vmatpush1.msra.mxu0 %v1478
    %1755 = vmatprep.subr.mxu0 0.0
    %1756 = vmatpush1.msra.mxu0 %v1477
    %1757 = vmatprep.subr.mxu0 0.0
    %1758 = vmatpush1.msra.mxu0 %v1476
    %1759 = vmatprep.subr.mxu0 0.0
    %1760 = vmatpush1.msra.mxu0 %v1475
    %1761 = vmatprep.subr.mxu0 0.0
    %1762 = vmatpush1.msra.mxu0 %v1474
    %1763 = vmatprep.subr.mxu0 0.0
    %1764 = vmatpush2.msra.mxu0 %v1505
    %1765 = vmatprep.subr.mxu0 0.0
    %1766 = vmatpush2.msra.mxu0 %v1504
    %1767 = vmatprep.subr.mxu0 0.0
    %1768 = vmatpush2.msra.mxu0 %v1503
    %1769 = vmatprep.subr.mxu0 0.0
    %1770 = vmatpush2.msra.mxu0 %v1502
    %1771 = vmatprep.subr.mxu0 0.0
    %1772 = vmatpush2.msra.mxu0 %v1501
    %1773 = vmatprep.subr.mxu0 0.0
    %1774 = vmatpush2.msra.mxu0 %v1500
    %1775 = vmatprep.subr.mxu0 0.0
    %1776 = vmatpush2.msra.mxu0 %v1499
    %1777 = vmatprep.subr.mxu0 0.0
    %1778 = vmatpush2.msra.mxu0 %v1498
    %1779 = vmatprep.subr.mxu0 0.0
    %1780 = vmatpush2.msra.mxu0 %v1497
    %1781 = vmatprep.subr.mxu0 0.0
    %1782 = vmatpush2.msra.mxu0 %v1496
    %1783 = vmatprep.subr.mxu0 0.0
    %1784 = vmatpush2.msra.mxu0 %v1495
    %1785 = vmatprep.subr.mxu0 0.0
    %1786 = vmatpush2.msra.mxu0 %v1494
    %1787 = vmatprep.subr.mxu0 0.0
    %1788 = vmatpush2.msra.mxu0 %v1493
    %1789 = vmatprep.subr.mxu0 0.0
    %1790 = vmatpush2.msra.mxu0 %v1492
    %1791 = vmatprep.subr.mxu0 0.0
    %1792 = vmatpush2.msra.mxu0 %v1491
    %1793 = vmatprep.subr.mxu0 0.0
    %1794 = vmatpush2.msra.mxu0 %v1490
    %1795 = vmatprep.mubr.f32.mxu0 %v1658
    %1796 = vmatmul.mubr.f32.gmra.mxu0 %v1656
    %v1797 = vpop.f32.mrf.mxu0
    %v1798 = vadd.f32 0.0, %v1797
    %v1799 = vpop.f32.mrf.mxu0
    %1800 = vdwg.mxu0
    %v1801 = vmul.f32 %v1798, 0.001953125
    %v1802 = vmul.f32 %v1730, %v1730
    %v1803 = vsub.f32 %v1801, %v1802
    %v1804 = vmax.f32 %v1803, 0.0
    %v1805 = vadd.f32 %v1804, 1e-05
    %v1806 = vrsqrt.pop %v1805
    %v1808 = vsel %vm419, %v1730, 0
    %1810 = vmatprep.subr.mxu0 0.0
    %1811 = vmatpush1.msra.mxu0 0.0
    %1812 = vmatprep.subr.mxu0 0.0
    %1813 = vmatpush1.msra.mxu0 0.0
    %1814 = vmatprep.subr.mxu0 0.0
    %1815 = vmatpush1.msra.mxu0 0.0
    %1816 = vmatprep.subr.mxu0 0.0
    %1817 = vmatpush1.msra.mxu0 0.0
    %1818 = vmatprep.subr.mxu0 0.0
    %1819 = vmatpush1.msra.mxu0 0.0
    %1820 = vmatprep.subr.mxu0 0.0
    %1821 = vmatpush1.msra.mxu0 0.0
    %1822 = vmatprep.subr.mxu0 0.0
    %1823 = vmatpush1.msra.mxu0 0.0
    %1824 = vmatprep.subr.mxu0 0.0
    %1825 = vmatpush1.msra.mxu0 0.0
    %1826 = vmatprep.subr.mxu0 0.0
    %1827 = vmatpush1.msra.mxu0 0.0
    %1828 = vmatprep.subr.mxu0 0.0
    %1829 = vmatpush1.msra.mxu0 0.0
    %1830 = vmatprep.subr.mxu0 0.0
    %1831 = vmatpush1.msra.mxu0 0.0
    %1832 = vmatprep.subr.mxu0 0.0
    %1833 = vmatpush1.msra.mxu0 0.0
    %1834 = vmatprep.subr.mxu0 0.0
    %1835 = vmatpush1.msra.mxu0 0.0
    %1836 = vmatprep.subr.mxu0 0.0
    %1837 = vmatpush1.msra.mxu0 0.0
    %1838 = vmatprep.subr.mxu0 0.0
    %1839 = vmatpush1.msra.mxu0 0.0
    %1840 = vmatprep.subr.mxu0 %v1507
    %1841 = vmatpush1.msra.mxu0 %v1506
    %1842 = vmatprep.subr.mxu0 0.0
    %1843 = vmatpush2.msra.mxu0 0.0
    %1844 = vmatprep.subr.mxu0 0.0
    %1845 = vmatpush2.msra.mxu0 0.0
    %1846 = vmatprep.subr.mxu0 0.0
    %1847 = vmatpush2.msra.mxu0 0.0
    %1848 = vmatprep.subr.mxu0 0.0
    %1849 = vmatpush2.msra.mxu0 0.0
    %1850 = vmatprep.subr.mxu0 0.0
    %1851 = vmatpush2.msra.mxu0 0.0
    %1852 = vmatprep.subr.mxu0 0.0
    %1853 = vmatpush2.msra.mxu0 0.0
    %1854 = vmatprep.subr.mxu0 0.0
    %1855 = vmatpush2.msra.mxu0 0.0
    %1856 = vmatprep.subr.mxu0 0.0
    %1857 = vmatpush2.msra.mxu0 0.0
    %1858 = vmatprep.subr.mxu0 0.0
    %1859 = vmatpush2.msra.mxu0 0.0
    %1860 = vmatprep.subr.mxu0 0.0
    %1861 = vmatpush2.msra.mxu0 0.0
    %1862 = vmatprep.subr.mxu0 0.0
    %1863 = vmatpush2.msra.mxu0 0.0
    %1864 = vmatprep.subr.mxu0 0.0
    %1865 = vmatpush2.msra.mxu0 0.0
    %1866 = vmatprep.subr.mxu0 0.0
    %1867 = vmatpush2.msra.mxu0 0.0
    %1868 = vmatprep.subr.mxu0 0.0
    %1869 = vmatpush2.msra.mxu0 0.0
    %1870 = vmatprep.subr.mxu0 0.0
    %1871 = vmatpush2.msra.mxu0 0.0
    %1872 = vmatprep.subr.mxu0 0.0
    %1873 = vmatpush2.msra.mxu0 0.0
    %1874 = vmatprep.mubr.f32.mxu0 0.0
    %1875 = vmatmul.mubr.f32.gmra.mxu0 %v1808
    %v1876 = vpop.f32.mrf.mxu0
    %v1877 = vadd.f32 0.0, %v1876
    %v1878 = vpop.f32.mrf.mxu0
    %v1879 = vadd.f32 0.0, %v1878
    %1880 = vdwg.mxu0
    %v1882 = vsel %vm506, %v1877, 0
    %v1885 = vsel %vm506, %v1879, 0
    %1887 = vmatprep.subr.mxu0 0.0
    %1888 = vmatpush1.msra.mxu0 0.0
    %1889 = vmatprep.subr.mxu0 0.0
    %1890 = vmatpush1.msra.mxu0 0.0
    %1891 = vmatprep.subr.mxu0 0.0
    %1892 = vmatpush1.msra.mxu0 0.0
    %1893 = vmatprep.subr.mxu0 0.0
    %1894 = vmatpush1.msra.mxu0 0.0
    %1895 = vmatprep.subr.mxu0 0.0
    %1896 = vmatpush1.msra.mxu0 0.0
    %1897 = vmatprep.subr.mxu0 0.0
    %1898 = vmatpush1.msra.mxu0 0.0
    %1899 = vmatprep.subr.mxu0 0.0
    %1900 = vmatpush1.msra.mxu0 0.0
    %1901 = vmatprep.subr.mxu0 0.0
    %1902 = vmatpush1.msra.mxu0 0.0
    %1903 = vmatprep.subr.mxu0 0.0
    %1904 = vmatpush1.msra.mxu0 0.0
    %1905 = vmatprep.subr.mxu0 0.0
    %1906 = vmatpush1.msra.mxu0 0.0
    %1907 = vmatprep.subr.mxu0 0.0
    %1908 = vmatpush1.msra.mxu0 0.0
    %1909 = vmatprep.subr.mxu0 0.0
    %1910 = vmatpush1.msra.mxu0 0.0
    %1911 = vmatprep.subr.mxu0 0.0
    %1912 = vmatpush1.msra.mxu0 0.0
    %1913 = vmatprep.subr.mxu0 0.0
    %1914 = vmatpush1.msra.mxu0 0.0
    %1915 = vmatprep.subr.mxu0 0.0
    %1916 = vmatpush1.msra.mxu0 0.0
    %1917 = vmatprep.subr.mxu0 %v1885
    %1918 = vmatpush1.msra.mxu0 %v1882
    %1919 = vmatprep.subr.mxu0 0.0
    %1920 = vmatpush2.msra.mxu0 0.0
    %1921 = vmatprep.subr.mxu0 0.0
    %1922 = vmatpush2.msra.mxu0 0.0
    %1923 = vmatprep.subr.mxu0 0.0
    %1924 = vmatpush2.msra.mxu0 0.0
    %1925 = vmatprep.subr.mxu0 0.0
    %1926 = vmatpush2.msra.mxu0 0.0
    %1927 = vmatprep.subr.mxu0 0.0
    %1928 = vmatpush2.msra.mxu0 0.0
    %1929 = vmatprep.subr.mxu0 0.0
    %1930 = vmatpush2.msra.mxu0 0.0
    %1931 = vmatprep.subr.mxu0 0.0
    %1932 = vmatpush2.msra.mxu0 0.0
    %1933 = vmatprep.subr.mxu0 0.0
    %1934 = vmatpush2.msra.mxu0 0.0
    %1935 = vmatprep.subr.mxu0 0.0
    %1936 = vmatpush2.msra.mxu0 0.0
    %1937 = vmatprep.subr.mxu0 0.0
    %1938 = vmatpush2.msra.mxu0 0.0
    %1939 = vmatprep.subr.mxu0 0.0
    %1940 = vmatpush2.msra.mxu0 0.0
    %1941 = vmatprep.subr.mxu0 0.0
    %1942 = vmatpush2.msra.mxu0 0.0
    %1943 = vmatprep.subr.mxu0 0.0
    %1944 = vmatpush2.msra.mxu0 0.0
    %1945 = vmatprep.subr.mxu0 0.0
    %1946 = vmatpush2.msra.mxu0 0.0
    %1947 = vmatprep.subr.mxu0 0.0
    %1948 = vmatpush2.msra.mxu0 0.0
    %1949 = vmatprep.subr.mxu0 0.0
    %1950 = vmatpush2.msra.mxu0 0.0
    %1951 = vmatprep.mubr.f32.mxu0 0.0
    %1952 = vmatmul.mubr.f32.gmra.mxu0 %v495
    %v1953 = vpop.f32.mrf.mxu0
    %v1954 = vadd.f32 0.0, %v1953
    %v1955 = vpop.f32.mrf.mxu0
    %v1956 = vadd.f32 0.0, %v1955
    %1957 = vmatprep.mubr.f32.mxu0 0.0
    %1958 = vmatmul.mubr.f32.gmra.mxu0 %v498
    %v1959 = vpop.f32.mrf.mxu0
    %v1960 = vadd.f32 0.0, %v1959
    %v1961 = vpop.f32.mrf.mxu0
    %v1962 = vadd.f32 0.0, %v1961
    %1963 = vmatprep.mubr.f32.mxu0 0.0
    %1964 = vmatmul.mubr.f32.gmra.mxu0 %v501
    %v1965 = vpop.f32.mrf.mxu0
    %v1966 = vadd.f32 0.0, %v1965
    %v1967 = vpop.f32.mrf.mxu0
    %v1968 = vadd.f32 0.0, %v1967
    %1969 = vmatprep.mubr.f32.mxu0 0.0
    %1970 = vmatmul.mubr.f32.gmra.mxu0 %v504
    %v1971 = vpop.f32.mrf.mxu0
    %v1972 = vadd.f32 0.0, %v1971
    %v1973 = vpop.f32.mrf.mxu0
    %v1974 = vadd.f32 0.0, %v1973
    %1975 = vdwg.mxu0
    %v1977 = vsel %vm419, %v1806, 0
    %1979 = vmatprep.subr.mxu0 0.0
    %1980 = vmatpush1.msra.mxu0 0.0
    %1981 = vmatprep.subr.mxu0 0.0
    %1982 = vmatpush1.msra.mxu0 0.0
    %1983 = vmatprep.subr.mxu0 0.0
    %1984 = vmatpush1.msra.mxu0 0.0
    %1985 = vmatprep.subr.mxu0 0.0
    %1986 = vmatpush1.msra.mxu0 0.0
    %1987 = vmatprep.subr.mxu0 0.0
    %1988 = vmatpush1.msra.mxu0 0.0
    %1989 = vmatprep.subr.mxu0 0.0
    %1990 = vmatpush1.msra.mxu0 0.0
    %1991 = vmatprep.subr.mxu0 0.0
    %1992 = vmatpush1.msra.mxu0 0.0
    %1993 = vmatprep.subr.mxu0 0.0
    %1994 = vmatpush1.msra.mxu0 0.0
    %1995 = vmatprep.subr.mxu0 0.0
    %1996 = vmatpush1.msra.mxu0 0.0
    %1997 = vmatprep.subr.mxu0 0.0
    %1998 = vmatpush1.msra.mxu0 0.0
    %1999 = vmatprep.subr.mxu0 0.0
    %2000 = vmatpush1.msra.mxu0 0.0
    %2001 = vmatprep.subr.mxu0 0.0
    %2002 = vmatpush1.msra.mxu0 0.0
    %2003 = vmatprep.subr.mxu0 0.0
    %2004 = vmatpush1.msra.mxu0 0.0
    %2005 = vmatprep.subr.mxu0 0.0
    %2006 = vmatpush1.msra.mxu0 0.0
    %2007 = vmatprep.subr.mxu0 0.0
    %2008 = vmatpush1.msra.mxu0 0.0
    %2009 = vmatprep.subr.mxu0 %v1507
    %2010 = vmatpush1.msra.mxu0 %v1506
    %2011 = vmatprep.subr.mxu0 0.0
    %2012 = vmatpush2.msra.mxu0 0.0
    %2013 = vmatprep.subr.mxu0 0.0
    %2014 = vmatpush2.msra.mxu0 0.0
    %2015 = vmatprep.subr.mxu0 0.0
    %2016 = vmatpush2.msra.mxu0 0.0
    %2017 = vmatprep.subr.mxu0 0.0
    %2018 = vmatpush2.msra.mxu0 0.0
    %2019 = vmatprep.subr.mxu0 0.0
    %2020 = vmatpush2.msra.mxu0 0.0
    %2021 = vmatprep.subr.mxu0 0.0
    %2022 = vmatpush2.msra.mxu0 0.0
    %2023 = vmatprep.subr.mxu0 0.0
    %2024 = vmatpush2.msra.mxu0 0.0
    %2025 = vmatprep.subr.mxu0 0.0
    %2026 = vmatpush2.msra.mxu0 0.0
    %2027 = vmatprep.subr.mxu0 0.0
    %2028 = vmatpush2.msra.mxu0 0.0
    %2029 = vmatprep.subr.mxu0 0.0
    %2030 = vmatpush2.msra.mxu0 0.0
    %2031 = vmatprep.subr.mxu0 0.0
    %2032 = vmatpush2.msra.mxu0 0.0
    %2033 = vmatprep.subr.mxu0 0.0
    %2034 = vmatpush2.msra.mxu0 0.0
    %2035 = vmatprep.subr.mxu0 0.0
    %2036 = vmatpush2.msra.mxu0 0.0
    %2037 = vmatprep.subr.mxu0 0.0
    %2038 = vmatpush2.msra.mxu0 0.0
    %2039 = vmatprep.subr.mxu0 0.0
    %2040 = vmatpush2.msra.mxu0 0.0
    %2041 = vmatprep.subr.mxu0 0.0
    %2042 = vmatpush2.msra.mxu0 0.0
    %2043 = vmatprep.mubr.f32.mxu0 0.0
    %2044 = vmatmul.mubr.f32.gmra.mxu0 %v1977
    %v2045 = vpop.f32.mrf.mxu0
    %v2046 = vadd.f32 0.0, %v2045
    %v2047 = vpop.f32.mrf.mxu0
    %v2048 = vadd.f32 0.0, %v2047
    %2049 = vdwg.mxu0
    %v2051 = vsel %vm506, %v2046, 0
    %v2054 = vsel %vm506, %v2048, 0
    %2056 = vmatprep.subr.mxu0 0.0
    %2057 = vmatpush1.msra.mxu0 0.0
    %2058 = vmatprep.subr.mxu0 0.0
    %2059 = vmatpush1.msra.mxu0 0.0
    %2060 = vmatprep.subr.mxu0 0.0
    %2061 = vmatpush1.msra.mxu0 0.0
    %2062 = vmatprep.subr.mxu0 0.0
    %2063 = vmatpush1.msra.mxu0 0.0
    %2064 = vmatprep.subr.mxu0 0.0
    %2065 = vmatpush1.msra.mxu0 0.0
    %2066 = vmatprep.subr.mxu0 0.0
    %2067 = vmatpush1.msra.mxu0 0.0
    %2068 = vmatprep.subr.mxu0 0.0
    %2069 = vmatpush1.msra.mxu0 0.0
    %2070 = vmatprep.subr.mxu0 0.0
    %2071 = vmatpush1.msra.mxu0 0.0
    %2072 = vmatprep.subr.mxu0 0.0
    %2073 = vmatpush1.msra.mxu0 0.0
    %2074 = vmatprep.subr.mxu0 0.0
    %2075 = vmatpush1.msra.mxu0 0.0
    %2076 = vmatprep.subr.mxu0 0.0
    %2077 = vmatpush1.msra.mxu0 0.0
    %2078 = vmatprep.subr.mxu0 0.0
    %2079 = vmatpush1.msra.mxu0 0.0
    %2080 = vmatprep.subr.mxu0 0.0
    %2081 = vmatpush1.msra.mxu0 0.0
    %2082 = vmatprep.subr.mxu0 0.0
    %2083 = vmatpush1.msra.mxu0 0.0
    %2084 = vmatprep.subr.mxu0 0.0
    %2085 = vmatpush1.msra.mxu0 0.0
    %2086 = vmatprep.subr.mxu0 %v2054
    %2087 = vmatpush1.msra.mxu0 %v2051
    %2088 = vmatprep.subr.mxu0 0.0
    %2089 = vmatpush2.msra.mxu0 0.0
    %2090 = vmatprep.subr.mxu0 0.0
    %2091 = vmatpush2.msra.mxu0 0.0
    %2092 = vmatprep.subr.mxu0 0.0
    %2093 = vmatpush2.msra.mxu0 0.0
    %2094 = vmatprep.subr.mxu0 0.0
    %2095 = vmatpush2.msra.mxu0 0.0
    %2096 = vmatprep.subr.mxu0 0.0
    %2097 = vmatpush2.msra.mxu0 0.0
    %2098 = vmatprep.subr.mxu0 0.0
    %2099 = vmatpush2.msra.mxu0 0.0
    %2100 = vmatprep.subr.mxu0 0.0
    %2101 = vmatpush2.msra.mxu0 0.0
    %2102 = vmatprep.subr.mxu0 0.0
    %2103 = vmatpush2.msra.mxu0 0.0
    %2104 = vmatprep.subr.mxu0 0.0
    %2105 = vmatpush2.msra.mxu0 0.0
    %2106 = vmatprep.subr.mxu0 0.0
    %2107 = vmatpush2.msra.mxu0 0.0
    %2108 = vmatprep.subr.mxu0 0.0
    %2109 = vmatpush2.msra.mxu0 0.0
    %2110 = vmatprep.subr.mxu0 0.0
    %2111 = vmatpush2.msra.mxu0 0.0
    %2112 = vmatprep.subr.mxu0 0.0
    %2113 = vmatpush2.msra.mxu0 0.0
    %2114 = vmatprep.subr.mxu0 0.0
    %2115 = vmatpush2.msra.mxu0 0.0
    %2116 = vmatprep.subr.mxu0 0.0
    %2117 = vmatpush2.msra.mxu0 0.0
    %2118 = vmatprep.subr.mxu0 0.0
    %2119 = vmatpush2.msra.mxu0 0.0
    %2120 = vmatprep.mubr.f32.mxu0 0.0
    %2121 = vmatmul.mubr.f32.gmra.mxu0 %v495
    %v2122 = vpop.f32.mrf.mxu0
    %v2123 = vadd.f32 0.0, %v2122
    %v2124 = vpop.f32.mrf.mxu0
    %v2125 = vadd.f32 0.0, %v2124
    %2126 = vmatprep.mubr.f32.mxu0 0.0
    %2127 = vmatmul.mubr.f32.gmra.mxu0 %v498
    %v2128 = vpop.f32.mrf.mxu0
    %v2129 = vadd.f32 0.0, %v2128
    %v2130 = vpop.f32.mrf.mxu0
    %v2131 = vadd.f32 0.0, %v2130
    %2132 = vmatprep.mubr.f32.mxu0 0.0
    %2133 = vmatmul.mubr.f32.gmra.mxu0 %v501
    %v2134 = vpop.f32.mrf.mxu0
    %v2135 = vadd.f32 0.0, %v2134
    %v2136 = vpop.f32.mrf.mxu0
    %v2137 = vadd.f32 0.0, %v2136
    %2138 = vmatprep.mubr.f32.mxu0 0.0
    %2139 = vmatmul.mubr.f32.gmra.mxu0 %v504
    %v2140 = vpop.f32.mrf.mxu0
    %v2141 = vadd.f32 0.0, %v2140
    %v2142 = vpop.f32.mrf.mxu0
    %v2143 = vadd.f32 0.0, %v2142
    %2144 = vdwg.mxu0
    %v2145 = vsub.f32 %v1466, %v1954
    %v2146 = vsub.f32 %v1467, %v1956
    %v2147 = vsub.f32 %v1468, %v1960
    %v2148 = vsub.f32 %v1469, %v1962
    %v2149 = vsub.f32 %v1470, %v1966
    %v2150 = vsub.f32 %v1471, %v1968
    %v2151 = vsub.f32 %v1472, %v1972
    %v2152 = vsub.f32 %v1473, %v1974
    %v2154 = vlaneseq
    %v2155 = vshrl.u32 %v2154, 7
    %v2156 = vsub.s32 0, %v2155
    %v2157 = vrot.slane %v1508, %v2156
    %v2158 = vlaneseq
    %v2159 = vshrl.u32 %v2158, 7
    %v2160 = vsub.s32 1, %v2159
    %v2161 = vrot.slane %v1508, %v2160
    %v2164 = vmul.f32 %v2123, %v2157
    %v2165 = vmul.f32 %v2125, %v2161
    %v2166 = vmul.f32 %v2129, %v2157
    %v2167 = vmul.f32 %v2131, %v2161
    %v2168 = vmul.f32 %v2135, %v2157
    %v2169 = vmul.f32 %v2137, %v2161
    %v2170 = vmul.f32 %v2141, %v2157
    %v2171 = vmul.f32 %v2143, %v2161
    %v2172 = vmul.f32 %v2145, %v2164
    %v2173 = vmul.f32 %v2146, %v2165
    %v2174 = vmul.f32 %v2147, %v2166
    %v2175 = vmul.f32 %v2148, %v2167
    %v2176 = vmul.f32 %v2149, %v2168
    %v2177 = vmul.f32 %v2150, %v2169
    %v2178 = vmul.f32 %v2151, %v2170
    %v2179 = vmul.f32 %v2152, %v2171
    %v2181 = vlaneseq
    %v2182 = vshrl.u32 %v2181, 7
    %v2183 = vsub.s32 0, %v2182
    %v2184 = vrot.slane %v1509, %v2183
    %v2185 = vlaneseq
    %v2186 = vshrl.u32 %v2185, 7
    %v2187 = vsub.s32 1, %v2186
    %v2188 = vrot.slane %v1509, %v2187
    %v2191 = vadd.f32 %v2172, %v2184
    %v2192 = vadd.f32 %v2173, %v2188
    %v2193 = vadd.f32 %v2174, %v2184
    %v2194 = vadd.f32 %v2175, %v2188
    %v2195 = vadd.f32 %v2176, %v2184
    %v2196 = vadd.f32 %v2177, %v2188
    %v2197 = vadd.f32 %v2178, %v2184
    %v2198 = vadd.f32 %v2179, %v2188
    %v2199 = vmax.f32 %v2191, 0.0
    %v2200 = vmax.f32 %v2192, 0.0
    %v2201 = vmax.f32 %v2193, 0.0
    %v2202 = vmax.f32 %v2194, 0.0
    %v2203 = vmax.f32 %v2195, 0.0
    %v2204 = vmax.f32 %v2196, 0.0
    %v2205 = vmax.f32 %v2197, 0.0
    %v2206 = vmax.f32 %v2198, 0.0
    %v2207 = vld [vmem:[%s16] sm:$0x3]
    %v2208 = vrot.slane %v2199, 7
    %v2209 = vrot.slane %v2200, 7
    %v2210 = vrot.slane %v2201, 7
    %v2211 = vrot.slane %v2202, 7
    %v2212 = vrot.slane %v2203, 7
    %v2213 = vrot.slane %v2204, 7
    %v2214 = vrot.slane %v2205, 7
    %v2215 = vrot.slane %v2206, 7
    %v2216 = vsel %vm795, %v2212, %v2214
    %v2217 = vsel %vm795, %v2213, %v2215
    %v2218 = vsel %vm795, %v2210, %v2212
    %v2219 = vsel %vm795, %v2211, %v2213
    %v2220 = vsel %vm795, %v2208, %v2210
    %v2221 = vsel %vm795, %v2209, %v2211
    %v2222 = vsel %vm795, %v2214, %v2208
    %v2223 = vsel %vm795, %v2215, %v2209
    %v2224 = vmul.f32 %v2222, %v815
    %v2225 = vmul.f32 %v2223, %v815
    %v2226 = vmul.f32 %v2220, %v820
    %v2227 = vmul.f32 %v2221, %v820
    %v2228 = vmul.f32 %v2218, %v825
    %v2229 = vmul.f32 %v2219, %v825
    %v2230 = vmul.f32 %v2216, %v830
    %v2231 = vmul.f32 %v2217, %v830
    %v2232 = vpack.c.bf16 %v2226, %v2224
    %v2233 = vpack.c.bf16 %v2227, %v2225
    %v2234 = vpack.c.bf16 %v2230, %v2228
    %v2235 = vpack.c.bf16 %v2231, %v2229
    %v2236 = vld [vmem:[#allocation2] sm:$0xff]
    %v2237 = vld [vmem:[#allocation2 + $0x8] sm:$0xff]
    %v2238 = vld [vmem:[#allocation2 + $0x10] sm:$0xff]
    %v2239 = vld [vmem:[#allocation2 + $0x18] sm:$0xff]
    %v2240 = vld [vmem:[#allocation2 + $0x20] sm:$0xff]
    %v2241 = vld [vmem:[#allocation2 + $0x28] sm:$0xff]
    %v2242 = vld [vmem:[#allocation2 + $0x30] sm:$0xff]
    %v2243 = vld [vmem:[#allocation2 + $0x38] sm:$0xff]
    %v2244 = vld [vmem:[#allocation2 + $0x40] sm:$0xff]
    %v2245 = vld [vmem:[#allocation2 + $0x48] sm:$0xff]
    %v2246 = vld [vmem:[#allocation2 + $0x50] sm:$0xff]
    %v2247 = vld [vmem:[#allocation2 + $0x58] sm:$0xff]
    %v2248 = vld [vmem:[#allocation2 + $0x60] sm:$0xff]
    %v2249 = vld [vmem:[#allocation2 + $0x68] sm:$0xff]
    %v2250 = vld [vmem:[#allocation2 + $0x70] sm:$0xff]
    %v2251 = vld [vmem:[#allocation2 + $0x78] sm:$0xff]
    %v2252 = vld [vmem:[#allocation2 + $0x80] sm:$0xff]
    %v2253 = vld [vmem:[#allocation2 + $0x88] sm:$0xff]
    %v2254 = vld [vmem:[#allocation2 + $0x90] sm:$0xff]
    %v2255 = vld [vmem:[#allocation2 + $0x98] sm:$0xff]
    %v2256 = vld [vmem:[#allocation2 + $0xa0] sm:$0xff]
    %v2257 = vld [vmem:[#allocation2 + $0xa8] sm:$0xff]
    %v2258 = vld [vmem:[#allocation2 + $0xb0] sm:$0xff]
    %v2259 = vld [vmem:[#allocation2 + $0xb8] sm:$0xff]
    %v2260 = vld [vmem:[#allocation2 + $0xc0] sm:$0xff]
    %v2261 = vld [vmem:[#allocation2 + $0xc8] sm:$0xff]
    %v2262 = vld [vmem:[#allocation2 + $0xd0] sm:$0xff]
    %v2263 = vld [vmem:[#allocation2 + $0xd8] sm:$0xff]
    %v2264 = vld [vmem:[#allocation2 + $0xe0] sm:$0xff]
    %v2265 = vld [vmem:[#allocation2 + $0xe8] sm:$0xff]
    %v2266 = vld [vmem:[#allocation2 + $0xf0] sm:$0xff]
    %v2267 = vld [vmem:[#allocation2 + $0xf8] sm:$0xff]
    %v2268 = vpack.c.bf16 %v2201, %v2199
    %v2269 = vpack.c.bf16 %v2202, %v2200
    %v2270 = vpack.c.bf16 %v2205, %v2203
    %v2271 = vpack.c.bf16 %v2206, %v2204
    %s2272 = scalar_lea.vmem [#allocation2], 256
    %v2273 = vld [vmem:[%s2272] sm:$0xff]
    %v2274 = vld [vmem:[%s2272 + $0x8] sm:$0xff]
    %v2275 = vld [vmem:[%s2272 + $0x10] sm:$0xff]
    %v2276 = vld [vmem:[%s2272 + $0x18] sm:$0xff]
    %v2277 = vld [vmem:[%s2272 + $0x20] sm:$0xff]
    %v2278 = vld [vmem:[%s2272 + $0x28] sm:$0xff]
    %v2279 = vld [vmem:[%s2272 + $0x30] sm:$0xff]
    %v2280 = vld [vmem:[%s2272 + $0x38] sm:$0xff]
    %v2281 = vld [vmem:[%s2272 + $0x40] sm:$0xff]
    %v2282 = vld [vmem:[%s2272 + $0x48] sm:$0xff]
    %v2283 = vld [vmem:[%s2272 + $0x50] sm:$0xff]
    %v2284 = vld [vmem:[%s2272 + $0x58] sm:$0xff]
    %v2285 = vld [vmem:[%s2272 + $0x60] sm:$0xff]
    %v2286 = vld [vmem:[%s2272 + $0x68] sm:$0xff]
    %v2287 = vld [vmem:[%s2272 + $0x70] sm:$0xff]
    %v2288 = vld [vmem:[%s2272 + $0x78] sm:$0xff]
    %v2289 = vld [vmem:[%s2272 + $0x80] sm:$0xff]
    %v2290 = vld [vmem:[%s2272 + $0x88] sm:$0xff]
    %v2291 = vld [vmem:[%s2272 + $0x90] sm:$0xff]
    %v2292 = vld [vmem:[%s2272 + $0x98] sm:$0xff]
    %v2293 = vld [vmem:[%s2272 + $0xa0] sm:$0xff]
    %v2294 = vld [vmem:[%s2272 + $0xa8] sm:$0xff]
    %v2295 = vld [vmem:[%s2272 + $0xb0] sm:$0xff]
    %v2296 = vld [vmem:[%s2272 + $0xb8] sm:$0xff]
    %v2297 = vld [vmem:[%s2272 + $0xc0] sm:$0xff]
    %v2298 = vld [vmem:[%s2272 + $0xc8] sm:$0xff]
    %v2299 = vld [vmem:[%s2272 + $0xd0] sm:$0xff]
    %v2300 = vld [vmem:[%s2272 + $0xd8] sm:$0xff]
    %v2301 = vld [vmem:[%s2272 + $0xe0] sm:$0xff]
    %v2302 = vld [vmem:[%s2272 + $0xe8] sm:$0xff]
    %v2303 = vld [vmem:[%s2272 + $0xf0] sm:$0xff]
    %v2304 = vld [vmem:[%s2272 + $0xf8] sm:$0xff]
    %v2337 = vunpack.c.l.b16 %v2273
    %v2338 = vunpack.c.h.b16 %v2273
    %v2339 = vunpack.c.l.b16 %v2274
    %v2340 = vunpack.c.h.b16 %v2274
    %v2341 = vunpack.c.l.b16 %v2275
    %v2342 = vunpack.c.h.b16 %v2275
    %v2343 = vunpack.c.l.b16 %v2276
    %v2344 = vunpack.c.h.b16 %v2276
    %v2345 = vunpack.c.l.b16 %v2277
    %v2346 = vunpack.c.h.b16 %v2277
    %v2347 = vunpack.c.l.b16 %v2278
    %v2348 = vunpack.c.h.b16 %v2278
    %v2349 = vunpack.c.l.b16 %v2279
    %v2350 = vunpack.c.h.b16 %v2279
    %v2351 = vunpack.c.l.b16 %v2280
    %v2352 = vunpack.c.h.b16 %v2280
    %v2353 = vunpack.c.l.b16 %v2281
    %v2354 = vunpack.c.h.b16 %v2281
    %v2355 = vunpack.c.l.b16 %v2282
    %v2356 = vunpack.c.h.b16 %v2282
    %v2357 = vunpack.c.l.b16 %v2283
    %v2358 = vunpack.c.h.b16 %v2283
    %v2359 = vunpack.c.l.b16 %v2284
    %v2360 = vunpack.c.h.b16 %v2284
    %v2361 = vunpack.c.l.b16 %v2285
    %v2362 = vunpack.c.h.b16 %v2285
    %v2363 = vunpack.c.l.b16 %v2286
    %v2364 = vunpack.c.h.b16 %v2286
    %v2365 = vunpack.c.l.b16 %v2287
    %v2366 = vunpack.c.h.b16 %v2287
    %v2367 = vunpack.c.l.b16 %v2288
    %v2368 = vunpack.c.h.b16 %v2288
    %v2369 = vunpack.c.l.b16 %v2289
    %v2370 = vunpack.c.h.b16 %v2289
    %v2371 = vunpack.c.l.b16 %v2290
    %v2372 = vunpack.c.h.b16 %v2290
    %v2373 = vunpack.c.l.b16 %v2291
    %v2374 = vunpack.c.h.b16 %v2291
    %v2375 = vunpack.c.l.b16 %v2292
    %v2376 = vunpack.c.h.b16 %v2292
    %v2377 = vunpack.c.l.b16 %v2293
    %v2378 = vunpack.c.h.b16 %v2293
    %v2379 = vunpack.c.l.b16 %v2294
    %v2380 = vunpack.c.h.b16 %v2294
    %v2381 = vunpack.c.l.b16 %v2295
    %v2382 = vunpack.c.h.b16 %v2295
    %v2383 = vunpack.c.l.b16 %v2296
    %v2384 = vunpack.c.h.b16 %v2296
    %v2385 = vunpack.c.l.b16 %v2297
    %v2386 = vunpack.c.h.b16 %v2297
    %v2387 = vunpack.c.l.b16 %v2298
    %v2388 = vunpack.c.h.b16 %v2298
    %v2389 = vunpack.c.l.b16 %v2299
    %v2390 = vunpack.c.h.b16 %v2299
    %v2391 = vunpack.c.l.b16 %v2300
    %v2392 = vunpack.c.h.b16 %v2300
    %v2393 = vunpack.c.l.b16 %v2301
    %v2394 = vunpack.c.h.b16 %v2301
    %v2395 = vunpack.c.l.b16 %v2302
    %v2396 = vunpack.c.h.b16 %v2302
    %v2397 = vunpack.c.l.b16 %v2303
    %v2398 = vunpack.c.h.b16 %v2303
    %v2399 = vunpack.c.l.b16 %v2304
    %v2400 = vunpack.c.h.b16 %v2304
    %v2401 = vpack.c.b16 %v2339, %v2337
    %v2402 = vpack.c.b16 %v2340, %v2338
    %v2403 = vpack.c.b16 %v2343, %v2341
    %v2404 = vpack.c.b16 %v2344, %v2342
    %v2405 = vpack.c.b16 %v2347, %v2345
    %v2406 = vpack.c.b16 %v2348, %v2346
    %v2407 = vpack.c.b16 %v2351, %v2349
    %v2408 = vpack.c.b16 %v2352, %v2350
    %v2409 = vpack.c.b16 %v2355, %v2353
    %v2410 = vpack.c.b16 %v2356, %v2354
    %v2411 = vpack.c.b16 %v2359, %v2357
    %v2412 = vpack.c.b16 %v2360, %v2358
    %v2413 = vpack.c.b16 %v2363, %v2361
    %v2414 = vpack.c.b16 %v2364, %v2362
    %v2415 = vpack.c.b16 %v2367, %v2365
    %v2416 = vpack.c.b16 %v2368, %v2366
    %v2417 = vpack.c.b16 %v2371, %v2369
    %v2418 = vpack.c.b16 %v2372, %v2370
    %v2419 = vpack.c.b16 %v2375, %v2373
    %v2420 = vpack.c.b16 %v2376, %v2374
    %v2421 = vpack.c.b16 %v2379, %v2377
    %v2422 = vpack.c.b16 %v2380, %v2378
    %v2423 = vpack.c.b16 %v2383, %v2381
    %v2424 = vpack.c.b16 %v2384, %v2382
    %v2425 = vpack.c.b16 %v2387, %v2385
    %v2426 = vpack.c.b16 %v2388, %v2386
    %v2427 = vpack.c.b16 %v2391, %v2389
    %v2428 = vpack.c.b16 %v2392, %v2390
    %v2429 = vpack.c.b16 %v2395, %v2393
    %v2430 = vpack.c.b16 %v2396, %v2394
    %v2431 = vpack.c.b16 %v2399, %v2397
    %v2432 = vpack.c.b16 %v2400, %v2398
    %2465 = vmatprep.subr.bf16.mxu0 %v2416
    %2466 = vmatpush1.bf16.msra.mxu0 %v2415
    %2467 = vmatprep.subr.bf16.mxu0 %v2414
    %2468 = vmatpush1.bf16.msra.mxu0 %v2413
    %2469 = vmatprep.subr.bf16.mxu0 %v2412
    %2470 = vmatpush1.bf16.msra.mxu0 %v2411
    %2471 = vmatprep.subr.bf16.mxu0 %v2410
    %2472 = vmatpush1.bf16.msra.mxu0 %v2409
    %2473 = vmatprep.subr.bf16.mxu0 %v2408
    %2474 = vmatpush1.bf16.msra.mxu0 %v2407
    %2475 = vmatprep.subr.bf16.mxu0 %v2406
    %2476 = vmatpush1.bf16.msra.mxu0 %v2405
    %2477 = vmatprep.subr.bf16.mxu0 %v2404
    %2478 = vmatpush1.bf16.msra.mxu0 %v2403
    %2479 = vmatprep.subr.bf16.mxu0 %v2402
    %2480 = vmatpush1.bf16.msra.mxu0 %v2401
    %2481 = vmatprep.subr.bf16.mxu0 %v2432
    %2482 = vmatpush2.bf16.msra.mxu0 %v2431
    %2483 = vmatprep.subr.bf16.mxu0 %v2430
    %2484 = vmatpush2.bf16.msra.mxu0 %v2429
    %2485 = vmatprep.subr.bf16.mxu0 %v2428
    %2486 = vmatpush2.bf16.msra.mxu0 %v2427
    %2487 = vmatprep.subr.bf16.mxu0 %v2426
    %2488 = vmatpush2.bf16.msra.mxu0 %v2425
    %2489 = vmatprep.subr.bf16.mxu0 %v2424
    %2490 = vmatpush2.bf16.msra.mxu0 %v2423
    %2491 = vmatprep.subr.bf16.mxu0 %v2422
    %2492 = vmatpush2.bf16.msra.mxu0 %v2421
    %2493 = vmatprep.subr.bf16.mxu0 %v2420
    %2494 = vmatpush2.bf16.msra.mxu0 %v2419
    %2495 = vmatprep.subr.bf16.mxu0 %v2418
    %2496 = vmatpush2.bf16.msra.mxu0 %v2417
    %2497 = vmatprep.mubr.bf16.mxu0 %v2269
    %2498 = vmatmul.mubr.bf16.gmra.mxu0 %v2268
    %v2499 = vpop.f32.mrf.mxu0
    %v2500 = vadd.f32 0.0, %v2499
    %v2501 = vpop.f32.mrf.mxu0
    %v2502 = vadd.f32 0.0, %v2501
    %v2503 = vpop.f32.mrf.mxu0
    %v2504 = vadd.f32 0.0, %v2503
    %v2505 = vpop.f32.mrf.mxu0
    %v2506 = vadd.f32 0.0, %v2505
    %2507 = vmatprep.mubr.bf16.mxu0 %v2271
    %2508 = vmatmul.mubr.bf16.gmra.mxu0 %v2270
    %v2509 = vpop.f32.mrf.mxu0
    %v2510 = vadd.f32 0.0, %v2509
    %v2511 = vpop.f32.mrf.mxu0
    %v2512 = vadd.f32 0.0, %v2511
    %v2513 = vpop.f32.mrf.mxu0
    %v2514 = vadd.f32 0.0, %v2513
    %v2515 = vpop.f32.mrf.mxu0
    %v2516 = vadd.f32 0.0, %v2515
    %2517 = vdwg.mxu0
    %v2550 = vunpack.c.l.b16 %v2236
    %v2551 = vunpack.c.h.b16 %v2236
    %v2552 = vunpack.c.l.b16 %v2237
    %v2553 = vunpack.c.h.b16 %v2237
    %v2554 = vunpack.c.l.b16 %v2238
    %v2555 = vunpack.c.h.b16 %v2238
    %v2556 = vunpack.c.l.b16 %v2239
    %v2557 = vunpack.c.h.b16 %v2239
    %v2558 = vunpack.c.l.b16 %v2240
    %v2559 = vunpack.c.h.b16 %v2240
    %v2560 = vunpack.c.l.b16 %v2241
    %v2561 = vunpack.c.h.b16 %v2241
    %v2562 = vunpack.c.l.b16 %v2242
    %v2563 = vunpack.c.h.b16 %v2242
    %v2564 = vunpack.c.l.b16 %v2243
    %v2565 = vunpack.c.h.b16 %v2243
    %v2566 = vunpack.c.l.b16 %v2244
    %v2567 = vunpack.c.h.b16 %v2244
    %v2568 = vunpack.c.l.b16 %v2245
    %v2569 = vunpack.c.h.b16 %v2245
    %v2570 = vunpack.c.l.b16 %v2246
    %v2571 = vunpack.c.h.b16 %v2246
    %v2572 = vunpack.c.l.b16 %v2247
    %v2573 = vunpack.c.h.b16 %v2247
    %v2574 = vunpack.c.l.b16 %v2248
    %v2575 = vunpack.c.h.b16 %v2248
    %v2576 = vunpack.c.l.b16 %v2249
    %v2577 = vunpack.c.h.b16 %v2249
    %v2578 = vunpack.c.l.b16 %v2250
    %v2579 = vunpack.c.h.b16 %v2250
    %v2580 = vunpack.c.l.b16 %v2251
    %v2581 = vunpack.c.h.b16 %v2251
    %v2582 = vunpack.c.l.b16 %v2252
    %v2583 = vunpack.c.h.b16 %v2252
    %v2584 = vunpack.c.l.b16 %v2253
    %v2585 = vunpack.c.h.b16 %v2253
    %v2586 = vunpack.c.l.b16 %v2254
    %v2587 = vunpack.c.h.b16 %v2254
    %v2588 = vunpack.c.l.b16 %v2255
    %v2589 = vunpack.c.h.b16 %v2255
    %v2590 = vunpack.c.l.b16 %v2256
    %v2591 = vunpack.c.h.b16 %v2256
    %v2592 = vunpack.c.l.b16 %v2257
    %v2593 = vunpack.c.h.b16 %v2257
    %v2594 = vunpack.c.l.b16 %v2258
    %v2595 = vunpack.c.h.b16 %v2258
    %v2596 = vunpack.c.l.b16 %v2259
    %v2597 = vunpack.c.h.b16 %v2259
    %v2598 = vunpack.c.l.b16 %v2260
    %v2599 = vunpack.c.h.b16 %v2260
    %v2600 = vunpack.c.l.b16 %v2261
    %v2601 = vunpack.c.h.b16 %v2261
    %v2602 = vunpack.c.l.b16 %v2262
    %v2603 = vunpack.c.h.b16 %v2262
    %v2604 = vunpack.c.l.b16 %v2263
    %v2605 = vunpack.c.h.b16 %v2263
    %v2606 = vunpack.c.l.b16 %v2264
    %v2607 = vunpack.c.h.b16 %v2264
    %v2608 = vunpack.c.l.b16 %v2265
    %v2609 = vunpack.c.h.b16 %v2265
    %v2610 = vunpack.c.l.b16 %v2266
    %v2611 = vunpack.c.h.b16 %v2266
    %v2612 = vunpack.c.l.b16 %v2267
    %v2613 = vunpack.c.h.b16 %v2267
    %v2614 = vpack.c.b16 %v2552, %v2550
    %v2615 = vpack.c.b16 %v2553, %v2551
    %v2616 = vpack.c.b16 %v2556, %v2554
    %v2617 = vpack.c.b16 %v2557, %v2555
    %v2618 = vpack.c.b16 %v2560, %v2558
    %v2619 = vpack.c.b16 %v2561, %v2559
    %v2620 = vpack.c.b16 %v2564, %v2562
    %v2621 = vpack.c.b16 %v2565, %v2563
    %v2622 = vpack.c.b16 %v2568, %v2566
    %v2623 = vpack.c.b16 %v2569, %v2567
    %v2624 = vpack.c.b16 %v2572, %v2570
    %v2625 = vpack.c.b16 %v2573, %v2571
    %v2626 = vpack.c.b16 %v2576, %v2574
    %v2627 = vpack.c.b16 %v2577, %v2575
    %v2628 = vpack.c.b16 %v2580, %v2578
    %v2629 = vpack.c.b16 %v2581, %v2579
    %v2630 = vpack.c.b16 %v2584, %v2582
    %v2631 = vpack.c.b16 %v2585, %v2583
    %v2632 = vpack.c.b16 %v2588, %v2586
    %v2633 = vpack.c.b16 %v2589, %v2587
    %v2634 = vpack.c.b16 %v2592, %v2590
    %v2635 = vpack.c.b16 %v2593, %v2591
    %v2636 = vpack.c.b16 %v2596, %v2594
    %v2637 = vpack.c.b16 %v2597, %v2595
    %v2638 = vpack.c.b16 %v2600, %v2598
    %v2639 = vpack.c.b16 %v2601, %v2599
    %v2640 = vpack.c.b16 %v2604, %v2602
    %v2641 = vpack.c.b16 %v2605, %v2603
    %v2642 = vpack.c.b16 %v2608, %v2606
    %v2643 = vpack.c.b16 %v2609, %v2607
    %v2644 = vpack.c.b16 %v2612, %v2610
    %v2645 = vpack.c.b16 %v2613, %v2611
    %2678 = vmatprep.subr.bf16.mxu0 %v2629
    %2679 = vmatpush1.bf16.msra.mxu0 %v2628
    %2680 = vmatprep.subr.bf16.mxu0 %v2627
    %2681 = vmatpush1.bf16.msra.mxu0 %v2626
    %2682 = vmatprep.subr.bf16.mxu0 %v2625
    %2683 = vmatpush1.bf16.msra.mxu0 %v2624
    %2684 = vmatprep.subr.bf16.mxu0 %v2623
    %2685 = vmatpush1.bf16.msra.mxu0 %v2622
    %2686 = vmatprep.subr.bf16.mxu0 %v2621
    %2687 = vmatpush1.bf16.msra.mxu0 %v2620
    %2688 = vmatprep.subr.bf16.mxu0 %v2619
    %2689 = vmatpush1.bf16.msra.mxu0 %v2618
    %2690 = vmatprep.subr.bf16.mxu0 %v2617
    %2691 = vmatpush1.bf16.msra.mxu0 %v2616
    %2692 = vmatprep.subr.bf16.mxu0 %v2615
    %2693 = vmatpush1.bf16.msra.mxu0 %v2614
    %2694 = vmatprep.subr.bf16.mxu0 %v2645
    %2695 = vmatpush2.bf16.msra.mxu0 %v2644
    %2696 = vmatprep.subr.bf16.mxu0 %v2643
    %2697 = vmatpush2.bf16.msra.mxu0 %v2642
    %2698 = vmatprep.subr.bf16.mxu0 %v2641
    %2699 = vmatpush2.bf16.msra.mxu0 %v2640
    %2700 = vmatprep.subr.bf16.mxu0 %v2639
    %2701 = vmatpush2.bf16.msra.mxu0 %v2638
    %2702 = vmatprep.subr.bf16.mxu0 %v2637
    %2703 = vmatpush2.bf16.msra.mxu0 %v2636
    %2704 = vmatprep.subr.bf16.mxu0 %v2635
    %2705 = vmatpush2.bf16.msra.mxu0 %v2634
    %2706 = vmatprep.subr.bf16.mxu0 %v2633
    %2707 = vmatpush2.bf16.msra.mxu0 %v2632
    %2708 = vmatprep.subr.bf16.mxu0 %v2631
    %2709 = vmatpush2.bf16.msra.mxu0 %v2630
    %2710 = vmatprep.mubr.bf16.mxu0 %v2233
    %2711 = vmatmul.mubr.bf16.gmra.mxu0 %v2232
    %v2712 = vpop.f32.mrf.mxu0
    %v2713 = vadd.f32 %v2500, %v2712
    %v2714 = vpop.f32.mrf.mxu0
    %v2715 = vadd.f32 %v2502, %v2714
    %v2716 = vpop.f32.mrf.mxu0
    %v2717 = vadd.f32 %v2504, %v2716
    %v2718 = vpop.f32.mrf.mxu0
    %v2719 = vadd.f32 %v2506, %v2718
    %2720 = vmatprep.mubr.bf16.mxu0 %v2235
    %2721 = vmatmul.mubr.bf16.gmra.mxu0 %v2234
    %v2722 = vpop.f32.mrf.mxu0
    %v2723 = vadd.f32 %v2510, %v2722
    %v2724 = vpop.f32.mrf.mxu0
    %v2725 = vadd.f32 %v2512, %v2724
    %v2726 = vpop.f32.mrf.mxu0
    %v2727 = vadd.f32 %v2514, %v2726
    %v2728 = vpop.f32.mrf.mxu0
    %v2729 = vadd.f32 %v2516, %v2728
    %2730 = vdwg.mxu0
    %v2731 = vrot.slane %v2199, 1
    %v2732 = vrot.slane %v2200, 1
    %v2733 = vrot.slane %v2201, 1
    %v2734 = vrot.slane %v2202, 1
    %v2735 = vrot.slane %v2203, 1
    %v2736 = vrot.slane %v2204, 1
    %v2737 = vrot.slane %v2205, 1
    %v2738 = vrot.slane %v2206, 1
    %v2739 = vsel %vm1143, %v2735, %v2737
    %v2740 = vsel %vm1143, %v2736, %v2738
    %v2741 = vsel %vm1143, %v2733, %v2735
    %v2742 = vsel %vm1143, %v2734, %v2736
    %v2743 = vsel %vm1143, %v2731, %v2733
    %v2744 = vsel %vm1143, %v2732, %v2734
    %v2745 = vsel %vm1143, %v2737, %v2731
    %v2746 = vsel %vm1143, %v2738, %v2732
    %v2747 = vmul.f32 %v2743, %v1163
    %v2748 = vmul.f32 %v2744, %v1163
    %v2749 = vmul.f32 %v2741, %v1168
    %v2750 = vmul.f32 %v2742, %v1168
    %v2751 = vmul.f32 %v2739, %v1173
    %v2752 = vmul.f32 %v2740, %v1173
    %v2753 = vmul.f32 %v2745, %v1178
    %v2754 = vmul.f32 %v2746, %v1178
    %v2755 = vpack.c.bf16 %v2749, %v2747
    %v2756 = vpack.c.bf16 %v2750, %v2748
    %v2757 = vpack.c.bf16 %v2753, %v2751
    %v2758 = vpack.c.bf16 %v2754, %v2752
    %s2759 = scalar_lea.vmem [#allocation2], 512
    %v2760 = vld [vmem:[%s2759] sm:$0xff]
    %v2761 = vld [vmem:[%s2759 + $0x8] sm:$0xff]
    %v2762 = vld [vmem:[%s2759 + $0x10] sm:$0xff]
    %v2763 = vld [vmem:[%s2759 + $0x18] sm:$0xff]
    %v2764 = vld [vmem:[%s2759 + $0x20] sm:$0xff]
    %v2765 = vld [vmem:[%s2759 + $0x28] sm:$0xff]
    %v2766 = vld [vmem:[%s2759 + $0x30] sm:$0xff]
    %v2767 = vld [vmem:[%s2759 + $0x38] sm:$0xff]
    %v2768 = vld [vmem:[%s2759 + $0x40] sm:$0xff]
    %v2769 = vld [vmem:[%s2759 + $0x48] sm:$0xff]
    %v2770 = vld [vmem:[%s2759 + $0x50] sm:$0xff]
    %v2771 = vld [vmem:[%s2759 + $0x58] sm:$0xff]
    %v2772 = vld [vmem:[%s2759 + $0x60] sm:$0xff]
    %v2773 = vld [vmem:[%s2759 + $0x68] sm:$0xff]
    %v2774 = vld [vmem:[%s2759 + $0x70] sm:$0xff]
    %v2775 = vld [vmem:[%s2759 + $0x78] sm:$0xff]
    %v2776 = vld [vmem:[%s2759 + $0x80] sm:$0xff]
    %v2777 = vld [vmem:[%s2759 + $0x88] sm:$0xff]
    %v2778 = vld [vmem:[%s2759 + $0x90] sm:$0xff]
    %v2779 = vld [vmem:[%s2759 + $0x98] sm:$0xff]
    %v2780 = vld [vmem:[%s2759 + $0xa0] sm:$0xff]
    %v2781 = vld [vmem:[%s2759 + $0xa8] sm:$0xff]
    %v2782 = vld [vmem:[%s2759 + $0xb0] sm:$0xff]
    %v2783 = vld [vmem:[%s2759 + $0xb8] sm:$0xff]
    %v2784 = vld [vmem:[%s2759 + $0xc0] sm:$0xff]
    %v2785 = vld [vmem:[%s2759 + $0xc8] sm:$0xff]
    %v2786 = vld [vmem:[%s2759 + $0xd0] sm:$0xff]
    %v2787 = vld [vmem:[%s2759 + $0xd8] sm:$0xff]
    %v2788 = vld [vmem:[%s2759 + $0xe0] sm:$0xff]
    %v2789 = vld [vmem:[%s2759 + $0xe8] sm:$0xff]
    %v2790 = vld [vmem:[%s2759 + $0xf0] sm:$0xff]
    %v2791 = vld [vmem:[%s2759 + $0xf8] sm:$0xff]
    %v2824 = vunpack.c.l.b16 %v2760
    %v2825 = vunpack.c.h.b16 %v2760
    %v2826 = vunpack.c.l.b16 %v2761
    %v2827 = vunpack.c.h.b16 %v2761
    %v2828 = vunpack.c.l.b16 %v2762
    %v2829 = vunpack.c.h.b16 %v2762
    %v2830 = vunpack.c.l.b16 %v2763
    %v2831 = vunpack.c.h.b16 %v2763
    %v2832 = vunpack.c.l.b16 %v2764
    %v2833 = vunpack.c.h.b16 %v2764
    %v2834 = vunpack.c.l.b16 %v2765
    %v2835 = vunpack.c.h.b16 %v2765
    %v2836 = vunpack.c.l.b16 %v2766
    %v2837 = vunpack.c.h.b16 %v2766
    %v2838 = vunpack.c.l.b16 %v2767
    %v2839 = vunpack.c.h.b16 %v2767
    %v2840 = vunpack.c.l.b16 %v2768
    %v2841 = vunpack.c.h.b16 %v2768
    %v2842 = vunpack.c.l.b16 %v2769
    %v2843 = vunpack.c.h.b16 %v2769
    %v2844 = vunpack.c.l.b16 %v2770
    %v2845 = vunpack.c.h.b16 %v2770
    %v2846 = vunpack.c.l.b16 %v2771
    %v2847 = vunpack.c.h.b16 %v2771
    %v2848 = vunpack.c.l.b16 %v2772
    %v2849 = vunpack.c.h.b16 %v2772
    %v2850 = vunpack.c.l.b16 %v2773
    %v2851 = vunpack.c.h.b16 %v2773
    %v2852 = vunpack.c.l.b16 %v2774
    %v2853 = vunpack.c.h.b16 %v2774
    %v2854 = vunpack.c.l.b16 %v2775
    %v2855 = vunpack.c.h.b16 %v2775
    %v2856 = vunpack.c.l.b16 %v2776
    %v2857 = vunpack.c.h.b16 %v2776
    %v2858 = vunpack.c.l.b16 %v2777
    %v2859 = vunpack.c.h.b16 %v2777
    %v2860 = vunpack.c.l.b16 %v2778
    %v2861 = vunpack.c.h.b16 %v2778
    %v2862 = vunpack.c.l.b16 %v2779
    %v2863 = vunpack.c.h.b16 %v2779
    %v2864 = vunpack.c.l.b16 %v2780
    %v2865 = vunpack.c.h.b16 %v2780
    %v2866 = vunpack.c.l.b16 %v2781
    %v2867 = vunpack.c.h.b16 %v2781
    %v2868 = vunpack.c.l.b16 %v2782
    %v2869 = vunpack.c.h.b16 %v2782
    %v2870 = vunpack.c.l.b16 %v2783
    %v2871 = vunpack.c.h.b16 %v2783
    %v2872 = vunpack.c.l.b16 %v2784
    %v2873 = vunpack.c.h.b16 %v2784
    %v2874 = vunpack.c.l.b16 %v2785
    %v2875 = vunpack.c.h.b16 %v2785
    %v2876 = vunpack.c.l.b16 %v2786
    %v2877 = vunpack.c.h.b16 %v2786
    %v2878 = vunpack.c.l.b16 %v2787
    %v2879 = vunpack.c.h.b16 %v2787
    %v2880 = vunpack.c.l.b16 %v2788
    %v2881 = vunpack.c.h.b16 %v2788
    %v2882 = vunpack.c.l.b16 %v2789
    %v2883 = vunpack.c.h.b16 %v2789
    %v2884 = vunpack.c.l.b16 %v2790
    %v2885 = vunpack.c.h.b16 %v2790
    %v2886 = vunpack.c.l.b16 %v2791
    %v2887 = vunpack.c.h.b16 %v2791
    %v2888 = vpack.c.b16 %v2826, %v2824
    %v2889 = vpack.c.b16 %v2827, %v2825
    %v2890 = vpack.c.b16 %v2830, %v2828
    %v2891 = vpack.c.b16 %v2831, %v2829
    %v2892 = vpack.c.b16 %v2834, %v2832
    %v2893 = vpack.c.b16 %v2835, %v2833
    %v2894 = vpack.c.b16 %v2838, %v2836
    %v2895 = vpack.c.b16 %v2839, %v2837
    %v2896 = vpack.c.b16 %v2842, %v2840
    %v2897 = vpack.c.b16 %v2843, %v2841
    %v2898 = vpack.c.b16 %v2846, %v2844
    %v2899 = vpack.c.b16 %v2847, %v2845
    %v2900 = vpack.c.b16 %v2850, %v2848
    %v2901 = vpack.c.b16 %v2851, %v2849
    %v2902 = vpack.c.b16 %v2854, %v2852
    %v2903 = vpack.c.b16 %v2855, %v2853
    %v2904 = vpack.c.b16 %v2858, %v2856
    %v2905 = vpack.c.b16 %v2859, %v2857
    %v2906 = vpack.c.b16 %v2862, %v2860
    %v2907 = vpack.c.b16 %v2863, %v2861
    %v2908 = vpack.c.b16 %v2866, %v2864
    %v2909 = vpack.c.b16 %v2867, %v2865
    %v2910 = vpack.c.b16 %v2870, %v2868
    %v2911 = vpack.c.b16 %v2871, %v2869
    %v2912 = vpack.c.b16 %v2874, %v2872
    %v2913 = vpack.c.b16 %v2875, %v2873
    %v2914 = vpack.c.b16 %v2878, %v2876
    %v2915 = vpack.c.b16 %v2879, %v2877
    %v2916 = vpack.c.b16 %v2882, %v2880
    %v2917 = vpack.c.b16 %v2883, %v2881
    %v2918 = vpack.c.b16 %v2886, %v2884
    %v2919 = vpack.c.b16 %v2887, %v2885
    %2952 = vmatprep.subr.bf16.mxu0 %v2903
    %2953 = vmatpush1.bf16.msra.mxu0 %v2902
    %2954 = vmatprep.subr.bf16.mxu0 %v2901
    %2955 = vmatpush1.bf16.msra.mxu0 %v2900
    %2956 = vmatprep.subr.bf16.mxu0 %v2899
    %2957 = vmatpush1.bf16.msra.mxu0 %v2898
    %2958 = vmatprep.subr.bf16.mxu0 %v2897
    %2959 = vmatpush1.bf16.msra.mxu0 %v2896
    %2960 = vmatprep.subr.bf16.mxu0 %v2895
    %2961 = vmatpush1.bf16.msra.mxu0 %v2894
    %2962 = vmatprep.subr.bf16.mxu0 %v2893
    %2963 = vmatpush1.bf16.msra.mxu0 %v2892
    %2964 = vmatprep.subr.bf16.mxu0 %v2891
    %2965 = vmatpush1.bf16.msra.mxu0 %v2890
    %2966 = vmatprep.subr.bf16.mxu0 %v2889
    %2967 = vmatpush1.bf16.msra.mxu0 %v2888
    %2968 = vmatprep.subr.bf16.mxu0 %v2919
    %2969 = vmatpush2.bf16.msra.mxu0 %v2918
    %2970 = vmatprep.subr.bf16.mxu0 %v2917
    %2971 = vmatpush2.bf16.msra.mxu0 %v2916
    %2972 = vmatprep.subr.bf16.mxu0 %v2915
    %2973 = vmatpush2.bf16.msra.mxu0 %v2914
    %2974 = vmatprep.subr.bf16.mxu0 %v2913
    %2975 = vmatpush2.bf16.msra.mxu0 %v2912
    %2976 = vmatprep.subr.bf16.mxu0 %v2911
    %2977 = vmatpush2.bf16.msra.mxu0 %v2910
    %2978 = vmatprep.subr.bf16.mxu0 %v2909
    %2979 = vmatpush2.bf16.msra.mxu0 %v2908
    %2980 = vmatprep.subr.bf16.mxu0 %v2907
    %2981 = vmatpush2.bf16.msra.mxu0 %v2906
    %2982 = vmatprep.subr.bf16.mxu0 %v2905
    %2983 = vmatpush2.bf16.msra.mxu0 %v2904
    %2984 = vmatprep.mubr.bf16.mxu0 %v2756
    %2985 = vmatmul.mubr.bf16.gmra.mxu0 %v2755
    %v2986 = vpop.f32.mrf.mxu0
    %v2987 = vadd.f32 0.0, %v2986
    %v2988 = vpop.f32.mrf.mxu0
    %v2989 = vadd.f32 0.0, %v2988
    %v2990 = vpop.f32.mrf.mxu0
    %v2991 = vadd.f32 0.0, %v2990
    %v2992 = vpop.f32.mrf.mxu0
    %v2993 = vadd.f32 0.0, %v2992
    %2994 = vmatprep.mubr.bf16.mxu0 %v2758
    %2995 = vmatmul.mubr.bf16.gmra.mxu0 %v2757
    %v2996 = vpop.f32.mrf.mxu0
    %v2997 = vadd.f32 0.0, %v2996
    %v2998 = vpop.f32.mrf.mxu0
    %v2999 = vadd.f32 0.0, %v2998
    %v3000 = vpop.f32.mrf.mxu0
    %v3001 = vadd.f32 0.0, %v3000
    %v3002 = vpop.f32.mrf.mxu0
    %v3003 = vadd.f32 0.0, %v3002
    %3004 = vdwg.mxu0
    %v3005 = vadd.f32 %v2713, %v2987
    %v3006 = vadd.f32 %v2715, %v2989
    %v3007 = vadd.f32 %v2717, %v2991
    %v3008 = vadd.f32 %v2719, %v2993
    %v3009 = vadd.f32 %v2723, %v2997
    %v3010 = vadd.f32 %v2725, %v2999
    %v3011 = vadd.f32 %v2727, %v3001
    %v3012 = vadd.f32 %v2729, %v3003
    %v3014 = vlaneseq
    %v3015 = vshrl.u32 %v3014, 7
    %v3016 = vsub.s32 0, %v3015
    %v3017 = vrot.slane %v2207, %v3016
    %v3018 = vlaneseq
    %v3019 = vshrl.u32 %v3018, 7
    %v3020 = vsub.s32 1, %v3019
    %v3021 = vrot.slane %v2207, %v3020
    %v3024 = vadd.f32 %v3005, %v3017
    %v3025 = vadd.f32 %v3006, %v3021
    %v3026 = vadd.f32 %v3007, %v3017
    %v3027 = vadd.f32 %v3008, %v3021
    %v3028 = vadd.f32 %v3009, %v3017
    %v3029 = vadd.f32 %v3010, %v3021
    %v3030 = vadd.f32 %v3011, %v3017
    %v3031 = vadd.f32 %v3012, %v3021
    %v3032 = vpack.c.bf16 %v93, %v92
    %v3033 = vpack.c.bf16 %v95, %v94
    %v3034 = vld [vmem:[#allocation5] sm:$0xff]
    %v3035 = vld [vmem:[#allocation5 + $0x8] sm:$0xff]
    %v3036 = vld [vmem:[#allocation5 + $0x10] sm:$0xff]
    %v3037 = vld [vmem:[#allocation5 + $0x18] sm:$0xff]
    %v3038 = vld [vmem:[#allocation5 + $0x20] sm:$0xff]
    %v3039 = vld [vmem:[#allocation5 + $0x28] sm:$0xff]
    %v3040 = vld [vmem:[#allocation5 + $0x30] sm:$0xff]
    %v3041 = vld [vmem:[#allocation5 + $0x38] sm:$0xff]
    %v3042 = vld [vmem:[#allocation5 + $0x40] sm:$0xff]
    %v3043 = vld [vmem:[#allocation5 + $0x48] sm:$0xff]
    %v3044 = vld [vmem:[#allocation5 + $0x50] sm:$0xff]
    %v3045 = vld [vmem:[#allocation5 + $0x58] sm:$0xff]
    %v3046 = vld [vmem:[#allocation5 + $0x60] sm:$0xff]
    %v3047 = vld [vmem:[#allocation5 + $0x68] sm:$0xff]
    %v3048 = vld [vmem:[#allocation5 + $0x70] sm:$0xff]
    %v3049 = vld [vmem:[#allocation5 + $0x78] sm:$0xff]
    %v3066 = vunpack.c.l.b16 %v3034
    %v3067 = vunpack.c.h.b16 %v3034
    %v3068 = vunpack.c.l.b16 %v3035
    %v3069 = vunpack.c.h.b16 %v3035
    %v3070 = vunpack.c.l.b16 %v3036
    %v3071 = vunpack.c.h.b16 %v3036
    %v3072 = vunpack.c.l.b16 %v3037
    %v3073 = vunpack.c.h.b16 %v3037
    %v3074 = vunpack.c.l.b16 %v3038
    %v3075 = vunpack.c.h.b16 %v3038
    %v3076 = vunpack.c.l.b16 %v3039
    %v3077 = vunpack.c.h.b16 %v3039
    %v3078 = vunpack.c.l.b16 %v3040
    %v3079 = vunpack.c.h.b16 %v3040
    %v3080 = vunpack.c.l.b16 %v3041
    %v3081 = vunpack.c.h.b16 %v3041
    %v3082 = vunpack.c.l.b16 %v3042
    %v3083 = vunpack.c.h.b16 %v3042
    %v3084 = vunpack.c.l.b16 %v3043
    %v3085 = vunpack.c.h.b16 %v3043
    %v3086 = vunpack.c.l.b16 %v3044
    %v3087 = vunpack.c.h.b16 %v3044
    %v3088 = vunpack.c.l.b16 %v3045
    %v3089 = vunpack.c.h.b16 %v3045
    %v3090 = vunpack.c.l.b16 %v3046
    %v3091 = vunpack.c.h.b16 %v3046
    %v3092 = vunpack.c.l.b16 %v3047
    %v3093 = vunpack.c.h.b16 %v3047
    %v3094 = vunpack.c.l.b16 %v3048
    %v3095 = vunpack.c.h.b16 %v3048
    %v3096 = vunpack.c.l.b16 %v3049
    %v3097 = vunpack.c.h.b16 %v3049
    %v3098 = vpack.c.b16 %v3068, %v3066
    %v3099 = vpack.c.b16 %v3069, %v3067
    %v3100 = vpack.c.b16 %v3072, %v3070
    %v3101 = vpack.c.b16 %v3073, %v3071
    %v3102 = vpack.c.b16 %v3076, %v3074
    %v3103 = vpack.c.b16 %v3077, %v3075
    %v3104 = vpack.c.b16 %v3080, %v3078
    %v3105 = vpack.c.b16 %v3081, %v3079
    %v3106 = vpack.c.b16 %v3084, %v3082
    %v3107 = vpack.c.b16 %v3085, %v3083
    %v3108 = vpack.c.b16 %v3088, %v3086
    %v3109 = vpack.c.b16 %v3089, %v3087
    %v3110 = vpack.c.b16 %v3092, %v3090
    %v3111 = vpack.c.b16 %v3093, %v3091
    %v3112 = vpack.c.b16 %v3096, %v3094
    %v3113 = vpack.c.b16 %v3097, %v3095
    %3130 = vmatprep.subr.bf16.mxu0 %v3113
    %3131 = vmatpush1.bf16.msra.mxu0 %v3112
    %3132 = vmatprep.subr.bf16.mxu0 %v3111
    %3133 = vmatpush1.bf16.msra.mxu0 %v3110
    %3134 = vmatprep.subr.bf16.mxu0 %v3109
    %3135 = vmatpush1.bf16.msra.mxu0 %v3108
    %3136 = vmatprep.subr.bf16.mxu0 %v3107
    %3137 = vmatpush1.bf16.msra.mxu0 %v3106
    %3138 = vmatprep.subr.bf16.mxu0 %v3105
    %3139 = vmatpush1.bf16.msra.mxu0 %v3104
    %3140 = vmatprep.subr.bf16.mxu0 %v3103
    %3141 = vmatpush1.bf16.msra.mxu0 %v3102
    %3142 = vmatprep.subr.bf16.mxu0 %v3101
    %3143 = vmatpush1.bf16.msra.mxu0 %v3100
    %3144 = vmatprep.subr.bf16.mxu0 %v3099
    %3145 = vmatpush1.bf16.msra.mxu0 %v3098
    %3146 = vmatprep.subr.bf16.mxu0 0
    %3147 = vmatpush2.bf16.msra.mxu0 0
    %3148 = vmatprep.subr.bf16.mxu0 0
    %3149 = vmatpush2.bf16.msra.mxu0 0
    %3150 = vmatprep.subr.bf16.mxu0 0
    %3151 = vmatpush2.bf16.msra.mxu0 0
    %3152 = vmatprep.subr.bf16.mxu0 0
    %3153 = vmatpush2.bf16.msra.mxu0 0
    %3154 = vmatprep.subr.bf16.mxu0 0
    %3155 = vmatpush2.bf16.msra.mxu0 0
    %3156 = vmatprep.subr.bf16.mxu0 0
    %3157 = vmatpush2.bf16.msra.mxu0 0
    %3158 = vmatprep.subr.bf16.mxu0 0
    %3159 = vmatpush2.bf16.msra.mxu0 0
    %3160 = vmatprep.subr.bf16.mxu0 0
    %3161 = vmatpush2.bf16.msra.mxu0 0
    %3162 = vmatprep.mubr.bf16.mxu0 0
    %3163 = vmatmul.mubr.bf16.gmra.mxu0 %v3032
    %v3164 = vpop.f32.mrf.mxu0
    %v3165 = vadd.f32 0.0, %v3164
    %v3166 = vpop.f32.mrf.mxu0
    %v3167 = vadd.f32 0.0, %v3166
    %v3168 = vpop.f32.mrf.mxu0
    %v3169 = vadd.f32 0.0, %v3168
    %v3170 = vpop.f32.mrf.mxu0
    %v3171 = vadd.f32 0.0, %v3170
    %3172 = vmatprep.mubr.bf16.mxu0 0
    %3173 = vmatmul.mubr.bf16.gmra.mxu0 %v3033
    %v3174 = vpop.f32.mrf.mxu0
    %v3175 = vadd.f32 0.0, %v3174
    %v3176 = vpop.f32.mrf.mxu0
    %v3177 = vadd.f32 0.0, %v3176
    %v3178 = vpop.f32.mrf.mxu0
    %v3179 = vadd.f32 0.0, %v3178
    %v3180 = vpop.f32.mrf.mxu0
    %v3181 = vadd.f32 0.0, %v3180
    %3182 = vdwg.mxu0
    %v3183 = vadd.f32 %v3024, %v3165
    %v3184 = vadd.f32 %v3025, %v3167
    %v3185 = vadd.f32 %v3026, %v3169
    %v3186 = vadd.f32 %v3027, %v3171
    %v3187 = vadd.f32 %v3028, %v3175
    %v3188 = vadd.f32 %v3029, %v3177
    %v3189 = vadd.f32 %v3030, %v3179
    %v3190 = vadd.f32 %v3031, %v3181
    %v3191 = vld [vmem:[%s18] sm:$0x3]
    %v3193 = vlaneseq
    %v3194 = vshrl.u32 %v3193, 7
    %v3195 = vsub.s32 0, %v3194
    %v3196 = vrot.slane %v3191, %v3195
    %v3197 = vlaneseq
    %v3198 = vshrl.u32 %v3197, 7
    %v3199 = vsub.s32 1, %v3198
    %v3200 = vrot.slane %v3191, %v3199
    %v3203 = vadd.f32 %v3183, %v3196
    %v3204 = vadd.f32 %v3184, %v3200
    %v3205 = vadd.f32 %v3185, %v3196
    %v3206 = vadd.f32 %v3186, %v3200
    %v3207 = vadd.f32 %v3187, %v3196
    %v3208 = vadd.f32 %v3188, %v3200
    %v3209 = vadd.f32 %v3189, %v3196
    %v3210 = vadd.f32 %v3190, %v3200
    %3211 = vst [vmem:[#allocation7] sm:$0xff] %v3203
    %3212 = vst [vmem:[#allocation7 + $0x8] sm:$0xff] %v3204
    %3213 = vst [vmem:[#allocation7 + $0x10] sm:$0xff] %v3205
    %3214 = vst [vmem:[#allocation7 + $0x18] sm:$0xff] %v3206
    %3215 = vst [vmem:[#allocation7 + $0x20] sm:$0xff] %v3207
    %3216 = vst [vmem:[#allocation7 + $0x28] sm:$0xff] %v3208
    %3217 = vst [vmem:[#allocation7 + $0x30] sm:$0xff] %v3209
    %3218 = vst [vmem:[#allocation7 + $0x38] sm:$0xff] %v3210
    // Predicated region
    $region86: #{tpu_custom_call.1} parent=1 // pred_check
      _
    $region87: #{tpu_custom_call.1} parent=1 // pred_check_branch
      %3220 = sbr.rel (0) target = $region89
    $region88: #{tpu_custom_call.1} parent=1 // pred_region
      %s3222 = ssub.s32 1024, 1024
      %3223 = vsyncadd [#allocation4], %s3222
      %s3224 = sshll.u32 [#allocation7], 4
      %s3225 = int_to_ptr.vmem [resolvable:$true] %s3224
      %3230 = dma.vmem_to_hbm [thread:$0]  %s3225, 1024, %s19, [#allocation4], 256, 256, 16
    $region89: #{tpu_custom_call.1} parent=1 // pred_fallthru
      _
    // Predicated region
    $region90: #{tpu_custom_call.1} parent=1 // pred_check
      _
    $region91: #{tpu_custom_call.1} parent=1 // pred_check_branch
      %3232 = sbr.rel (0) target = $region93
    $region92: #{tpu_custom_call.1} parent=1 // pred_region
      %3233 = dma.done [#allocation4], 1024
    $region93: #{tpu_custom_call.1} parent=1 // pred_fallthru
      _
    %3234 = vsyncpa [#allocation3], 1
    %3235 = vsyncpa [#allocation6], 1
    %3236 = vsyncpa [#allocation4], 1

</llo_original>
